<compile_context>
chip_gen: v5e
topology: v5e:2x2
jax: 0.10.0
libtpu: 0.0.40
codegen_flags: <defaults>
</compile_context>

<pallas_src>
import functools
import math

import jax
import jax.numpy as jnp
from jax import lax
from jax.experimental import pallas as pl
from jax.experimental.pallas import tpu as pltpu

# Above v5e's 16 MiB / v6e-v7x's 32 MiB scoped defaults, below v7x's 64 MiB
# physical VMEM.
_VMEM_LIMIT = 48 * 1024 * 1024


# ------------------------------ tiling helpers --------------------------------

def _round_up(x: int, m: int) -> int:
    return ((x + m - 1) // m) * m


def _pick_tile(dim: int, preferred: int, granule: int) -> int:
    """Largest tile <= preferred that divides `dim` and is a multiple of
    `granule`; falls back to the full dimension (a full-extent block is always
    legal)."""
    if dim <= preferred:
        return dim
    t = (preferred // granule) * granule
    while t >= granule:
        if dim % t == 0:
            return t
        t -= granule
    # TODO(synk): awkward (prime-ish) seq lengths fall back to a full block.
    return dim


# --------------------------- tiled linear (GEMM) ------------------------------

def _linear_kernel_acc(x_ref, w_ref, b_ref, o_ref, acc_ref):
    # Grid = (M/tm, N/tn, K/tk); K is the innermost (reduction) axis.
    k = pl.program_id(2)

    @pl.when(k == 0)
    def _():
        acc_ref[...] = jnp.zeros_like(acc_ref)

    acc_ref[...] += jnp.dot(x_ref[...], w_ref[...],
                            preferred_element_type=jnp.float32)

    @pl.when(k == pl.num_programs(2) - 1)
    def _():
        o_ref[...] = (acc_ref[...] + b_ref[...]).astype(o_ref.dtype)


def _linear_kernel_single(x_ref, w_ref, b_ref, o_ref):
    # K fits in a single block: no f32 scratch, zero-fill or copy epilogue.
    o_ref[...] = (jnp.dot(x_ref[...], w_ref[...],
                          preferred_element_type=jnp.float32)
                  + b_ref[...]).astype(o_ref.dtype)


def linear(x, w_t, b, *, out_dtype=None, tm=256, tn=256, tk=512):
    """y = x @ w_t + b   (x: (M, K), w_t: (K, N), b: (N,)).

    MXU operands are cast to w_t.dtype (bf16 in the hot path), accumulation is
    f32, bias add in f32.  Arbitrary M/N/K handled via zero padding."""
    M, K = x.shape
    Kw, N = w_t.shape
    assert K == Kw and b.shape == (N,)
    if x.dtype != w_t.dtype:
        x = x.astype(w_t.dtype)
    out_dtype = out_dtype or w_t.dtype
    b = b.astype(jnp.float32)

    tm = min(tm, _round_up(M, 16))
    tn = min(tn, _round_up(N, 128))
    tk = min(tk, _round_up(K, 128))
    Mp, Np, Kp = _round_up(M, tm), _round_up(N, tn), _round_up(K, tk)
    if (Mp, Kp) != (M, K):
        x = jnp.pad(x, ((0, Mp - M), (0, Kp - K)))
    if (Kp, Np) != (K, N):
        w_t = jnp.pad(w_t, ((0, Kp - K), (0, Np - N)))
    if Np != N:
        b = jnp.pad(b, (0, Np - N))

    grid = (Mp // tm, Np // tn, Kp // tk)
    single_k = grid[2] == 1
    kernel = _linear_kernel_single if single_k else _linear_kernel_acc
    scratch = [] if single_k else [pltpu.VMEM((tm, tn), jnp.float32)]

    out = pl.pallas_call(
        kernel,
        out_shape=jax.ShapeDtypeStruct((Mp, Np), out_dtype),
        grid_spec=pltpu.PrefetchScalarGridSpec(
            num_scalar_prefetch=0,
            grid=grid,
            in_specs=[
                pl.BlockSpec((tm, tk), lambda i, j, k: (i, k)),
                pl.BlockSpec((tk, tn), lambda i, j, k: (k, j)),
                pl.BlockSpec((1, tn), lambda i, j, k: (0, j)),
            ],
            out_specs=pl.BlockSpec((tm, tn), lambda i, j, k: (i, j)),
            scratch_shapes=scratch,
        ),
        compiler_params=pltpu.CompilerParams(
            dimension_semantics=("parallel", "parallel", "arbitrary"),
            vmem_limit_bytes=_VMEM_LIMIT),
    )(x, w_t, b.reshape(1, Np))
    if (Mp, Np) != (M, N):
        out = out[:M, :N]
    return out


# ----------------------------- attention kernels -------------------------------

def _attn_weights_kernel(q_ref, k_ref, v_ref, o_ref, w_ref):
    """need_weights=True path: one (batch, head, q-tile) step over the full key
    length.  1/sqrt(head_dim) is already folded into the q projection."""
    s = lax.dot_general(q_ref[...], k_ref[...], (((1,), (1,)), ((), ())),
                        preferred_element_type=jnp.float32)          # (tq, Sk)
    m = jnp.max(s, axis=-1, keepdims=True)
    p = jnp.exp(s - m)
    l = jnp.sum(p, axis=-1, keepdims=True)
    p = p * pl.reciprocal(l, approx=True)       # per-element weights required
    w_ref[...] = p.astype(w_ref.dtype)
    o_ref[...] = jnp.dot(p.astype(v_ref.dtype), v_ref[...],
                         preferred_element_type=jnp.float32).astype(o_ref.dtype)


def _attn_flash_kernel(q_ref, k_ref, v_ref, o_ref, m_sc, l_sc, acc_sc):
    """need_weights=False path: online softmax over a KV grid axis; VMEM use is
    O(tile) so it stays inside v7x's 64 MiB / v5e's scoped VMEM at long Sk."""
    kv = pl.program_id(3)

    @pl.when(kv == 0)
    def _():
        m_sc[...] = jnp.full(m_sc.shape, -jnp.inf, jnp.float32)
        l_sc[...] = jnp.zeros(l_sc.shape, jnp.float32)
        acc_sc[...] = jnp.zeros(acc_sc.shape, jnp.float32)

    s = lax.dot_general(q_ref[...], k_ref[...], (((1,), (1,)), ((), ())),
                        preferred_element_type=jnp.float32)          # (tq, tkv)
    m_prev = m_sc[...]
    m_new = jnp.maximum(m_prev, jnp.max(s, axis=-1, keepdims=True))
    alpha = jnp.exp(m_prev - m_new)
    p = jnp.exp(s - m_new)
    l_sc[...] = alpha * l_sc[...] + jnp.sum(p, axis=-1, keepdims=True)
    acc_sc[...] = alpha * acc_sc[...] + jnp.dot(
        p.astype(v_ref.dtype), v_ref[...], preferred_element_type=jnp.float32)
    m_sc[...] = m_new

    @pl.when(kv == pl.num_programs(3) - 1)
    def _():
        # Normalize the (tq, Dh) accumulator, not the (tq, Sk) probabilities.
        o_ref[...] = (acc_sc[...] * pl.reciprocal(l_sc[...], approx=True)
                      ).astype(o_ref.dtype)


def _attn_core_weights(q_src, k_src, v_src, *, H, Dh, q_off, k_off, v_off, tq):
    """Lane-aligned weights path: per-head (., Dh) columns are selected straight
    out of the (B, S, n*E) projection outputs via index_maps; per-head outputs
    are written straight into a (B, Sq, E) bf16 buffer (no HBM transposes)."""
    B, Sq, _ = q_src.shape
    Sk = k_src.shape[1]
    E = H * Dh
    grid = (B, H, Sq // tq)
    return pl.pallas_call(
        _attn_weights_kernel,
        out_shape=(jax.ShapeDtypeStruct((B, Sq, E), q_src.dtype),
                   jax.ShapeDtypeStruct((B, H, Sq, Sk), jnp.float32)),
        grid=grid,
        in_specs=[
            pl.BlockSpec((None, tq, Dh),
                         lambda b, h, qi, o=q_off: (b, qi, o + h)),
            pl.BlockSpec((None, Sk, Dh),
                         lambda b, h, qi, o=k_off: (b, 0, o + h)),
            pl.BlockSpec((None, Sk, Dh),
                         lambda b, h, qi, o=v_off: (b, 0, o + h)),
        ],
        out_specs=(
            pl.BlockSpec((None, tq, Dh), lambda b, h, qi: (b, qi, h)),
            pl.BlockSpec((None, None, tq, Sk), lambda b, h, qi: (b, h, qi, 0)),
        ),
        compiler_params=pltpu.CompilerParams(
            dimension_semantics=("parallel", "parallel", "parallel"),
            vmem_limit_bytes=_VMEM_LIMIT),
    )(q_src, k_src, v_src)


def _attn_core_flash(q_src, k_src, v_src, *, H, Dh, q_off, k_off, v_off,
                     tq, tkv):
    """Lane-aligned flash path (no attention-weights output)."""
    B, Sq, _ = q_src.shape
    Sk = k_src.shape[1]
    E = H * Dh
    grid = (B, H, Sq // tq, Sk // tkv)
    return pl.pallas_call(
        _attn_flash_kernel,
        out_shape=jax.ShapeDtypeStruct((B, Sq, E), q_src.dtype),
        grid=grid,
        in_specs=[
            pl.BlockSpec((None, tq, Dh),
                         lambda b, h, qi, kv, o=q_off: (b, qi, o + h)),
            pl.BlockSpec((None, tkv, Dh),
                         lambda b, h, qi, kv, o=k_off: (b, kv, o + h)),
            pl.BlockSpec((None, tkv, Dh),
                         lambda b, h, qi, kv, o=v_off: (b, kv, o + h)),
        ],
        out_specs=pl.BlockSpec((None, tq, Dh),
                               lambda b, h, qi, kv: (b, qi, h)),
        scratch_shapes=[pltpu.VMEM((tq, 1), jnp.float32),
                        pltpu.VMEM((tq, 1), jnp.float32),
                        pltpu.VMEM((tq, Dh), jnp.float32)],
        compiler_params=pltpu.CompilerParams(
            dimension_semantics=("parallel", "parallel", "parallel",
                                 "arbitrary"),
            vmem_limit_bytes=_VMEM_LIMIT),
    )(q_src, k_src, v_src)


def _attn_core_fallback(q3, k3, v3, *, H, Dh):
    """General path for head_dim that is not lane-aligned (Dh % 128 != 0):
    transpose to (B, H, S, Dh) and run one full block per (batch, head).
    TODO(synk): small shapes only; tile Sq/Sk here for large non-aligned Dh."""
    B, Sq, E = q3.shape
    Sk = k3.shape[1]

    def to_heads(t, S):
        return t.reshape(B, S, H, Dh).transpose(0, 2, 1, 3)

    qh, kh, vh = to_heads(q3, Sq), to_heads(k3, Sk), to_heads(v3, Sk)
    out, w = pl.pallas_call(
        _attn_weights_kernel,
        out_shape=(jax.ShapeDtypeStruct((B, H, Sq, Dh), q3.dtype),
                   jax.ShapeDtypeStruct((B, H, Sq, Sk), jnp.float32)),
        grid=(B, H),
        in_specs=[
            pl.BlockSpec((None, None, Sq, Dh), lambda b, h: (b, h, 0, 0)),
            pl.BlockSpec((None, None, Sk, Dh), lambda b, h: (b, h, 0, 0)),
            pl.BlockSpec((None, None, Sk, Dh), lambda b, h: (b, h, 0, 0)),
        ],
        out_specs=(
            pl.BlockSpec((None, None, Sq, Dh), lambda b, h: (b, h, 0, 0)),
            pl.BlockSpec((None, None, Sq, Sk), lambda b, h: (b, h, 0, 0)),
        ),
        compiler_params=pltpu.CompilerParams(
            dimension_semantics=("parallel", "parallel"),
            vmem_limit_bytes=_VMEM_LIMIT),
    )(qh, kh, vh)
    return out.transpose(0, 2, 1, 3).reshape(B, Sq, E), w


def mha_attention_core(q_src, k_src, v_src, *, num_heads, head_dim,
                       q_off=0, k_off=0, v_off=0, need_weights=True,
                       tq_preferred=256, tkv_preferred=512):
    """q_src/k_src/v_src: (B, S, n*E) projection outputs; *_off selects which
    group of `num_heads` head-wide column blocks holds q / k / v.
    Returns (attn_out (B, Sq, E), attn_weights (B, H, Sq, Sk) or None)."""
    B, Sq, _ = q_src.shape
    Sk = k_src.shape[1]
    H, Dh = num_heads, head_dim
    E = H * Dh

    if Dh % 128 == 0:
        tq = _pick_tile(Sq, tq_preferred, 16)
        if need_weights:
            return _attn_core_weights(q_src, k_src, v_src, H=H, Dh=Dh,
                                      q_off=q_off, k_off=k_off, v_off=v_off,
                                      tq=tq)
        tkv = _pick_tile(Sk, tkv_preferred, 128)
        out = _attn_core_flash(q_src, k_src, v_src, H=H, Dh=Dh,
                               q_off=q_off, k_off=k_off, v_off=v_off,
                               tq=tq, tkv=tkv)
        return out, None

    def cols(t, off):
        if off == 0 and t.shape[2] == E:
            return t
        return t[:, :, off * Dh: off * Dh + E]

    out, w = _attn_core_fallback(cols(q_src, q_off), cols(k_src, k_off),
                                 cols(v_src, v_off), H=H, Dh=Dh)
    return out, (w if need_weights else None)


# ------------------------------ forward path ----------------------------------

def prepare_params(params, num_heads, compute_dtype=jnp.bfloat16):
    """One-time parameter prep (hoisted out of the hot path): pre-transposed
    fused QKV weight (E, 3E) / out-projection weight (E, E) cast to bf16 for
    the MXU, 1/sqrt(head_dim) folded into the q projection, f32 biases."""
    W = params["in_proj_weight"]          # (3E, E)
    b = params["in_proj_bias"]            # (3E,)
    E = W.shape[1]
    Dh = E // num_heads
    scale = 1.0 / math.sqrt(Dh)
    W = jnp.concatenate([W[:E] * scale, W[E:]], axis=0)
    b = jnp.concatenate([b[:E] * scale, b[E:]])
    return {
        "W_qkv_T": W.T.astype(compute_dtype),                          # (E, 3E)
        "b_qkv": b.astype(jnp.float32),                                # (3E,)
        "W_out_T": params["out_proj_weight"].T.astype(compute_dtype),  # (E, E)
        "b_out": params["out_proj_bias"].astype(jnp.float32),          # (E,)
    }


def transformer_multi_attention_forward(Q, K, V, prepped, num_heads,
                                         need_weights=True,
                                         avg_attn_weights=False):
    """Eval-mode forward of the PyTorch module (QKV_same_dim, batch_first)."""
    B, Sq, E = Q.shape
    Sk = K.shape[1]
    H = num_heads
    Dh = E // H
    assert Dh * H == E

    W_qkv_T = prepped["W_qkv_T"]
    b_qkv = prepped["b_qkv"]

    if Q is K and K is V:
        # Self-attention: one fused GEMM with N = 3E (x read from HBM once),
        # bf16 output (halves the HBM round trip of the qkv intermediate).
        qkv = linear(Q.reshape(B * Sq, E), W_qkv_T, b_qkv)       # (B*Sq, 3E) bf16
        qkv3 = qkv.reshape(B, Sq, 3 * E)
        q_src = k_src = v_src = qkv3
        q_off, k_off, v_off = 0, H, 2 * H
    else:
        q2 = linear(Q.reshape(B * Sq, E), W_qkv_T[:, :E], b_qkv[:E])
        q_src, q_off = q2.reshape(B, Sq, E), 0
        if K is V:
            kv = linear(K.reshape(B * Sk, E), W_qkv_T[:, E:], b_qkv[E:])
            k_src = v_src = kv.reshape(B, Sk, 2 * E)
            k_off, v_off = 0, H
        else:
            k2 = linear(K.reshape(B * Sk, E), W_qkv_T[:, E:2 * E],
                        b_qkv[E:2 * E])
            v2 = linear(V.reshape(B * Sk, E), W_qkv_T[:, 2 * E:],
                        b_qkv[2 * E:])
            k_src, v_src = k2.reshape(B, Sk, E), v2.reshape(B, Sk, E)
            k_off, v_off = 0, 0

    # Attention core: head split/merge purely via index_maps (no transposes).
    attn_bse, weights = mha_attention_core(
        q_src, k_src, v_src, num_heads=H, head_dim=Dh,
        q_off=q_off, k_off=k_off, v_off=v_off, need_weights=need_weights)

    # Output projection consumes the bf16 (B, Sq, E) attention output directly
    # and emits the module's f32 output dtype.
    out = linear(attn_bse.reshape(B * Sq, E), prepped["W_out_T"],
                 prepped["b_out"], out_dtype=Q.dtype).reshape(B, Sq, E)

    if weights is not None and avg_attn_weights:
        weights = weights.mean(axis=1)
    return out, weights


def transformer_decoder_forward(target, memory=None):
    """With the module's default norm_first=False every decoder layer returns
    `target` unchanged, so the decoder stack is the identity on `target`.
    TODO(synk): the norm_first=True branch is not kernelized."""
    return target


# --------------------------- pure-JAX reference --------------------------------

def _reference(Q, K, V, params, num_heads):
    B, Sq, E = Q.shape
    Sk = K.shape[1]
    H, Dh = num_heads, E // num_heads
    Wq, Wk, Wv = jnp.split(params["in_proj_weight"], 3, axis=0)
    bq, bk, bv = jnp.split(params["in_proj_bias"], 3)
    q = (Q @ Wq.T + bq).reshape(B, Sq, H, Dh).transpose(0, 2, 1, 3)
    k = (K @ Wk.T + bk).reshape(B, Sk, H, Dh).transpose(0, 2, 1, 3)
    v = (V @ Wv.T + bv).reshape(B, Sk, H, Dh).transpose(0, 2, 1, 3)
    s = jnp.einsum("bhqd,bhkd->bhqk", q, k) / math.sqrt(Dh)
    p = jax.nn.softmax(s, axis=-1)
    o = jnp.einsum("bhqk,bhkd->bhqd", p, v).transpose(0, 2, 1, 3).reshape(B, Sq, E)
    out = o @ params["out_proj_weight"].T + params["out_proj_bias"]
    return out, p


# ----------------------------------- main --------------------------------------

if __name__ == "__main__":
    # Small but TPU-friendly shapes: head_dim = E // H = 128 keeps every block
    # lane-dense, seq is a multiple of 16 so the q-tiling path is exercised.
    B, S, E, H = 2, 256, 256, 2

    key = jax.random.PRNGKey(0)
    k1, k2, k3, k4, k5 = jax.random.split(key, 5)

    bound_in = math.sqrt(6.0 / (E + 3 * E))
    params = {
        "in_proj_weight": jax.random.uniform(k1, (3 * E, E), jnp.float32,
                                             -bound_in, bound_in),
        "in_proj_bias": 0.02 * jax.random.normal(k4, (3 * E,), jnp.float32),
        "out_proj_weight": jax.random.uniform(k2, (E, E), jnp.float32,
                                              -1.0 / math.sqrt(E),
                                              1.0 / math.sqrt(E)),
        "out_proj_bias": 0.02 * jax.random.normal(k5, (E,), jnp.float32),
    }

    x = jax.random.normal(k3, (B, S, E), jnp.float32)
    prepped = prepare_params(params, num_heads=H)

    @jax.jit
    def run_with_weights(xx, pp):
        # Module default: attn_weights=True, avg_attn_weights=False.
        return transformer_multi_attention_forward(
            xx, xx, xx, pp, num_heads=H, need_weights=True,
            avg_attn_weights=False)

    @jax.jit
    def run_flash(xx, pp):
        out, _ = transformer_multi_attention_forward(
            xx, xx, xx, pp, num_heads=H, need_weights=False)
        return out

    out, attn_w = run_with_weights(x, prepped)
    out = jax.block_until_ready(out)
    attn_w = jax.block_until_ready(attn_w)
    out_flash = jax.block_until_ready(run_flash(x, prepped))

    ref_out, ref_w = _reference(x, x, x, params, num_heads=H)

    assert out.shape == (B, S, E) and out.dtype == jnp.float32
    assert attn_w.shape == (B, H, S, S) and attn_w.dtype == jnp.float32
    assert out_flash.shape == (B, S, E)

    # bf16 MXU operands (f32 accumulation) -> relaxed tolerances vs f32 ref.
    err_out = float(jnp.max(jnp.abs(out - ref_out)))
    err_w = float(jnp.max(jnp.abs(attn_w - ref_w)))
    err_flash = float(jnp.max(jnp.abs(out_flash - ref_out)))
    assert err_out < 3e-2, err_out
    assert err_w < 5e-3, err_w
    assert err_flash < 3e-2, err_flash

    # Decoder stack with the module's default norm_first=False is the identity.
    dec = transformer_decoder_forward(x, x)
    assert dec is x

    print("KERNEL_OK")
</pallas_src>

<mosaic_0001>
module attributes {stable_mosaic.version = 11 : i64} {
  func.func @_linear_kernel_single(%arg0: i32, %arg1: i32, %arg2: i32, %arg3: memref<256x256xbf16, #tpu.memory_space<vmem>>, %arg4: memref<256x256xbf16, #tpu.memory_space<vmem>>, %arg5: memref<1x256xf32, #tpu.memory_space<vmem>>, %arg6: memref<256x256xbf16, #tpu.memory_space<vmem>>) attributes {dimension_semantics = [#tpu.dimension_semantics<parallel>, #tpu.dimension_semantics<parallel>, #tpu.dimension_semantics<arbitrary>], iteration_bounds = array<i64: 2, 3, 1>, scalar_prefetch = 0 : i64, scratch_operands = 0 : i64, tpu.core_type = #tpu.core_type<tc>, window_params = [{transform_indices = @transform_0, window_bounds = array<i64: 256, 256>}, {transform_indices = @transform_1, window_bounds = array<i64: 256, 256>}, {transform_indices = @transform_2, window_bounds = array<i64: 1, 256>}, {transform_indices = @transform_3, window_bounds = array<i64: 256, 256>}]} {
    %c0 = arith.constant 0 : index
    %c0_0 = arith.constant 0 : index
    %0 = vector.load %arg3[%c0, %c0_0] : memref<256x256xbf16, #tpu.memory_space<vmem>>, vector<256x256xbf16>
    %c0_1 = arith.constant 0 : index
    %c0_2 = arith.constant 0 : index
    %1 = vector.load %arg4[%c0_1, %c0_2] : memref<256x256xbf16, #tpu.memory_space<vmem>>, vector<256x256xbf16>
    %cst = arith.constant dense<0.000000e+00> : vector<256x256xf32>
    %2 = tpu.matmul %0, %1, %cst {dimension_numbers = #tpu.dot_dimension_numbers<[1], [0], [0], [1], [0, 0, 1, 1], [], []>} : vector<256x256xbf16>, vector<256x256xbf16>, vector<256x256xf32> -> vector<256x256xf32>
    %c0_3 = arith.constant 0 : index
    %c0_4 = arith.constant 0 : index
    %3 = vector.load %arg5[%c0_3, %c0_4] : memref<1x256xf32, #tpu.memory_space<vmem>>, vector<1x256xf32>
    %4 = vector.broadcast %3 : vector<1x256xf32> to vector<256x256xf32>
    %5 = arith.addf %2, %4 : vector<256x256xf32>
    %6 = arith.truncf %5 : vector<256x256xf32> to vector<256x256xbf16>
    %c0_5 = arith.constant 0 : index
    %c0_6 = arith.constant 0 : index
    %7 = vector.load %arg6[%c0_5, %c0_6] : memref<256x256xbf16, #tpu.memory_space<vmem>>, vector<256x256xbf16>
    tpu.vector_store %arg6[%c0_5, %c0_6], %6 {strides = array<i32>} : memref<256x256xbf16, #tpu.memory_space<vmem>>, vector<256x256xbf16>,
    return
  }
  func.func @transform_0(%arg0: i32, %arg1: i32, %arg2: i32) -> (i32, i32) {
    %c0_i32 = arith.constant 0 : i32
    return %arg0, %arg2 : i32, i32
  }
  func.func @transform_1(%arg0: i32, %arg1: i32, %arg2: i32) -> (i32, i32) {
    %c0_i32 = arith.constant 0 : i32
    return %arg2, %arg1 : i32, i32
  }
  func.func @transform_2(%arg0: i32, %arg1: i32, %arg2: i32) -> (i32, i32) {
    %c0_i32 = arith.constant 0 : i32
    %c0_i32_0 = arith.constant 0 : i32
    return %c0_i32, %arg1 : i32, i32
  }
  func.func @transform_3(%arg0: i32, %arg1: i32, %arg2: i32) -> (i32, i32) {
    %c0_i32 = arith.constant 0 : i32
    return %arg0, %arg1 : i32, i32
  }
}

module attributes {stable_mosaic.version = 11 : i64} {
  func.func @_attn_weights_kernel(%arg0: i32, %arg1: i32, %arg2: i32, %arg3: memref<1x256x128xbf16, #tpu.memory_space<vmem>>, %arg4: memref<1x256x128xbf16, #tpu.memory_space<vmem>>, %arg5: memref<1x256x128xbf16, #tpu.memory_space<vmem>>, %arg6: memref<1x256x128xbf16, #tpu.memory_space<vmem>>, %arg7: memref<1x1x256x256xf32, #tpu.memory_space<vmem>>) attributes {dimension_semantics = [#tpu.dimension_semantics<parallel>, #tpu.dimension_semantics<parallel>, #tpu.dimension_semantics<parallel>], iteration_bounds = array<i64: 2, 2, 1>, scalar_prefetch = 0 : i64, scratch_operands = 0 : i64, tpu.core_type = #tpu.core_type<tc>, window_params = [{transform_indices = @transform_0, window_bounds = array<i64: 1, 256, 128>}, {transform_indices = @transform_1, window_bounds = array<i64: 1, 256, 128>}, {transform_indices = @transform_2, window_bounds = array<i64: 1, 256, 128>}, {transform_indices = @transform_3, window_bounds = array<i64: 1, 256, 128>}, {transform_indices = @transform_4, window_bounds = array<i64: 1, 1, 256, 256>}]} {
    %c0 = arith.constant 0 : index
    %c0_0 = arith.constant 0 : index
    %c0_1 = arith.constant 0 : index
    %0 = vector.load %arg3[%c0, %c0_0, %c0_1] : memref<1x256x128xbf16, #tpu.memory_space<vmem>>, vector<1x256x128xbf16>
    %1 = vector.shape_cast %0 : vector<1x256x128xbf16> to vector<256x128xbf16>
    %c0_2 = arith.constant 0 : index
    %c0_3 = arith.constant 0 : index
    %c0_4 = arith.constant 0 : index
    %2 = vector.load %arg4[%c0_2, %c0_3, %c0_4] : memref<1x256x128xbf16, #tpu.memory_space<vmem>>, vector<1x256x128xbf16>
    %3 = vector.shape_cast %2 : vector<1x256x128xbf16> to vector<256x128xbf16>
    %cst = arith.constant dense<0.000000e+00> : vector<256x256xf32>
    %4 = tpu.matmul %1, %3, %cst {dimension_numbers = #tpu.dot_dimension_numbers<[1], [1], [0], [0], [0, 0, 1, 0], [], []>} : vector<256x128xbf16>, vector<256x128xbf16>, vector<256x256xf32> -> vector<256x256xf32>
    %cst_5 = arith.constant dense<0xFF800000> : vector<256xf32>
    %5 = vector.multi_reduction <maximumf>, %4, %cst_5 [1] : vector<256x256xf32> to vector<256xf32>
    %6 = vector.shape_cast %5 : vector<256xf32> to vector<256x1xf32>
    %7 = vector.broadcast %6 : vector<256x1xf32> to vector<256x256xf32>
    %8 = arith.subf %4, %7 : vector<256x256xf32>
    %9 = math.exp %8 : vector<256x256xf32>
    %cst_6 = arith.constant dense<0.000000e+00> : vector<256xf32>
    %10 = vector.multi_reduction <add>, %9, %cst_6 [1] : vector<256x256xf32> to vector<256xf32>
    %11 = vector.shape_cast %10 : vector<256xf32> to vector<256x1xf32>
    %12 = tpu.reciprocal %11 {approx = true} : vector<256x1xf32> -> vector<256x1xf32>
    %13 = vector.broadcast %12 : vector<256x1xf32> to vector<256x256xf32>
    %14 = arith.mulf %9, %13 : vector<256x256xf32>
    %c0_7 = arith.constant 0 : index
    %c0_8 = arith.constant 0 : index
    %c0_9 = arith.constant 0 : index
    %c0_10 = arith.constant 0 : index
    %15 = vector.load %arg7[%c0_7, %c0_8, %c0_9, %c0_10] : memref<1x1x256x256xf32, #tpu.memory_space<vmem>>, vector<1x1x256x256xf32>
    %16 = vector.shape_cast %15 : vector<1x1x256x256xf32> to vector<256x256xf32>
    %17 = vector.shape_cast %14 : vector<256x256xf32> to vector<1x1x256x256xf32>
    tpu.vector_store %arg7[%c0_7, %c0_8, %c0_9, %c0_10], %17 {strides = array<i32>} : memref<1x1x256x256xf32, #tpu.memory_space<vmem>>, vector<1x1x256x256xf32>,
    %18 = arith.truncf %14 : vector<256x256xf32> to vector<256x256xbf16>
    %c0_11 = arith.constant 0 : index
    %c0_12 = arith.constant 0 : index
    %c0_13 = arith.constant 0 : index
    %19 = vector.load %arg5[%c0_11, %c0_12, %c0_13] : memref<1x256x128xbf16, #tpu.memory_space<vmem>>, vector<1x256x128xbf16>
    %20 = vector.shape_cast %19 : vector<1x256x128xbf16> to vector<256x128xbf16>
    %cst_14 = arith.constant dense<0.000000e+00> : vector<256x128xf32>
    %21 = tpu.matmul %18, %20, %cst_14 {dimension_numbers = #tpu.dot_dimension_numbers<[1], [0], [0], [1], [0, 0, 1, 1], [], []>} : vector<256x256xbf16>, vector<256x128xbf16>, vector<256x128xf32> -> vector<256x128xf32>
    %22 = arith.truncf %21 : vector<256x128xf32> to vector<256x128xbf16>
    %c0_15 = arith.constant 0 : index
    %c0_16 = arith.constant 0 : index
    %c0_17 = arith.constant 0 : index
    %23 = vector.load %arg6[%c0_15, %c0_16, %c0_17] : memref<1x256x128xbf16, #tpu.memory_space<vmem>>, vector<1x256x128xbf16>
    %24 = vector.shape_cast %23 : vector<1x256x128xbf16> to vector<256x128xbf16>
    %25 = vector.shape_cast %22 : vector<256x128xbf16> to vector<1x256x128xbf16>
    tpu.vector_store %arg6[%c0_15, %c0_16, %c0_17], %25 {strides = array<i32>} : memref<1x256x128xbf16, #tpu.memory_space<vmem>>, vector<1x256x128xbf16>,
    return
  }
  func.func @transform_0(%arg0: i32, %arg1: i32, %arg2: i32) -> (i32, i32, i32) {
    %c0_i32 = arith.constant 0 : i32
    %0 = arith.addi %c0_i32, %arg1 : i32
    %c0_i32_0 = arith.constant 0 : i32
    return %arg0, %arg2, %0 : i32, i32, i32
  }
  func.func @transform_1(%arg0: i32, %arg1: i32, %arg2: i32) -> (i32, i32, i32) {
    %c2_i32 = arith.constant 2 : i32
    %0 = arith.addi %c2_i32, %arg1 : i32
    %c0_i32 = arith.constant 0 : i32
    %c0_i32_0 = arith.constant 0 : i32
    return %arg0, %c0_i32, %0 : i32, i32, i32
  }
  func.func @transform_2(%arg0: i32, %arg1: i32, %arg2: i32) -> (i32, i32, i32) {
    %c4_i32 = arith.constant 4 : i32
    %0 = arith.addi %c4_i32, %arg1 : i32
    %c0_i32 = arith.constant 0 : i32
    %c0_i32_0 = arith.constant 0 : i32
    return %arg0, %c0_i32, %0 : i32, i32, i32
  }
  func.func @transform_3(%arg0: i32, %arg1: i32, %arg2: i32) -> (i32, i32, i32) {
    %c0_i32 = arith.constant 0 : i32
    return %arg0, %arg2, %arg1 : i32, i32, i32
  }
  func.func @transform_4(%arg0: i32, %arg1: i32, %arg2: i32) -> (i32, i32, i32, i32) {
    %c0_i32 = arith.constant 0 : i32
    %c0_i32_0 = arith.constant 0 : i32
    return %arg0, %arg1, %arg2, %c0_i32 : i32, i32, i32, i32
  }
}

module attributes {stable_mosaic.version = 11 : i64} {
  func.func @_linear_kernel_single(%arg0: i32, %arg1: i32, %arg2: i32, %arg3: memref<256x256xbf16, #tpu.memory_space<vmem>>, %arg4: memref<256x256xbf16, #tpu.memory_space<vmem>>, %arg5: memref<1x256xf32, #tpu.memory_space<vmem>>, %arg6: memref<256x256xf32, #tpu.memory_space<vmem>>) attributes {dimension_semantics = [#tpu.dimension_semantics<parallel>, #tpu.dimension_semantics<parallel>, #tpu.dimension_semantics<arbitrary>], iteration_bounds = array<i64: 2, 1, 1>, scalar_prefetch = 0 : i64, scratch_operands = 0 : i64, tpu.core_type = #tpu.core_type<tc>, window_params = [{transform_indices = @transform_0, window_bounds = array<i64: 256, 256>}, {transform_indices = @transform_1, window_bounds = array<i64: 256, 256>}, {transform_indices = @transform_2, window_bounds = array<i64: 1, 256>}, {transform_indices = @transform_3, window_bounds = array<i64: 256, 256>}]} {
    %c0 = arith.constant 0 : index
    %c0_0 = arith.constant 0 : index
    %0 = vector.load %arg3[%c0, %c0_0] : memref<256x256xbf16, #tpu.memory_space<vmem>>, vector<256x256xbf16>
    %c0_1 = arith.constant 0 : index
    %c0_2 = arith.constant 0 : index
    %1 = vector.load %arg4[%c0_1, %c0_2] : memref<256x256xbf16, #tpu.memory_space<vmem>>, vector<256x256xbf16>
    %cst = arith.constant dense<0.000000e+00> : vector<256x256xf32>
    %2 = tpu.matmul %0, %1, %cst {dimension_numbers = #tpu.dot_dimension_numbers<[1], [0], [0], [1], [0, 0, 1, 1], [], []>} : vector<256x256xbf16>, vector<256x256xbf16>, vector<256x256xf32> -> vector<256x256xf32>
    %c0_3 = arith.constant 0 : index
    %c0_4 = arith.constant 0 : index
    %3 = vector.load %arg5[%c0_3, %c0_4] : memref<1x256xf32, #tpu.memory_space<vmem>>, vector<1x256xf32>
    %4 = vector.broadcast %3 : vector<1x256xf32> to vector<256x256xf32>
    %5 = arith.addf %2, %4 : vector<256x256xf32>
    %c0_5 = arith.constant 0 : index
    %c0_6 = arith.constant 0 : index
    %6 = vector.load %arg6[%c0_5, %c0_6] : memref<256x256xf32, #tpu.memory_space<vmem>>, vector<256x256xf32>
    tpu.vector_store %arg6[%c0_5, %c0_6], %5 {strides = array<i32>} : memref<256x256xf32, #tpu.memory_space<vmem>>, vector<256x256xf32>,
    return
  }
  func.func @transform_0(%arg0: i32, %arg1: i32, %arg2: i32) -> (i32, i32) {
    %c0_i32 = arith.constant 0 : i32
    return %arg0, %arg2 : i32, i32
  }
  func.func @transform_1(%arg0: i32, %arg1: i32, %arg2: i32) -> (i32, i32) {
    %c0_i32 = arith.constant 0 : i32
    return %arg2, %arg1 : i32, i32
  }
  func.func @transform_2(%arg0: i32, %arg1: i32, %arg2: i32) -> (i32, i32) {
    %c0_i32 = arith.constant 0 : i32
    %c0_i32_0 = arith.constant 0 : i32
    return %c0_i32, %arg1 : i32, i32
  }
  func.func @transform_3(%arg0: i32, %arg1: i32, %arg2: i32) -> (i32, i32) {
    %c0_i32 = arith.constant 0 : i32
    return %arg0, %arg1 : i32, i32
  }
}

</mosaic_0001>

<llo_original>
// kernel: run_with_weights.3
$region0: #{run_with_weights.3}
  #allocation0 [shape = 'u32[]', space=smem, size = 0x4, offset = 0x4, fixed_abs, tag = 'smem constant byte address 0x4 - core index']
  #allocation1 [shape = 'u32[72,128]{1,0:T(1,128)}', space=vmem, size = 0x9000, scoped, tag = 'internal scratch']
  %s0 = inlined_call_operand.vmem [shape: bf16[512,256], index: 0, kind: input, shape index: {}]
  %s1 = inlined_call_operand.vmem [shape: bf16[256,768], index: 1, kind: input, shape index: {}]
  %s2 = inlined_call_operand.vmem [shape: f32[1,768], index: 2, kind: input, shape index: {}]
  %s3 = inlined_call_operand.vmem [shape: bf16[512,768], index: 3, kind: output, shape index: {}]
  %s4 = sld [smem:[#allocation0]]
  $region117: #{run_with_weights.3} parent=0
    _
  %s6 = ssub.s32 1, %s4
  %s7 = scalar_select 0, %s6, %s4
  $region1: #{run_with_weights.3} parent=0
    #allocation2 [shape = 'u8[262144]{0}', space=vmem, size = 0x40000, scoped, tag = 'input window, operand 1']
    #allocation3 [shape = 'u8[262144]{0}', space=vmem, size = 0x40000, scoped, tag = 'output window, operand 0']
    loop: start=0, step=1, limit=8
    $region2: #{run_with_weights.3} parent=1 // loop_pre_header
      _
    $region3: #{run_with_weights.3} parent=1 // loop_header
      %s9 = sphi 0, %s13
      %p10 = scmp.ge.s32.totalorder %s9, 8
      %s16 = sphi 0, %s35
      %s17 = sphi 0, %s31
      %s18 = sphi 0, %s27
      %s19 = sphi 0, %s16
      %s20 = sphi 0, %s17
      %s21 = sphi 0, %s18
      %s22 = sphi 0, %s19
      %s23 = sphi 0, %s20
      %s24 = sphi 0, %s21
      %s40 = sphi 0, %s42
      %s43 = sphi 0, %s40
      %s44 = sphi 0, %s43
      %s60 = sphi 0, %s44
      %s68 = sphi 0, %s70
      %s71 = sphi 0, %s68
      %s72 = sphi 0, %s71
      %s88 = sphi 0, %s72
      %s94 = sphi 0, %s96
      %s97 = sphi 0, %s94
      %s98 = sphi 0, %s97
      %s114 = sphi 0, %s98
      %s122 = sphi 0, %s124
      %s125 = sphi 0, %s122
      %s126 = sphi 0, %s125
      %s142 = sphi 0, %s126
    $region4: #{run_with_weights.3} parent=1 // loop_header_branch
      %12 = sbr.rel (%p10) target = $region8
    $region5: #{run_with_weights.3} parent=1 // loop_body
      %s14 = ssub.s32 %s9, 1
      %s15 = ssub.s32 %s9, 2
      %s25 = sadd.s32 1, %s18
      %p26 = scmp.ge.s32.totalorder %s25, 1
      %s27 = scalar_select %p26, 0, %s25
      %s28 = sadd.s32 1, %s17
      %s29 = scalar_select %p26, %s28, %s17
      %p30 = scmp.ge.s32.totalorder %s29, 3
      %s31 = scalar_select %p30, 0, %s29
      %s32 = sadd.s32 1, %s16
      %s33 = scalar_select %p30, %s32, %s16
      %p34 = scmp.ge.s32.totalorder %s33, 2
      %s35 = scalar_select %p34, 0, %s33
      %s36 = ssub.s32 %s16, %s35
      %s37 = ssub.s32 %s18, %s27
      %s38 = sor.u32 %s36, %s37
      %p39 = scmp.eq.s32.totalorder %s38, 0
      %s41 = sadd.s32 %s40, 1
      %s42 = scalar_select %p39, %s40, %s41
      %p45 = pneg %p39
      %p46 = scmp.eq.s32.totalorder %s9, 5
      %p47 = por %p45, %p46
      %p48 = scmp.ne.s32.totalorder %s40, %s43
      %p49 = scmp.eq.s32.totalorder %s9, 0
      %p50 = por %p48, %p49
      %p51 = scmp.ne.s32.totalorder %s40, %s43
      %p52 = scmp.eq.s32.totalorder %s14, 5
      %p53 = por %p51, %p52
      %p54 = scmp.ne.s32.totalorder %s43, %s44
      %p55 = scmp.eq.s32.totalorder %s14, 0
      %p56 = por %p54, %p55
      %p57 = scmp.ne.s32.totalorder %s43, %s44
      %p58 = scmp.eq.s32.totalorder %s15, 5
      %p59 = por %p57, %p58
      %p61 = scmp.ne.s32.totalorder %s44, %s60
      %p62 = scmp.eq.s32.totalorder %s15, 0
      %p63 = por %p61, %p62
      %s64 = ssub.s32 %s18, %s27
      %s65 = ssub.s32 %s17, %s31
      %s66 = sor.u32 %s64, %s65
      %p67 = scmp.eq.s32.totalorder %s66, 0
      %s69 = sadd.s32 %s68, 1
      %s70 = scalar_select %p67, %s68, %s69
      %p73 = pneg %p67
      %p74 = scmp.eq.s32.totalorder %s9, 5
      %p75 = por %p73, %p74
      %p76 = scmp.ne.s32.totalorder %s68, %s71
      %p77 = scmp.eq.s32.totalorder %s9, 0
      %p78 = por %p76, %p77
      %p79 = scmp.ne.s32.totalorder %s68, %s71
      %p80 = scmp.eq.s32.totalorder %s14, 5
      %p81 = por %p79, %p80
      %p82 = scmp.ne.s32.totalorder %s71, %s72
      %p83 = scmp.eq.s32.totalorder %s14, 0
      %p84 = por %p82, %p83
      %p85 = scmp.ne.s32.totalorder %s71, %s72
      %p86 = scmp.eq.s32.totalorder %s15, 5
      %p87 = por %p85, %p86
      %p89 = scmp.ne.s32.totalorder %s72, %s88
      %p90 = scmp.eq.s32.totalorder %s15, 0
      %p91 = por %p89, %p90
      %s92 = ssub.s32 %s17, %s31
      %p93 = scmp.eq.s32.totalorder %s92, 0
      %s95 = sadd.s32 %s94, 1
      %s96 = scalar_select %p93, %s94, %s95
      %p99 = pneg %p93
      %p100 = scmp.eq.s32.totalorder %s9, 5
      %p101 = por %p99, %p100
      %p102 = scmp.ne.s32.totalorder %s94, %s97
      %p103 = scmp.eq.s32.totalorder %s9, 0
      %p104 = por %p102, %p103
      %p105 = scmp.ne.s32.totalorder %s94, %s97
      %p106 = scmp.eq.s32.totalorder %s14, 5
      %p107 = por %p105, %p106
      %p108 = scmp.ne.s32.totalorder %s97, %s98
      %p109 = scmp.eq.s32.totalorder %s14, 0
      %p110 = por %p108, %p109
      %p111 = scmp.ne.s32.totalorder %s97, %s98
      %p112 = scmp.eq.s32.totalorder %s15, 5
      %p113 = por %p111, %p112
      %p115 = scmp.ne.s32.totalorder %s98, %s114
      %p116 = scmp.eq.s32.totalorder %s15, 0
      %p117 = por %p115, %p116
      %s118 = ssub.s32 %s16, %s35
      %s119 = ssub.s32 %s17, %s31
      %s120 = sor.u32 %s118, %s119
      %p121 = scmp.eq.s32.totalorder %s120, 0
      %s123 = sadd.s32 %s122, 1
      %s124 = scalar_select %p121, %s122, %s123
      %p127 = pneg %p121
      %p128 = scmp.eq.s32.totalorder %s9, 5
      %p129 = por %p127, %p128
      %p130 = scmp.ne.s32.totalorder %s122, %s125
      %p131 = scmp.eq.s32.totalorder %s9, 0
      %p132 = por %p130, %p131
      %p133 = scmp.ne.s32.totalorder %s122, %s125
      %p134 = scmp.eq.s32.totalorder %s14, 5
      %p135 = por %p133, %p134
      %p136 = scmp.ne.s32.totalorder %s125, %s126
      %p137 = scmp.eq.s32.totalorder %s14, 0
      %p138 = por %p136, %p137
      %p139 = scmp.ne.s32.totalorder %s125, %s126
      %p140 = scmp.eq.s32.totalorder %s15, 5
      %p141 = por %p139, %p140
      %p143 = scmp.ne.s32.totalorder %s126, %s142
      %p144 = scmp.eq.s32.totalorder %s15, 0
      %p145 = por %p143, %p144
      %p146 = scmp.le.s32.totalorder 1, %s9
      %p147 = scmp.lt.s32.totalorder %s9, 7
      %p148 = pnand %p146, %p147
      %p149 = pneg %p148
      // Predicated region
      $region9: #{run_with_weights.3} parent=5 // pred_check
        _
      $region10: #{run_with_weights.3} parent=5 // pred_check_branch
        %151 = sbr.rel (%p148) target = $region12
      $region11: #{run_with_weights.3} parent=5 // pred_region
        %s152 = ssub.s32 %s9, 1
      $region12: #{run_with_weights.3} parent=5 // pred_fallthru
        _
      %p153 = scmp.lt.s32.totalorder %s9, 6
      // Predicated region
      $region13: #{run_with_weights.3} parent=5 // pred_check
        %p154 = pneg %p153
      $region14: #{run_with_weights.3} parent=5 // pred_check_branch
        %156 = sbr.rel (%p154) target = $region16
      $region15: #{run_with_weights.3} parent=5 // pred_region
        // Predicated region
        $region17: #{run_with_weights.3} parent=15 // pred_check
          %p157 = pneg %p50
        $region18: #{run_with_weights.3} parent=15 // pred_check_branch
          %159 = sbr.rel (%p157) target = $region20
        $region19: #{run_with_weights.3} parent=15 // pred_region
          %s160 = smul.u32 32, %s16
          %s161 = smul.u32 2, %s18
          %p162 = scmp.lt.s32.totalorder %s160, 63
          %s163 = scalar_select %p162, %s160, 63
          %p164 = scmp.lt.s32.totalorder %s161, 1
          %s165 = scalar_select %p164, %s161, 1
          %s166 = smul.addr %s163, 2
          %s167 = sadd.s32 %s165, %s166
          %s168 = smul.addr %s167, 4
          %s169 = scalar_lea.vmem %s0, %s168
          %s170 = smul.u32 32, %s16
          %s171 = smul.u32 2, %s18
        $region20: #{run_with_weights.3} parent=15 // pred_fallthru
          _
        // Predicated region
        $region21: #{run_with_weights.3} parent=15 // pred_check
          %p172 = pneg %p78
        $region22: #{run_with_weights.3} parent=15 // pred_check_branch
          %174 = sbr.rel (%p172) target = $region24
        $region23: #{run_with_weights.3} parent=15 // pred_region
          %s175 = sand.u32 %s68, 1
          %s176 = sand.u32 %s68, 1
          %s177 = smul.addr %s176, 256
          %s178 = scalar_lea.vmem [#allocation2], %s177
          %s179 = smul.u32 32, %s18
          %s180 = smul.u32 2, %s17
          %s181 = smul.addr %s179, 6
          %s182 = sadd.s32 %s180, %s181
          %s183 = smul.addr %s182, 4
          %s184 = scalar_lea.vmem %s1, %s183
          // Predicated region
          $region25: #{run_with_weights.3} parent=23 // pred_check
            _
          $region26: #{run_with_weights.3} parent=23 // pred_check_branch
            %186 = sbr.rel (0) target = $region28
          $region27: #{run_with_weights.3} parent=23 // pred_region
            // Predicated region
            $region29: #{run_with_weights.3} parent=27 // pred_check
              _
            $region30: #{run_with_weights.3} parent=27 // pred_check_branch
              %188 = sbr.rel (0) target = $region32
            $region31: #{run_with_weights.3} parent=27 // pred_region
              // Predicated region
              $region44: #{run_with_weights.3} parent=31 // pred_check
                _
              $region45: #{run_with_weights.3} parent=31 // pred_check_branch
                %266 = sbr.rel (0) target = $region47
              $region46: #{run_with_weights.3} parent=31 // pred_region
                loop: start=0, step=1, limit=1
                $region48: #{run_with_weights.3} parent=46 // loop_pre_header
                  _
                $region49: #{run_with_weights.3} parent=46 // loop_header
                  %s268 = sphi 0, %s272
                  %p269 = scmp.ge.s32.totalorder %s268, 1
                  %s273 = sphi %s184, %s184
                  %s274 = sphi %s178, %s178
                $region50: #{run_with_weights.3} parent=46 // loop_header_branch
                  %271 = sbr.rel (%p269) target = $region54
                $region51: #{run_with_weights.3} parent=46 // loop_body
                  %v275 = vld [vmem:[%s273] sm:$0xff]
                  %276 = vst [vmem:[%s274] sm:$0xff] %v275
                  %v277 = vld [vmem:[%s273 + $0x18] sm:$0xff]
                  %278 = vst [vmem:[%s274 + $0x8] sm:$0xff] %v277
                  %v279 = vld [vmem:[%s273 + $0x30] sm:$0xff]
                  %280 = vst [vmem:[%s274 + $0x10] sm:$0xff] %v279
                  %v281 = vld [vmem:[%s273 + $0x48] sm:$0xff]
                  %282 = vst [vmem:[%s274 + $0x18] sm:$0xff] %v281
                  %v283 = vld [vmem:[%s273 + $0x60] sm:$0xff]
                  %284 = vst [vmem:[%s274 + $0x20] sm:$0xff] %v283
                  %v285 = vld [vmem:[%s273 + $0x78] sm:$0xff]
                  %286 = vst [vmem:[%s274 + $0x28] sm:$0xff] %v285
                  %v287 = vld [vmem:[%s273 + $0x90] sm:$0xff]
                  %288 = vst [vmem:[%s274 + $0x30] sm:$0xff] %v287
                  %v289 = vld [vmem:[%s273 + $0xa8] sm:$0xff]
                  %290 = vst [vmem:[%s274 + $0x38] sm:$0xff] %v289
                  %v291 = vld [vmem:[%s273 + $0xc0] sm:$0xff]
                  %292 = vst [vmem:[%s274 + $0x40] sm:$0xff] %v291
                  %v293 = vld [vmem:[%s273 + $0xd8] sm:$0xff]
                  %294 = vst [vmem:[%s274 + $0x48] sm:$0xff] %v293
                  %v295 = vld [vmem:[%s273 + $0xf0] sm:$0xff]
                  %296 = vst [vmem:[%s274 + $0x50] sm:$0xff] %v295
                  %v297 = vld [vmem:[%s273 + $0x108] sm:$0xff]
                  %298 = vst [vmem:[%s274 + $0x58] sm:$0xff] %v297
                  %v299 = vld [vmem:[%s273 + $0x120] sm:$0xff]
                  %300 = vst [vmem:[%s274 + $0x60] sm:$0xff] %v299
                  %v301 = vld [vmem:[%s273 + $0x138] sm:$0xff]
                  %302 = vst [vmem:[%s274 + $0x68] sm:$0xff] %v301
                  %v303 = vld [vmem:[%s273 + $0x150] sm:$0xff]
                  %304 = vst [vmem:[%s274 + $0x70] sm:$0xff] %v303
                  %v305 = vld [vmem:[%s273 + $0x168] sm:$0xff]
                  %306 = vst [vmem:[%s274 + $0x78] sm:$0xff] %v305
                  %v307 = vld [vmem:[%s273 + $0x180] sm:$0xff]
                  %308 = vst [vmem:[%s274 + $0x80] sm:$0xff] %v307
                  %v309 = vld [vmem:[%s273 + $0x198] sm:$0xff]
                  %310 = vst [vmem:[%s274 + $0x88] sm:$0xff] %v309
                  %v311 = vld [vmem:[%s273 + $0x1b0] sm:$0xff]
                  %312 = vst [vmem:[%s274 + $0x90] sm:$0xff] %v311
                  %v313 = vld [vmem:[%s273 + $0x1c8] sm:$0xff]
                  %314 = vst [vmem:[%s274 + $0x98] sm:$0xff] %v313
                  %v315 = vld [vmem:[%s273 + $0x1e0] sm:$0xff]
                  %316 = vst [vmem:[%s274 + $0xa0] sm:$0xff] %v315
                  %v317 = vld [vmem:[%s273 + $0x1f8] sm:$0xff]
                  %318 = vst [vmem:[%s274 + $0xa8] sm:$0xff] %v317
                  %v319 = vld [vmem:[%s273 + $0x210] sm:$0xff]
                  %320 = vst [vmem:[%s274 + $0xb0] sm:$0xff] %v319
                  %v321 = vld [vmem:[%s273 + $0x228] sm:$0xff]
                  %322 = vst [vmem:[%s274 + $0xb8] sm:$0xff] %v321
                  %v323 = vld [vmem:[%s273 + $0x240] sm:$0xff]
                  %324 = vst [vmem:[%s274 + $0xc0] sm:$0xff] %v323
                  %v325 = vld [vmem:[%s273 + $0x258] sm:$0xff]
                  %326 = vst [vmem:[%s274 + $0xc8] sm:$0xff] %v325
                  %v327 = vld [vmem:[%s273 + $0x270] sm:$0xff]
                  %328 = vst [vmem:[%s274 + $0xd0] sm:$0xff] %v327
                  %v329 = vld [vmem:[%s273 + $0x288] sm:$0xff]
                  %330 = vst [vmem:[%s274 + $0xd8] sm:$0xff] %v329
                  %v331 = vld [vmem:[%s273 + $0x2a0] sm:$0xff]
                  %332 = vst [vmem:[%s274 + $0xe0] sm:$0xff] %v331
                  %v333 = vld [vmem:[%s273 + $0x2b8] sm:$0xff]
                  %334 = vst [vmem:[%s274 + $0xe8] sm:$0xff] %v333
                  %v335 = vld [vmem:[%s273 + $0x2d0] sm:$0xff]
                  %336 = vst [vmem:[%s274 + $0xf0] sm:$0xff] %v335
                  %v337 = vld [vmem:[%s273 + $0x2e8] sm:$0xff]
                  %338 = vst [vmem:[%s274 + $0xf8] sm:$0xff] %v337
                $region52: #{run_with_weights.3} parent=46 // loop_footer
                  %s272 = sadd.s32 1, %s268
                $region53: #{run_with_weights.3} parent=46 // loop_footer_branch
                  %267 = sbr.rel target = $region49
                $region54: #{run_with_weights.3} parent=46 // loop_exit
                  _
              $region47: #{run_with_weights.3} parent=31 // pred_fallthru
                _
              // Predicated region
              $region55: #{run_with_weights.3} parent=31 // pred_check
                _
              $region56: #{run_with_weights.3} parent=31 // pred_check_branch
                %340 = sbr.rel target = $region58
              $region57: #{run_with_weights.3} parent=31 // pred_region
                _
              $region58: #{run_with_weights.3} parent=31 // pred_fallthru
                _
            $region32: #{run_with_weights.3} parent=27 // pred_fallthru
              _
            // Predicated region
            $region33: #{run_with_weights.3} parent=27 // pred_check
              _
            $region34: #{run_with_weights.3} parent=27 // pred_check_branch
              %190 = sbr.rel target = $region36
            $region35: #{run_with_weights.3} parent=27 // pred_region
              %s192 = ssub.s32 256, 1
              loop: start=0, step=1, limit=1
              $region37: #{run_with_weights.3} parent=35 // loop_pre_header
                _
              $region38: #{run_with_weights.3} parent=35 // loop_header
                %s194 = sphi 0, %s198
                %p195 = scmp.ge.s32.totalorder %s194, 1
                %s199 = sphi %s184, %s184
                %s200 = sphi %s178, %s178
              $region39: #{run_with_weights.3} parent=35 // loop_header_branch
                %197 = sbr.rel (%p195) target = $region43
              $region40: #{run_with_weights.3} parent=35 // loop_body
                %v201 = vld [vmem:[%s199] sm:%s192]
                %202 = vst [vmem:[%s200] sm:%s192] %v201
                %v203 = vld [vmem:[%s199 + $0x18] sm:%s192]
                %204 = vst [vmem:[%s200 + $0x8] sm:%s192] %v203
                %v205 = vld [vmem:[%s199 + $0x30] sm:%s192]
                %206 = vst [vmem:[%s200 + $0x10] sm:%s192] %v205
                %v207 = vld [vmem:[%s199 + $0x48] sm:%s192]
                %208 = vst [vmem:[%s200 + $0x18] sm:%s192] %v207
                %v209 = vld [vmem:[%s199 + $0x60] sm:%s192]
                %210 = vst [vmem:[%s200 + $0x20] sm:%s192] %v209
                %v211 = vld [vmem:[%s199 + $0x78] sm:%s192]
                %212 = vst [vmem:[%s200 + $0x28] sm:%s192] %v211
                %v213 = vld [vmem:[%s199 + $0x90] sm:%s192]
                %214 = vst [vmem:[%s200 + $0x30] sm:%s192] %v213
                %v215 = vld [vmem:[%s199 + $0xa8] sm:%s192]
                %216 = vst [vmem:[%s200 + $0x38] sm:%s192] %v215
                %v217 = vld [vmem:[%s199 + $0xc0] sm:%s192]
                %218 = vst [vmem:[%s200 + $0x40] sm:%s192] %v217
                %v219 = vld [vmem:[%s199 + $0xd8] sm:%s192]
                %220 = vst [vmem:[%s200 + $0x48] sm:%s192] %v219
                %v221 = vld [vmem:[%s199 + $0xf0] sm:%s192]
                %222 = vst [vmem:[%s200 + $0x50] sm:%s192] %v221
                %v223 = vld [vmem:[%s199 + $0x108] sm:%s192]
                %224 = vst [vmem:[%s200 + $0x58] sm:%s192] %v223
                %v225 = vld [vmem:[%s199 + $0x120] sm:%s192]
                %226 = vst [vmem:[%s200 + $0x60] sm:%s192] %v225
                %v227 = vld [vmem:[%s199 + $0x138] sm:%s192]
                %228 = vst [vmem:[%s200 + $0x68] sm:%s192] %v227
                %v229 = vld [vmem:[%s199 + $0x150] sm:%s192]
                %230 = vst [vmem:[%s200 + $0x70] sm:%s192] %v229
                %v231 = vld [vmem:[%s199 + $0x168] sm:%s192]
                %232 = vst [vmem:[%s200 + $0x78] sm:%s192] %v231
                %v233 = vld [vmem:[%s199 + $0x180] sm:%s192]
                %234 = vst [vmem:[%s200 + $0x80] sm:%s192] %v233
                %v235 = vld [vmem:[%s199 + $0x198] sm:%s192]
                %236 = vst [vmem:[%s200 + $0x88] sm:%s192] %v235
                %v237 = vld [vmem:[%s199 + $0x1b0] sm:%s192]
                %238 = vst [vmem:[%s200 + $0x90] sm:%s192] %v237
                %v239 = vld [vmem:[%s199 + $0x1c8] sm:%s192]
                %240 = vst [vmem:[%s200 + $0x98] sm:%s192] %v239
                %v241 = vld [vmem:[%s199 + $0x1e0] sm:%s192]
                %242 = vst [vmem:[%s200 + $0xa0] sm:%s192] %v241
                %v243 = vld [vmem:[%s199 + $0x1f8] sm:%s192]
                %244 = vst [vmem:[%s200 + $0xa8] sm:%s192] %v243
                %v245 = vld [vmem:[%s199 + $0x210] sm:%s192]
                %246 = vst [vmem:[%s200 + $0xb0] sm:%s192] %v245
                %v247 = vld [vmem:[%s199 + $0x228] sm:%s192]
                %248 = vst [vmem:[%s200 + $0xb8] sm:%s192] %v247
                %v249 = vld [vmem:[%s199 + $0x240] sm:%s192]
                %250 = vst [vmem:[%s200 + $0xc0] sm:%s192] %v249
                %v251 = vld [vmem:[%s199 + $0x258] sm:%s192]
                %252 = vst [vmem:[%s200 + $0xc8] sm:%s192] %v251
                %v253 = vld [vmem:[%s199 + $0x270] sm:%s192]
                %254 = vst [vmem:[%s200 + $0xd0] sm:%s192] %v253
                %v255 = vld [vmem:[%s199 + $0x288] sm:%s192]
                %256 = vst [vmem:[%s200 + $0xd8] sm:%s192] %v255
                %v257 = vld [vmem:[%s199 + $0x2a0] sm:%s192]
                %258 = vst [vmem:[%s200 + $0xe0] sm:%s192] %v257
                %v259 = vld [vmem:[%s199 + $0x2b8] sm:%s192]
                %260 = vst [vmem:[%s200 + $0xe8] sm:%s192] %v259
                %v261 = vld [vmem:[%s199 + $0x2d0] sm:%s192]
                %262 = vst [vmem:[%s200 + $0xf0] sm:%s192] %v261
                %v263 = vld [vmem:[%s199 + $0x2e8] sm:%s192]
                %264 = vst [vmem:[%s200 + $0xf8] sm:%s192] %v263
              $region41: #{run_with_weights.3} parent=35 // loop_footer
                %s198 = sadd.s32 1, %s194
              $region42: #{run_with_weights.3} parent=35 // loop_footer_branch
                %193 = sbr.rel target = $region38
              $region43: #{run_with_weights.3} parent=35 // loop_exit
                _
            $region36: #{run_with_weights.3} parent=27 // pred_fallthru
              _
          $region28: #{run_with_weights.3} parent=23 // pred_fallthru
            _
          %341 = vnop
        $region24: #{run_with_weights.3} parent=15 // pred_fallthru
          _
        // Predicated region
        $region59: #{run_with_weights.3} parent=15 // pred_check
          %p342 = pneg %p104
        $region60: #{run_with_weights.3} parent=15 // pred_check_branch
          %344 = sbr.rel (%p342) target = $region62
        $region61: #{run_with_weights.3} parent=15 // pred_region
          %s345 = smul.u32 2, %s17
          %p346 = scmp.lt.s32.totalorder %s345, 5
          %s347 = scalar_select %p346, %s345, 5
          %s348 = scalar_lea.vmem %s2, %s347
          %s349 = smul.u32 2, %s17
        $region62: #{run_with_weights.3} parent=15 // pred_fallthru
          _
      $region16: #{run_with_weights.3} parent=5 // pred_fallthru
        _
      %p350 = scmp.le.s32.totalorder 1, %s9
      %p351 = scmp.lt.s32.totalorder %s9, 7
      %p352 = pnand %p350, %p351
      %p353 = pneg %p352
      // Predicated region
      $region63: #{run_with_weights.3} parent=5 // pred_check
        _
      $region64: #{run_with_weights.3} parent=5 // pred_check_branch
        %355 = sbr.rel (%p352) target = $region66
      $region65: #{run_with_weights.3} parent=5 // pred_region
        %s356 = ssub.s32 %s9, 1
        %s357 = sand.u32 %s71, 1
        %s358 = sand.u32 %s71, 1
        %s359 = smul.addr %s358, 256
        %s360 = scalar_lea.vmem [#allocation2], %s359
        // Predicated region
        $region67: #{run_with_weights.3} parent=65 // pred_check
          %p361 = pneg %p84
        $region68: #{run_with_weights.3} parent=65 // pred_check_branch
          %363 = sbr.rel (%p361) target = $region70
        $region69: #{run_with_weights.3} parent=65 // pred_region
          _
        $region70: #{run_with_weights.3} parent=65 // pred_fallthru
          _
        %s364 = smul.u32 32, %s19
        %s365 = smul.u32 2, %s21
        %p366 = scmp.lt.s32.totalorder %s364, 63
        %s367 = scalar_select %p366, %s364, 63
        %p368 = scmp.lt.s32.totalorder %s365, 1
        %s369 = scalar_select %p368, %s365, 1
        %s370 = smul.addr %s367, 2
        %s371 = sadd.s32 %s369, %s370
        %s372 = smul.addr %s371, 4
        %s373 = scalar_lea.vmem %s0, %s372
        %p374 = pneg %p56
        %p375 = pneg %p53
        %s376 = sand.u32 %s71, 1
        %s377 = sand.u32 %s71, 1
        %s378 = smul.addr %s377, 256
        %s379 = scalar_lea.vmem [#allocation2], %s378
        %p380 = pneg %p84
        %p381 = pneg %p81
        %s382 = smul.u32 2, %s20
        %p383 = scmp.lt.s32.totalorder %s382, 5
        %s384 = scalar_select %p383, %s382, 5
        %s385 = scalar_lea.vmem %s2, %s384
        %p386 = pneg %p110
        %p387 = pneg %p107
        %p388 = pneg %p138
        %p389 = pneg %p135
        %s390 = sand.u32 %s125, 1
        %s391 = sand.u32 %s125, 1
        %s392 = smul.addr %s391, 256
        %s393 = scalar_lea.vmem [#allocation3], %s392
        %s394 = smul.u32 32, %s19
        %s395 = smul.u32 2, %s21
        %p396 = scmp.lt.s32.totalorder %s394, 63
        %s397 = scalar_select %p396, %s394, 63
        %p398 = scmp.lt.s32.totalorder %s395, 1
        %s399 = scalar_select %p398, %s395, 1
        %s400 = smul.addr %s397, 2
        %s401 = sadd.s32 %s399, %s400
        %s402 = smul.addr %s401, 4
        %s403 = scalar_lea.vmem %s0, %s402
        %s404 = smul.u32 32, %s19
        %s405 = smul.u32 2, %s21
        %s406 = smul.u32 32, %s21
        %s407 = smul.u32 2, %s20
        %s408 = smul.u32 2, %s20
        %p409 = scmp.lt.s32.totalorder %s408, 5
        %s410 = scalar_select %p409, %s408, 5
        %s411 = scalar_lea.vmem %s2, %s410
        %s412 = smul.u32 2, %s20
        %s413 = smul.u32 32, %s19
        %s414 = smul.u32 2, %s20
        %v415 = vld [vmem:[%s403] sm:$0xff]
        %v416 = vld [vmem:[%s403 + $0x8] sm:$0xff]
        %v417 = vld [vmem:[%s403 + $0x10] sm:$0xff]
        %v418 = vld [vmem:[%s403 + $0x18] sm:$0xff]
        %v419 = vld [vmem:[%s403 + $0x20] sm:$0xff]
        %v420 = vld [vmem:[%s403 + $0x28] sm:$0xff]
        %v421 = vld [vmem:[%s403 + $0x30] sm:$0xff]
        %v422 = vld [vmem:[%s403 + $0x38] sm:$0xff]
        %v423 = vld [vmem:[%s403 + $0x40] sm:$0xff]
        %v424 = vld [vmem:[%s403 + $0x48] sm:$0xff]
        %v425 = vld [vmem:[%s403 + $0x50] sm:$0xff]
        %v426 = vld [vmem:[%s403 + $0x58] sm:$0xff]
        %v427 = vld [vmem:[%s403 + $0x60] sm:$0xff]
        %v428 = vld [vmem:[%s403 + $0x68] sm:$0xff]
        %v429 = vld [vmem:[%s403 + $0x70] sm:$0xff]
        %v430 = vld [vmem:[%s403 + $0x78] sm:$0xff]
        %v431 = vld [vmem:[%s403 + $0x80] sm:$0xff]
        %v432 = vld [vmem:[%s403 + $0x88] sm:$0xff]
        %v433 = vld [vmem:[%s403 + $0x90] sm:$0xff]
        %v434 = vld [vmem:[%s403 + $0x98] sm:$0xff]
        %v435 = vld [vmem:[%s403 + $0xa0] sm:$0xff]
        %v436 = vld [vmem:[%s403 + $0xa8] sm:$0xff]
        %v437 = vld [vmem:[%s403 + $0xb0] sm:$0xff]
        %v438 = vld [vmem:[%s403 + $0xb8] sm:$0xff]
        %v439 = vld [vmem:[%s403 + $0xc0] sm:$0xff]
        %v440 = vld [vmem:[%s403 + $0xc8] sm:$0xff]
        %v441 = vld [vmem:[%s403 + $0xd0] sm:$0xff]
        %v442 = vld [vmem:[%s403 + $0xd8] sm:$0xff]
        %v443 = vld [vmem:[%s403 + $0xe0] sm:$0xff]
        %v444 = vld [vmem:[%s403 + $0xe8] sm:$0xff]
        %v445 = vld [vmem:[%s403 + $0xf0] sm:$0xff]
        %v446 = vld [vmem:[%s403 + $0xf8] sm:$0xff]
        %v447 = vld [vmem:[%s360] sm:$0xff]
        %v448 = vld [vmem:[%s360 + $0x8] sm:$0xff]
        %v449 = vld [vmem:[%s360 + $0x10] sm:$0xff]
        %v450 = vld [vmem:[%s360 + $0x18] sm:$0xff]
        %v451 = vld [vmem:[%s360 + $0x20] sm:$0xff]
        %v452 = vld [vmem:[%s360 + $0x28] sm:$0xff]
        %v453 = vld [vmem:[%s360 + $0x30] sm:$0xff]
        %v454 = vld [vmem:[%s360 + $0x38] sm:$0xff]
        %v455 = vld [vmem:[%s360 + $0x40] sm:$0xff]
        %v456 = vld [vmem:[%s360 + $0x48] sm:$0xff]
        %v457 = vld [vmem:[%s360 + $0x50] sm:$0xff]
        %v458 = vld [vmem:[%s360 + $0x58] sm:$0xff]
        %v459 = vld [vmem:[%s360 + $0x60] sm:$0xff]
        %v460 = vld [vmem:[%s360 + $0x68] sm:$0xff]
        %v461 = vld [vmem:[%s360 + $0x70] sm:$0xff]
        %v462 = vld [vmem:[%s360 + $0x78] sm:$0xff]
        %v463 = vld [vmem:[%s360 + $0x80] sm:$0xff]
        %v464 = vld [vmem:[%s360 + $0x88] sm:$0xff]
        %v465 = vld [vmem:[%s360 + $0x90] sm:$0xff]
        %v466 = vld [vmem:[%s360 + $0x98] sm:$0xff]
        %v467 = vld [vmem:[%s360 + $0xa0] sm:$0xff]
        %v468 = vld [vmem:[%s360 + $0xa8] sm:$0xff]
        %v469 = vld [vmem:[%s360 + $0xb0] sm:$0xff]
        %v470 = vld [vmem:[%s360 + $0xb8] sm:$0xff]
        %v471 = vld [vmem:[%s360 + $0xc0] sm:$0xff]
        %v472 = vld [vmem:[%s360 + $0xc8] sm:$0xff]
        %v473 = vld [vmem:[%s360 + $0xd0] sm:$0xff]
        %v474 = vld [vmem:[%s360 + $0xd8] sm:$0xff]
        %v475 = vld [vmem:[%s360 + $0xe0] sm:$0xff]
        %v476 = vld [vmem:[%s360 + $0xe8] sm:$0xff]
        %v477 = vld [vmem:[%s360 + $0xf0] sm:$0xff]
        %v478 = vld [vmem:[%s360 + $0xf8] sm:$0xff]
        %v479 = vld [vmem:[%s411] sm:$0x3]
        %v481 = vperm.slane %v479, 0
        %v482 = vperm.slane %v479, 1
        %v517 = vunpack.c.l.b16 %v415
        %v518 = vunpack.c.h.b16 %v415
        %v519 = vunpack.c.l.b16 %v416
        %v520 = vunpack.c.h.b16 %v416
        %v521 = vunpack.c.l.b16 %v417
        %v522 = vunpack.c.h.b16 %v417
        %v523 = vunpack.c.l.b16 %v418
        %v524 = vunpack.c.h.b16 %v418
        %v525 = vunpack.c.l.b16 %v419
        %v526 = vunpack.c.h.b16 %v419
        %v527 = vunpack.c.l.b16 %v420
        %v528 = vunpack.c.h.b16 %v420
        %v529 = vunpack.c.l.b16 %v421
        %v530 = vunpack.c.h.b16 %v421
        %v531 = vunpack.c.l.b16 %v422
        %v532 = vunpack.c.h.b16 %v422
        %v533 = vunpack.c.l.b16 %v423
        %v534 = vunpack.c.h.b16 %v423
        %v535 = vunpack.c.l.b16 %v424
        %v536 = vunpack.c.h.b16 %v424
        %v537 = vunpack.c.l.b16 %v425
        %v538 = vunpack.c.h.b16 %v425
        %v539 = vunpack.c.l.b16 %v426
        %v540 = vunpack.c.h.b16 %v426
        %v541 = vunpack.c.l.b16 %v427
        %v542 = vunpack.c.h.b16 %v427
        %v543 = vunpack.c.l.b16 %v428
        %v544 = vunpack.c.h.b16 %v428
        %v545 = vunpack.c.l.b16 %v429
        %v546 = vunpack.c.h.b16 %v429
        %v547 = vunpack.c.l.b16 %v430
        %v548 = vunpack.c.h.b16 %v430
        %v549 = vunpack.c.l.b16 %v431
        %v550 = vunpack.c.h.b16 %v431
        %v551 = vunpack.c.l.b16 %v432
        %v552 = vunpack.c.h.b16 %v432
        %v553 = vunpack.c.l.b16 %v433
        %v554 = vunpack.c.h.b16 %v433
        %v555 = vunpack.c.l.b16 %v434
        %v556 = vunpack.c.h.b16 %v434
        %v557 = vunpack.c.l.b16 %v435
        %v558 = vunpack.c.h.b16 %v435
        %v559 = vunpack.c.l.b16 %v436
        %v560 = vunpack.c.h.b16 %v436
        %v561 = vunpack.c.l.b16 %v437
        %v562 = vunpack.c.h.b16 %v437
        %v563 = vunpack.c.l.b16 %v438
        %v564 = vunpack.c.h.b16 %v438
        %v565 = vunpack.c.l.b16 %v439
        %v566 = vunpack.c.h.b16 %v439
        %v567 = vunpack.c.l.b16 %v440
        %v568 = vunpack.c.h.b16 %v440
        %v569 = vunpack.c.l.b16 %v441
        %v570 = vunpack.c.h.b16 %v441
        %v571 = vunpack.c.l.b16 %v442
        %v572 = vunpack.c.h.b16 %v442
        %v573 = vunpack.c.l.b16 %v443
        %v574 = vunpack.c.h.b16 %v443
        %v575 = vunpack.c.l.b16 %v444
        %v576 = vunpack.c.h.b16 %v444
        %v577 = vunpack.c.l.b16 %v445
        %v578 = vunpack.c.h.b16 %v445
        %v579 = vunpack.c.l.b16 %v446
        %v580 = vunpack.c.h.b16 %v446
        %v581 = vpack.c.b16 %v519, %v517
        %v582 = vpack.c.b16 %v520, %v518
        %v583 = vpack.c.b16 %v523, %v521
        %v584 = vpack.c.b16 %v524, %v522
        %v585 = vpack.c.b16 %v527, %v525
        %v586 = vpack.c.b16 %v528, %v526
        %v587 = vpack.c.b16 %v531, %v529
        %v588 = vpack.c.b16 %v532, %v530
        %v589 = vpack.c.b16 %v535, %v533
        %v590 = vpack.c.b16 %v536, %v534
        %v591 = vpack.c.b16 %v539, %v537
        %v592 = vpack.c.b16 %v540, %v538
        %v593 = vpack.c.b16 %v543, %v541
        %v594 = vpack.c.b16 %v544, %v542
        %v595 = vpack.c.b16 %v547, %v545
        %v596 = vpack.c.b16 %v548, %v546
        %v597 = vpack.c.b16 %v551, %v549
        %v598 = vpack.c.b16 %v552, %v550
        %v599 = vpack.c.b16 %v555, %v553
        %v600 = vpack.c.b16 %v556, %v554
        %v601 = vpack.c.b16 %v559, %v557
        %v602 = vpack.c.b16 %v560, %v558
        %v603 = vpack.c.b16 %v563, %v561
        %v604 = vpack.c.b16 %v564, %v562
        %v605 = vpack.c.b16 %v567, %v565
        %v606 = vpack.c.b16 %v568, %v566
        %v607 = vpack.c.b16 %v571, %v569
        %v608 = vpack.c.b16 %v572, %v570
        %v609 = vpack.c.b16 %v575, %v573
        %v610 = vpack.c.b16 %v576, %v574
        %v611 = vpack.c.b16 %v579, %v577
        %v612 = vpack.c.b16 %v580, %v578
        %v677 = vunpack.c.l.b16 %v447
        %v678 = vunpack.c.h.b16 %v447
        %v679 = vunpack.c.l.b16 %v448
        %v680 = vunpack.c.h.b16 %v448
        %v681 = vunpack.c.l.b16 %v449
        %v682 = vunpack.c.h.b16 %v449
        %v683 = vunpack.c.l.b16 %v450
        %v684 = vunpack.c.h.b16 %v450
        %v685 = vunpack.c.l.b16 %v451
        %v686 = vunpack.c.h.b16 %v451
        %v687 = vunpack.c.l.b16 %v452
        %v688 = vunpack.c.h.b16 %v452
        %v689 = vunpack.c.l.b16 %v453
        %v690 = vunpack.c.h.b16 %v453
        %v691 = vunpack.c.l.b16 %v454
        %v692 = vunpack.c.h.b16 %v454
        %v693 = vunpack.c.l.b16 %v455
        %v694 = vunpack.c.h.b16 %v455
        %v695 = vunpack.c.l.b16 %v456
        %v696 = vunpack.c.h.b16 %v456
        %v697 = vunpack.c.l.b16 %v457
        %v698 = vunpack.c.h.b16 %v457
        %v699 = vunpack.c.l.b16 %v458
        %v700 = vunpack.c.h.b16 %v458
        %v701 = vunpack.c.l.b16 %v459
        %v702 = vunpack.c.h.b16 %v459
        %v703 = vunpack.c.l.b16 %v460
        %v704 = vunpack.c.h.b16 %v460
        %v705 = vunpack.c.l.b16 %v461
        %v706 = vunpack.c.h.b16 %v461
        %v707 = vunpack.c.l.b16 %v462
        %v708 = vunpack.c.h.b16 %v462
        %v709 = vunpack.c.l.b16 %v463
        %v710 = vunpack.c.h.b16 %v463
        %v711 = vunpack.c.l.b16 %v464
        %v712 = vunpack.c.h.b16 %v464
        %v713 = vunpack.c.l.b16 %v465
        %v714 = vunpack.c.h.b16 %v465
        %v715 = vunpack.c.l.b16 %v466
        %v716 = vunpack.c.h.b16 %v466
        %v717 = vunpack.c.l.b16 %v467
        %v718 = vunpack.c.h.b16 %v467
        %v719 = vunpack.c.l.b16 %v468
        %v720 = vunpack.c.h.b16 %v468
        %v721 = vunpack.c.l.b16 %v469
        %v722 = vunpack.c.h.b16 %v469
        %v723 = vunpack.c.l.b16 %v470
        %v724 = vunpack.c.h.b16 %v470
        %v725 = vunpack.c.l.b16 %v471
        %v726 = vunpack.c.h.b16 %v471
        %v727 = vunpack.c.l.b16 %v472
        %v728 = vunpack.c.h.b16 %v472
        %v729 = vunpack.c.l.b16 %v473
        %v730 = vunpack.c.h.b16 %v473
        %v731 = vunpack.c.l.b16 %v474
        %v732 = vunpack.c.h.b16 %v474
        %v733 = vunpack.c.l.b16 %v475
        %v734 = vunpack.c.h.b16 %v475
        %v735 = vunpack.c.l.b16 %v476
        %v736 = vunpack.c.h.b16 %v476
        %v737 = vunpack.c.l.b16 %v477
        %v738 = vunpack.c.h.b16 %v477
        %v739 = vunpack.c.l.b16 %v478
        %v740 = vunpack.c.h.b16 %v478
        %v741 = vpack.c.b16 %v679, %v677
        %v742 = vpack.c.b16 %v680, %v678
        %v743 = vpack.c.b16 %v683, %v681
        %v744 = vpack.c.b16 %v684, %v682
        %v745 = vpack.c.b16 %v687, %v685
        %v746 = vpack.c.b16 %v688, %v686
        %v747 = vpack.c.b16 %v691, %v689
        %v748 = vpack.c.b16 %v692, %v690
        %v749 = vpack.c.b16 %v695, %v693
        %v750 = vpack.c.b16 %v696, %v694
        %v751 = vpack.c.b16 %v699, %v697
        %v752 = vpack.c.b16 %v700, %v698
        %v753 = vpack.c.b16 %v703, %v701
        %v754 = vpack.c.b16 %v704, %v702
        %v755 = vpack.c.b16 %v707, %v705
        %v756 = vpack.c.b16 %v708, %v706
        %v757 = vpack.c.b16 %v711, %v709
        %v758 = vpack.c.b16 %v712, %v710
        %v759 = vpack.c.b16 %v715, %v713
        %v760 = vpack.c.b16 %v716, %v714
        %v761 = vpack.c.b16 %v719, %v717
        %v762 = vpack.c.b16 %v720, %v718
        %v763 = vpack.c.b16 %v723, %v721
        %v764 = vpack.c.b16 %v724, %v722
        %v765 = vpack.c.b16 %v727, %v725
        %v766 = vpack.c.b16 %v728, %v726
        %v767 = vpack.c.b16 %v731, %v729
        %v768 = vpack.c.b16 %v732, %v730
        %v769 = vpack.c.b16 %v735, %v733
        %v770 = vpack.c.b16 %v736, %v734
        %v771 = vpack.c.b16 %v739, %v737
        %v772 = vpack.c.b16 %v740, %v738
        %805 = vmatpush.bf16.msra.mxu0 %v755
        %806 = vmatpush.bf16.msra.mxu0 %v753
        %807 = vmatpush.bf16.msra.mxu0 %v751
        %808 = vmatpush.bf16.msra.mxu0 %v749
        %809 = vmatpush.bf16.msra.mxu0 %v747
        %810 = vmatpush.bf16.msra.mxu0 %v745
        %811 = vmatpush.bf16.msra.mxu0 %v743
        %812 = vmatpush.bf16.msra.mxu0 %v741
        %813 = vmatmul.bf16.gmra.mxu0 %v581
        %v814 = vpop.f32.mrf.mxu0
        %v815 = vadd.f32 %v481, %v814
        %v816 = vpop.f32.mrf.mxu0
        %v817 = vadd.f32 %v481, %v816
        %818 = vmatmul.bf16.gmra.mxu0 %v583
        %v819 = vpop.f32.mrf.mxu0
        %v820 = vadd.f32 %v481, %v819
        %v821 = vpop.f32.mrf.mxu0
        %v822 = vadd.f32 %v481, %v821
        %823 = vmatmul.bf16.gmra.mxu0 %v585
        %v824 = vpop.f32.mrf.mxu0
        %v825 = vadd.f32 %v481, %v824
        %v826 = vpop.f32.mrf.mxu0
        %v827 = vadd.f32 %v481, %v826
        %828 = vmatmul.bf16.gmra.mxu0 %v587
        %v829 = vpop.f32.mrf.mxu0
        %v830 = vadd.f32 %v481, %v829
        %v831 = vpop.f32.mrf.mxu0
        %v832 = vadd.f32 %v481, %v831
        %833 = vmatmul.bf16.gmra.mxu0 %v589
        %v834 = vpop.f32.mrf.mxu0
        %v835 = vadd.f32 %v481, %v834
        %v836 = vpop.f32.mrf.mxu0
        %v837 = vadd.f32 %v481, %v836
        %838 = vmatmul.bf16.gmra.mxu0 %v591
        %v839 = vpop.f32.mrf.mxu0
        %v840 = vadd.f32 %v481, %v839
        %v841 = vpop.f32.mrf.mxu0
        %v842 = vadd.f32 %v481, %v841
        %843 = vmatmul.bf16.gmra.mxu0 %v593
        %v844 = vpop.f32.mrf.mxu0
        %v845 = vadd.f32 %v481, %v844
        %v846 = vpop.f32.mrf.mxu0
        %v847 = vadd.f32 %v481, %v846
        %848 = vmatmul.bf16.gmra.mxu0 %v595
        %v849 = vpop.f32.mrf.mxu0
        %v850 = vadd.f32 %v481, %v849
        %v851 = vpop.f32.mrf.mxu0
        %v852 = vadd.f32 %v481, %v851
        %853 = vmatmul.bf16.gmra.mxu0 %v597
        %v854 = vpop.f32.mrf.mxu0
        %v855 = vadd.f32 %v481, %v854
        %v856 = vpop.f32.mrf.mxu0
        %v857 = vadd.f32 %v481, %v856
        %858 = vmatmul.bf16.gmra.mxu0 %v599
        %v859 = vpop.f32.mrf.mxu0
        %v860 = vadd.f32 %v481, %v859
        %v861 = vpop.f32.mrf.mxu0
        %v862 = vadd.f32 %v481, %v861
        %863 = vmatmul.bf16.gmra.mxu0 %v601
        %v864 = vpop.f32.mrf.mxu0
        %v865 = vadd.f32 %v481, %v864
        %v866 = vpop.f32.mrf.mxu0
        %v867 = vadd.f32 %v481, %v866
        %868 = vmatmul.bf16.gmra.mxu0 %v603
        %v869 = vpop.f32.mrf.mxu0
        %v870 = vadd.f32 %v481, %v869
        %v871 = vpop.f32.mrf.mxu0
        %v872 = vadd.f32 %v481, %v871
        %873 = vmatmul.bf16.gmra.mxu0 %v605
        %v874 = vpop.f32.mrf.mxu0
        %v875 = vadd.f32 %v481, %v874
        %v876 = vpop.f32.mrf.mxu0
        %v877 = vadd.f32 %v481, %v876
        %878 = vmatmul.bf16.gmra.mxu0 %v607
        %v879 = vpop.f32.mrf.mxu0
        %v880 = vadd.f32 %v481, %v879
        %v881 = vpop.f32.mrf.mxu0
        %v882 = vadd.f32 %v481, %v881
        %883 = vmatmul.bf16.gmra.mxu0 %v609
        %v884 = vpop.f32.mrf.mxu0
        %v885 = vadd.f32 %v481, %v884
        %v886 = vpop.f32.mrf.mxu0
        %v887 = vadd.f32 %v481, %v886
        %888 = vmatmul.bf16.gmra.mxu0 %v611
        %v889 = vpop.f32.mrf.mxu0
        %v890 = vadd.f32 %v481, %v889
        %v891 = vpop.f32.mrf.mxu0
        %v892 = vadd.f32 %v481, %v891
        %893 = vdwg.mxu0
        %894 = vmatpush.bf16.msra.mxu0 %v771
        %895 = vmatpush.bf16.msra.mxu0 %v769
        %896 = vmatpush.bf16.msra.mxu0 %v767
        %897 = vmatpush.bf16.msra.mxu0 %v765
        %898 = vmatpush.bf16.msra.mxu0 %v763
        %899 = vmatpush.bf16.msra.mxu0 %v761
        %900 = vmatpush.bf16.msra.mxu0 %v759
        %901 = vmatpush.bf16.msra.mxu0 %v757
        %902 = vmatmul.bf16.gmra.mxu0 %v582
        %v903 = vpop.f32.mrf.mxu0
        %v904 = vadd.f32 %v815, %v903
        %v905 = vpop.f32.mrf.mxu0
        %v906 = vadd.f32 %v817, %v905
        %907 = vmatmul.bf16.gmra.mxu0 %v584
        %v908 = vpop.f32.mrf.mxu0
        %v909 = vadd.f32 %v820, %v908
        %v910 = vpop.f32.mrf.mxu0
        %v911 = vadd.f32 %v822, %v910
        %912 = vmatmul.bf16.gmra.mxu0 %v586
        %v913 = vpop.f32.mrf.mxu0
        %v914 = vadd.f32 %v825, %v913
        %v915 = vpop.f32.mrf.mxu0
        %v916 = vadd.f32 %v827, %v915
        %917 = vmatmul.bf16.gmra.mxu0 %v588
        %v918 = vpop.f32.mrf.mxu0
        %v919 = vadd.f32 %v830, %v918
        %v920 = vpop.f32.mrf.mxu0
        %v921 = vadd.f32 %v832, %v920
        %922 = vmatmul.bf16.gmra.mxu0 %v590
        %v923 = vpop.f32.mrf.mxu0
        %v924 = vadd.f32 %v835, %v923
        %v925 = vpop.f32.mrf.mxu0
        %v926 = vadd.f32 %v837, %v925
        %927 = vmatmul.bf16.gmra.mxu0 %v592
        %v928 = vpop.f32.mrf.mxu0
        %v929 = vadd.f32 %v840, %v928
        %v930 = vpop.f32.mrf.mxu0
        %v931 = vadd.f32 %v842, %v930
        %932 = vmatmul.bf16.gmra.mxu0 %v594
        %v933 = vpop.f32.mrf.mxu0
        %v934 = vadd.f32 %v845, %v933
        %v935 = vpop.f32.mrf.mxu0
        %v936 = vadd.f32 %v847, %v935
        %937 = vmatmul.bf16.gmra.mxu0 %v596
        %v938 = vpop.f32.mrf.mxu0
        %v939 = vadd.f32 %v850, %v938
        %v940 = vpop.f32.mrf.mxu0
        %v941 = vadd.f32 %v852, %v940
        %942 = vmatmul.bf16.gmra.mxu0 %v598
        %v943 = vpop.f32.mrf.mxu0
        %v944 = vadd.f32 %v855, %v943
        %v945 = vpop.f32.mrf.mxu0
        %v946 = vadd.f32 %v857, %v945
        %947 = vmatmul.bf16.gmra.mxu0 %v600
        %v948 = vpop.f32.mrf.mxu0
        %v949 = vadd.f32 %v860, %v948
        %v950 = vpop.f32.mrf.mxu0
        %v951 = vadd.f32 %v862, %v950
        %952 = vmatmul.bf16.gmra.mxu0 %v602
        %v953 = vpop.f32.mrf.mxu0
        %v954 = vadd.f32 %v865, %v953
        %v955 = vpop.f32.mrf.mxu0
        %v956 = vadd.f32 %v867, %v955
        %957 = vmatmul.bf16.gmra.mxu0 %v604
        %v958 = vpop.f32.mrf.mxu0
        %v959 = vadd.f32 %v870, %v958
        %v960 = vpop.f32.mrf.mxu0
        %v961 = vadd.f32 %v872, %v960
        %962 = vmatmul.bf16.gmra.mxu0 %v606
        %v963 = vpop.f32.mrf.mxu0
        %v964 = vadd.f32 %v875, %v963
        %v965 = vpop.f32.mrf.mxu0
        %v966 = vadd.f32 %v877, %v965
        %967 = vmatmul.bf16.gmra.mxu0 %v608
        %v968 = vpop.f32.mrf.mxu0
        %v969 = vadd.f32 %v880, %v968
        %v970 = vpop.f32.mrf.mxu0
        %v971 = vadd.f32 %v882, %v970
        %972 = vmatmul.bf16.gmra.mxu0 %v610
        %v973 = vpop.f32.mrf.mxu0
        %v974 = vadd.f32 %v885, %v973
        %v975 = vpop.f32.mrf.mxu0
        %v976 = vadd.f32 %v887, %v975
        %977 = vmatmul.bf16.gmra.mxu0 %v612
        %v978 = vpop.f32.mrf.mxu0
        %v979 = vadd.f32 %v890, %v978
        %v980 = vpop.f32.mrf.mxu0
        %v981 = vadd.f32 %v892, %v980
        %982 = vdwg.mxu0
        %983 = vmatpush.bf16.msra.mxu0 %v756
        %984 = vmatpush.bf16.msra.mxu0 %v754
        %985 = vmatpush.bf16.msra.mxu0 %v752
        %986 = vmatpush.bf16.msra.mxu0 %v750
        %987 = vmatpush.bf16.msra.mxu0 %v748
        %988 = vmatpush.bf16.msra.mxu0 %v746
        %989 = vmatpush.bf16.msra.mxu0 %v744
        %990 = vmatpush.bf16.msra.mxu0 %v742
        %991 = vmatmul.bf16.gmra.mxu0 %v581
        %v992 = vpop.f32.mrf.mxu0
        %v993 = vadd.f32 %v482, %v992
        %v994 = vpop.f32.mrf.mxu0
        %v995 = vadd.f32 %v482, %v994
        %996 = vmatmul.bf16.gmra.mxu0 %v583
        %v997 = vpop.f32.mrf.mxu0
        %v998 = vadd.f32 %v482, %v997
        %v999 = vpop.f32.mrf.mxu0
        %v1000 = vadd.f32 %v482, %v999
        %1001 = vmatmul.bf16.gmra.mxu0 %v585
        %v1002 = vpop.f32.mrf.mxu0
        %v1003 = vadd.f32 %v482, %v1002
        %v1004 = vpop.f32.mrf.mxu0
        %v1005 = vadd.f32 %v482, %v1004
        %1006 = vmatmul.bf16.gmra.mxu0 %v587
        %v1007 = vpop.f32.mrf.mxu0
        %v1008 = vadd.f32 %v482, %v1007
        %v1009 = vpop.f32.mrf.mxu0
        %v1010 = vadd.f32 %v482, %v1009
        %1011 = vmatmul.bf16.gmra.mxu0 %v589
        %v1012 = vpop.f32.mrf.mxu0
        %v1013 = vadd.f32 %v482, %v1012
        %v1014 = vpop.f32.mrf.mxu0
        %v1015 = vadd.f32 %v482, %v1014
        %1016 = vmatmul.bf16.gmra.mxu0 %v591
        %v1017 = vpop.f32.mrf.mxu0
        %v1018 = vadd.f32 %v482, %v1017
        %v1019 = vpop.f32.mrf.mxu0
        %v1020 = vadd.f32 %v482, %v1019
        %1021 = vmatmul.bf16.gmra.mxu0 %v593
        %v1022 = vpop.f32.mrf.mxu0
        %v1023 = vadd.f32 %v482, %v1022
        %v1024 = vpop.f32.mrf.mxu0
        %v1025 = vadd.f32 %v482, %v1024
        %1026 = vmatmul.bf16.gmra.mxu0 %v595
        %v1027 = vpop.f32.mrf.mxu0
        %v1028 = vadd.f32 %v482, %v1027
        %v1029 = vpop.f32.mrf.mxu0
        %v1030 = vadd.f32 %v482, %v1029
        %1031 = vmatmul.bf16.gmra.mxu0 %v597
        %v1032 = vpop.f32.mrf.mxu0
        %v1033 = vadd.f32 %v482, %v1032
        %v1034 = vpop.f32.mrf.mxu0
        %v1035 = vadd.f32 %v482, %v1034
        %1036 = vmatmul.bf16.gmra.mxu0 %v599
        %v1037 = vpop.f32.mrf.mxu0
        %v1038 = vadd.f32 %v482, %v1037
        %v1039 = vpop.f32.mrf.mxu0
        %v1040 = vadd.f32 %v482, %v1039
        %1041 = vmatmul.bf16.gmra.mxu0 %v601
        %v1042 = vpop.f32.mrf.mxu0
        %v1043 = vadd.f32 %v482, %v1042
        %v1044 = vpop.f32.mrf.mxu0
        %v1045 = vadd.f32 %v482, %v1044
        %1046 = vmatmul.bf16.gmra.mxu0 %v603
        %v1047 = vpop.f32.mrf.mxu0
        %v1048 = vadd.f32 %v482, %v1047
        %v1049 = vpop.f32.mrf.mxu0
        %v1050 = vadd.f32 %v482, %v1049
        %1051 = vmatmul.bf16.gmra.mxu0 %v605
        %v1052 = vpop.f32.mrf.mxu0
        %v1053 = vadd.f32 %v482, %v1052
        %v1054 = vpop.f32.mrf.mxu0
        %v1055 = vadd.f32 %v482, %v1054
        %1056 = vmatmul.bf16.gmra.mxu0 %v607
        %v1057 = vpop.f32.mrf.mxu0
        %v1058 = vadd.f32 %v482, %v1057
        %v1059 = vpop.f32.mrf.mxu0
        %v1060 = vadd.f32 %v482, %v1059
        %1061 = vmatmul.bf16.gmra.mxu0 %v609
        %v1062 = vpop.f32.mrf.mxu0
        %v1063 = vadd.f32 %v482, %v1062
        %v1064 = vpop.f32.mrf.mxu0
        %v1065 = vadd.f32 %v482, %v1064
        %1066 = vmatmul.bf16.gmra.mxu0 %v611
        %v1067 = vpop.f32.mrf.mxu0
        %v1068 = vadd.f32 %v482, %v1067
        %v1069 = vpop.f32.mrf.mxu0
        %v1070 = vadd.f32 %v482, %v1069
        %1071 = vdwg.mxu0
        %1072 = vmatpush.bf16.msra.mxu0 %v772
        %1073 = vmatpush.bf16.msra.mxu0 %v770
        %1074 = vmatpush.bf16.msra.mxu0 %v768
        %1075 = vmatpush.bf16.msra.mxu0 %v766
        %1076 = vmatpush.bf16.msra.mxu0 %v764
        %1077 = vmatpush.bf16.msra.mxu0 %v762
        %1078 = vmatpush.bf16.msra.mxu0 %v760
        %1079 = vmatpush.bf16.msra.mxu0 %v758
        %1080 = vmatmul.bf16.gmra.mxu0 %v582
        %v1081 = vpop.f32.mrf.mxu0
        %v1082 = vadd.f32 %v993, %v1081
        %v1083 = vpop.f32.mrf.mxu0
        %v1084 = vadd.f32 %v995, %v1083
        %1085 = vmatmul.bf16.gmra.mxu0 %v584
        %v1086 = vpop.f32.mrf.mxu0
        %v1087 = vadd.f32 %v998, %v1086
        %v1088 = vpop.f32.mrf.mxu0
        %v1089 = vadd.f32 %v1000, %v1088
        %1090 = vmatmul.bf16.gmra.mxu0 %v586
        %v1091 = vpop.f32.mrf.mxu0
        %v1092 = vadd.f32 %v1003, %v1091
        %v1093 = vpop.f32.mrf.mxu0
        %v1094 = vadd.f32 %v1005, %v1093
        %1095 = vmatmul.bf16.gmra.mxu0 %v588
        %v1096 = vpop.f32.mrf.mxu0
        %v1097 = vadd.f32 %v1008, %v1096
        %v1098 = vpop.f32.mrf.mxu0
        %v1099 = vadd.f32 %v1010, %v1098
        %1100 = vmatmul.bf16.gmra.mxu0 %v590
        %v1101 = vpop.f32.mrf.mxu0
        %v1102 = vadd.f32 %v1013, %v1101
        %v1103 = vpop.f32.mrf.mxu0
        %v1104 = vadd.f32 %v1015, %v1103
        %1105 = vmatmul.bf16.gmra.mxu0 %v592
        %v1106 = vpop.f32.mrf.mxu0
        %v1107 = vadd.f32 %v1018, %v1106
        %v1108 = vpop.f32.mrf.mxu0
        %v1109 = vadd.f32 %v1020, %v1108
        %1110 = vmatmul.bf16.gmra.mxu0 %v594
        %v1111 = vpop.f32.mrf.mxu0
        %v1112 = vadd.f32 %v1023, %v1111
        %v1113 = vpop.f32.mrf.mxu0
        %v1114 = vadd.f32 %v1025, %v1113
        %1115 = vmatmul.bf16.gmra.mxu0 %v596
        %v1116 = vpop.f32.mrf.mxu0
        %v1117 = vadd.f32 %v1028, %v1116
        %v1118 = vpop.f32.mrf.mxu0
        %v1119 = vadd.f32 %v1030, %v1118
        %1120 = vmatmul.bf16.gmra.mxu0 %v598
        %v1121 = vpop.f32.mrf.mxu0
        %v1122 = vadd.f32 %v1033, %v1121
        %v1123 = vpop.f32.mrf.mxu0
        %v1124 = vadd.f32 %v1035, %v1123
        %1125 = vmatmul.bf16.gmra.mxu0 %v600
        %v1126 = vpop.f32.mrf.mxu0
        %v1127 = vadd.f32 %v1038, %v1126
        %v1128 = vpop.f32.mrf.mxu0
        %v1129 = vadd.f32 %v1040, %v1128
        %1130 = vmatmul.bf16.gmra.mxu0 %v602
        %v1131 = vpop.f32.mrf.mxu0
        %v1132 = vadd.f32 %v1043, %v1131
        %v1133 = vpop.f32.mrf.mxu0
        %v1134 = vadd.f32 %v1045, %v1133
        %1135 = vmatmul.bf16.gmra.mxu0 %v604
        %v1136 = vpop.f32.mrf.mxu0
        %v1137 = vadd.f32 %v1048, %v1136
        %v1138 = vpop.f32.mrf.mxu0
        %v1139 = vadd.f32 %v1050, %v1138
        %1140 = vmatmul.bf16.gmra.mxu0 %v606
        %v1141 = vpop.f32.mrf.mxu0
        %v1142 = vadd.f32 %v1053, %v1141
        %v1143 = vpop.f32.mrf.mxu0
        %v1144 = vadd.f32 %v1055, %v1143
        %1145 = vmatmul.bf16.gmra.mxu0 %v608
        %v1146 = vpop.f32.mrf.mxu0
        %v1147 = vadd.f32 %v1058, %v1146
        %v1148 = vpop.f32.mrf.mxu0
        %v1149 = vadd.f32 %v1060, %v1148
        %1150 = vmatmul.bf16.gmra.mxu0 %v610
        %v1151 = vpop.f32.mrf.mxu0
        %v1152 = vadd.f32 %v1063, %v1151
        %v1153 = vpop.f32.mrf.mxu0
        %v1154 = vadd.f32 %v1065, %v1153
        %1155 = vmatmul.bf16.gmra.mxu0 %v612
        %v1156 = vpop.f32.mrf.mxu0
        %v1157 = vadd.f32 %v1068, %v1156
        %v1158 = vpop.f32.mrf.mxu0
        %v1159 = vadd.f32 %v1070, %v1158
        %1160 = vdwg.mxu0
        %v1161 = vpack.c.bf16 %v1082, %v904
        %v1162 = vpack.c.bf16 %v1084, %v906
        %v1163 = vpack.c.bf16 %v1087, %v909
        %v1164 = vpack.c.bf16 %v1089, %v911
        %v1165 = vpack.c.bf16 %v1092, %v914
        %v1166 = vpack.c.bf16 %v1094, %v916
        %v1167 = vpack.c.bf16 %v1097, %v919
        %v1168 = vpack.c.bf16 %v1099, %v921
        %v1169 = vpack.c.bf16 %v1102, %v924
        %v1170 = vpack.c.bf16 %v1104, %v926
        %v1171 = vpack.c.bf16 %v1107, %v929
        %v1172 = vpack.c.bf16 %v1109, %v931
        %v1173 = vpack.c.bf16 %v1112, %v934
        %v1174 = vpack.c.bf16 %v1114, %v936
        %v1175 = vpack.c.bf16 %v1117, %v939
        %v1176 = vpack.c.bf16 %v1119, %v941
        %v1177 = vpack.c.bf16 %v1122, %v944
        %v1178 = vpack.c.bf16 %v1124, %v946
        %v1179 = vpack.c.bf16 %v1127, %v949
        %v1180 = vpack.c.bf16 %v1129, %v951
        %v1181 = vpack.c.bf16 %v1132, %v954
        %v1182 = vpack.c.bf16 %v1134, %v956
        %v1183 = vpack.c.bf16 %v1137, %v959
        %v1184 = vpack.c.bf16 %v1139, %v961
        %v1185 = vpack.c.bf16 %v1142, %v964
        %v1186 = vpack.c.bf16 %v1144, %v966
        %v1187 = vpack.c.bf16 %v1147, %v969
        %v1188 = vpack.c.bf16 %v1149, %v971
        %v1189 = vpack.c.bf16 %v1152, %v974
        %v1190 = vpack.c.bf16 %v1154, %v976
        %v1191 = vpack.c.bf16 %v1157, %v979
        %v1192 = vpack.c.bf16 %v1159, %v981
        %1193 = vst [vmem:[%s393] sm:$0xff] %v1161
        %1194 = vst [vmem:[%s393 + $0x8] sm:$0xff] %v1162
        %1195 = vst [vmem:[%s393 + $0x10] sm:$0xff] %v1163
        %1196 = vst [vmem:[%s393 + $0x18] sm:$0xff] %v1164
        %1197 = vst [vmem:[%s393 + $0x20] sm:$0xff] %v1165
        %1198 = vst [vmem:[%s393 + $0x28] sm:$0xff] %v1166
        %1199 = vst [vmem:[%s393 + $0x30] sm:$0xff] %v1167
        %1200 = vst [vmem:[%s393 + $0x38] sm:$0xff] %v1168
        %1201 = vst [vmem:[%s393 + $0x40] sm:$0xff] %v1169
        %1202 = vst [vmem:[%s393 + $0x48] sm:$0xff] %v1170
        %1203 = vst [vmem:[%s393 + $0x50] sm:$0xff] %v1171
        %1204 = vst [vmem:[%s393 + $0x58] sm:$0xff] %v1172
        %1205 = vst [vmem:[%s393 + $0x60] sm:$0xff] %v1173
        %1206 = vst [vmem:[%s393 + $0x68] sm:$0xff] %v1174
        %1207 = vst [vmem:[%s393 + $0x70] sm:$0xff] %v1175
        %1208 = vst [vmem:[%s393 + $0x78] sm:$0xff] %v1176
        %1209 = vst [vmem:[%s393 + $0x80] sm:$0xff] %v1177
        %1210 = vst [vmem:[%s393 + $0x88] sm:$0xff] %v1178
        %1211 = vst [vmem:[%s393 + $0x90] sm:$0xff] %v1179
        %1212 = vst [vmem:[%s393 + $0x98] sm:$0xff] %v1180
        %1213 = vst [vmem:[%s393 + $0xa0] sm:$0xff] %v1181
        %1214 = vst [vmem:[%s393 + $0xa8] sm:$0xff] %v1182
        %1215 = vst [vmem:[%s393 + $0xb0] sm:$0xff] %v1183
        %1216 = vst [vmem:[%s393 + $0xb8] sm:$0xff] %v1184
        %1217 = vst [vmem:[%s393 + $0xc0] sm:$0xff] %v1185
        %1218 = vst [vmem:[%s393 + $0xc8] sm:$0xff] %v1186
        %1219 = vst [vmem:[%s393 + $0xd0] sm:$0xff] %v1187
        %1220 = vst [vmem:[%s393 + $0xd8] sm:$0xff] %v1188
        %1221 = vst [vmem:[%s393 + $0xe0] sm:$0xff] %v1189
        %1222 = vst [vmem:[%s393 + $0xe8] sm:$0xff] %v1190
        %1223 = vst [vmem:[%s393 + $0xf0] sm:$0xff] %v1191
        %1224 = vst [vmem:[%s393 + $0xf8] sm:$0xff] %v1192
        %s1225 = sand.u32 %s125, 1
        %s1226 = sand.u32 %s125, 1
        %s1227 = smul.addr %s1226, 256
        %s1228 = scalar_lea.vmem [#allocation3], %s1227
        // Predicated region
        $region71: #{run_with_weights.3} parent=65 // pred_check
          %p1229 = pneg %p135
        $region72: #{run_with_weights.3} parent=65 // pred_check_branch
          %1231 = sbr.rel (%p1229) target = $region74
        $region73: #{run_with_weights.3} parent=65 // pred_region
          %s1232 = smul.u32 32, %s19
          %s1233 = smul.u32 2, %s20
          %s1234 = smul.addr %s1232, 6
          %s1235 = sadd.s32 %s1233, %s1234
          %s1236 = smul.addr %s1235, 4
          %s1237 = scalar_lea.vmem %s3, %s1236
          // Predicated region
          $region75: #{run_with_weights.3} parent=73 // pred_check
            _
          $region76: #{run_with_weights.3} parent=73 // pred_check_branch
            %1239 = sbr.rel (0) target = $region78
          $region77: #{run_with_weights.3} parent=73 // pred_region
            // Predicated region
            $region79: #{run_with_weights.3} parent=77 // pred_check
              _
            $region80: #{run_with_weights.3} parent=77 // pred_check_branch
              %1241 = sbr.rel (0) target = $region82
            $region81: #{run_with_weights.3} parent=77 // pred_region
              // Predicated region
              $region94: #{run_with_weights.3} parent=81 // pred_check
                _
              $region95: #{run_with_weights.3} parent=81 // pred_check_branch
                %1319 = sbr.rel (0) target = $region97
              $region96: #{run_with_weights.3} parent=81 // pred_region
                loop: start=0, step=1, limit=1
                $region98: #{run_with_weights.3} parent=96 // loop_pre_header
                  _
                $region99: #{run_with_weights.3} parent=96 // loop_header
                  %s1321 = sphi 0, %s1325
                  %p1322 = scmp.ge.s32.totalorder %s1321, 1
                  %s1326 = sphi %s1228, %s1228
                  %s1327 = sphi %s1237, %s1237
                $region100: #{run_with_weights.3} parent=96 // loop_header_branch
                  %1324 = sbr.rel (%p1322) target = $region104
                $region101: #{run_with_weights.3} parent=96 // loop_body
                  %v1328 = vld [vmem:[%s1326] sm:$0xff]
                  %1329 = vst [vmem:[%s1327] sm:$0xff] %v1328
                  %v1330 = vld [vmem:[%s1326 + $0x8] sm:$0xff]
                  %1331 = vst [vmem:[%s1327 + $0x18] sm:$0xff] %v1330
                  %v1332 = vld [vmem:[%s1326 + $0x10] sm:$0xff]
                  %1333 = vst [vmem:[%s1327 + $0x30] sm:$0xff] %v1332
                  %v1334 = vld [vmem:[%s1326 + $0x18] sm:$0xff]
                  %1335 = vst [vmem:[%s1327 + $0x48] sm:$0xff] %v1334
                  %v1336 = vld [vmem:[%s1326 + $0x20] sm:$0xff]
                  %1337 = vst [vmem:[%s1327 + $0x60] sm:$0xff] %v1336
                  %v1338 = vld [vmem:[%s1326 + $0x28] sm:$0xff]
                  %1339 = vst [vmem:[%s1327 + $0x78] sm:$0xff] %v1338
                  %v1340 = vld [vmem:[%s1326 + $0x30] sm:$0xff]
                  %1341 = vst [vmem:[%s1327 + $0x90] sm:$0xff] %v1340
                  %v1342 = vld [vmem:[%s1326 + $0x38] sm:$0xff]
                  %1343 = vst [vmem:[%s1327 + $0xa8] sm:$0xff] %v1342
                  %v1344 = vld [vmem:[%s1326 + $0x40] sm:$0xff]
                  %1345 = vst [vmem:[%s1327 + $0xc0] sm:$0xff] %v1344
                  %v1346 = vld [vmem:[%s1326 + $0x48] sm:$0xff]
                  %1347 = vst [vmem:[%s1327 + $0xd8] sm:$0xff] %v1346
                  %v1348 = vld [vmem:[%s1326 + $0x50] sm:$0xff]
                  %1349 = vst [vmem:[%s1327 + $0xf0] sm:$0xff] %v1348
                  %v1350 = vld [vmem:[%s1326 + $0x58] sm:$0xff]
                  %1351 = vst [vmem:[%s1327 + $0x108] sm:$0xff] %v1350
                  %v1352 = vld [vmem:[%s1326 + $0x60] sm:$0xff]
                  %1353 = vst [vmem:[%s1327 + $0x120] sm:$0xff] %v1352
                  %v1354 = vld [vmem:[%s1326 + $0x68] sm:$0xff]
                  %1355 = vst [vmem:[%s1327 + $0x138] sm:$0xff] %v1354
                  %v1356 = vld [vmem:[%s1326 + $0x70] sm:$0xff]
                  %1357 = vst [vmem:[%s1327 + $0x150] sm:$0xff] %v1356
                  %v1358 = vld [vmem:[%s1326 + $0x78] sm:$0xff]
                  %1359 = vst [vmem:[%s1327 + $0x168] sm:$0xff] %v1358
                  %v1360 = vld [vmem:[%s1326 + $0x80] sm:$0xff]
                  %1361 = vst [vmem:[%s1327 + $0x180] sm:$0xff] %v1360
                  %v1362 = vld [vmem:[%s1326 + $0x88] sm:$0xff]
                  %1363 = vst [vmem:[%s1327 + $0x198] sm:$0xff] %v1362
                  %v1364 = vld [vmem:[%s1326 + $0x90] sm:$0xff]
                  %1365 = vst [vmem:[%s1327 + $0x1b0] sm:$0xff] %v1364
                  %v1366 = vld [vmem:[%s1326 + $0x98] sm:$0xff]
                  %1367 = vst [vmem:[%s1327 + $0x1c8] sm:$0xff] %v1366
                  %v1368 = vld [vmem:[%s1326 + $0xa0] sm:$0xff]
                  %1369 = vst [vmem:[%s1327 + $0x1e0] sm:$0xff] %v1368
                  %v1370 = vld [vmem:[%s1326 + $0xa8] sm:$0xff]
                  %1371 = vst [vmem:[%s1327 + $0x1f8] sm:$0xff] %v1370
                  %v1372 = vld [vmem:[%s1326 + $0xb0] sm:$0xff]
                  %1373 = vst [vmem:[%s1327 + $0x210] sm:$0xff] %v1372
                  %v1374 = vld [vmem:[%s1326 + $0xb8] sm:$0xff]
                  %1375 = vst [vmem:[%s1327 + $0x228] sm:$0xff] %v1374
                  %v1376 = vld [vmem:[%s1326 + $0xc0] sm:$0xff]
                  %1377 = vst [vmem:[%s1327 + $0x240] sm:$0xff] %v1376
                  %v1378 = vld [vmem:[%s1326 + $0xc8] sm:$0xff]
                  %1379 = vst [vmem:[%s1327 + $0x258] sm:$0xff] %v1378
                  %v1380 = vld [vmem:[%s1326 + $0xd0] sm:$0xff]
                  %1381 = vst [vmem:[%s1327 + $0x270] sm:$0xff] %v1380
                  %v1382 = vld [vmem:[%s1326 + $0xd8] sm:$0xff]
                  %1383 = vst [vmem:[%s1327 + $0x288] sm:$0xff] %v1382
                  %v1384 = vld [vmem:[%s1326 + $0xe0] sm:$0xff]
                  %1385 = vst [vmem:[%s1327 + $0x2a0] sm:$0xff] %v1384
                  %v1386 = vld [vmem:[%s1326 + $0xe8] sm:$0xff]
                  %1387 = vst [vmem:[%s1327 + $0x2b8] sm:$0xff] %v1386
                  %v1388 = vld [vmem:[%s1326 + $0xf0] sm:$0xff]
                  %1389 = vst [vmem:[%s1327 + $0x2d0] sm:$0xff] %v1388
                  %v1390 = vld [vmem:[%s1326 + $0xf8] sm:$0xff]
                  %1391 = vst [vmem:[%s1327 + $0x2e8] sm:$0xff] %v1390
                $region102: #{run_with_weights.3} parent=96 // loop_footer
                  %s1325 = sadd.s32 1, %s1321
                $region103: #{run_with_weights.3} parent=96 // loop_footer_branch
                  %1320 = sbr.rel target = $region99
                $region104: #{run_with_weights.3} parent=96 // loop_exit
                  _
              $region97: #{run_with_weights.3} parent=81 // pred_fallthru
                _
              // Predicated region
              $region105: #{run_with_weights.3} parent=81 // pred_check
                _
              $region106: #{run_with_weights.3} parent=81 // pred_check_branch
                %1393 = sbr.rel target = $region108
              $region107: #{run_with_weights.3} parent=81 // pred_region
                _
              $region108: #{run_with_weights.3} parent=81 // pred_fallthru
                _
            $region82: #{run_with_weights.3} parent=77 // pred_fallthru
              _
            // Predicated region
            $region83: #{run_with_weights.3} parent=77 // pred_check
              _
            $region84: #{run_with_weights.3} parent=77 // pred_check_branch
              %1243 = sbr.rel target = $region86
            $region85: #{run_with_weights.3} parent=77 // pred_region
              %s1245 = ssub.s32 256, 1
              loop: start=0, step=1, limit=1
              $region87: #{run_with_weights.3} parent=85 // loop_pre_header
                _
              $region88: #{run_with_weights.3} parent=85 // loop_header
                %s1247 = sphi 0, %s1251
                %p1248 = scmp.ge.s32.totalorder %s1247, 1
                %s1252 = sphi %s1228, %s1228
                %s1253 = sphi %s1237, %s1237
              $region89: #{run_with_weights.3} parent=85 // loop_header_branch
                %1250 = sbr.rel (%p1248) target = $region93
              $region90: #{run_with_weights.3} parent=85 // loop_body
                %v1254 = vld [vmem:[%s1252] sm:%s1245]
                %1255 = vst [vmem:[%s1253] sm:%s1245] %v1254
                %v1256 = vld [vmem:[%s1252 + $0x8] sm:%s1245]
                %1257 = vst [vmem:[%s1253 + $0x18] sm:%s1245] %v1256
                %v1258 = vld [vmem:[%s1252 + $0x10] sm:%s1245]
                %1259 = vst [vmem:[%s1253 + $0x30] sm:%s1245] %v1258
                %v1260 = vld [vmem:[%s1252 + $0x18] sm:%s1245]
                %1261 = vst [vmem:[%s1253 + $0x48] sm:%s1245] %v1260
                %v1262 = vld [vmem:[%s1252 + $0x20] sm:%s1245]
                %1263 = vst [vmem:[%s1253 + $0x60] sm:%s1245] %v1262
                %v1264 = vld [vmem:[%s1252 + $0x28] sm:%s1245]
                %1265 = vst [vmem:[%s1253 + $0x78] sm:%s1245] %v1264
                %v1266 = vld [vmem:[%s1252 + $0x30] sm:%s1245]
                %1267 = vst [vmem:[%s1253 + $0x90] sm:%s1245] %v1266
                %v1268 = vld [vmem:[%s1252 + $0x38] sm:%s1245]
                %1269 = vst [vmem:[%s1253 + $0xa8] sm:%s1245] %v1268
                %v1270 = vld [vmem:[%s1252 + $0x40] sm:%s1245]
                %1271 = vst [vmem:[%s1253 + $0xc0] sm:%s1245] %v1270
                %v1272 = vld [vmem:[%s1252 + $0x48] sm:%s1245]
                %1273 = vst [vmem:[%s1253 + $0xd8] sm:%s1245] %v1272
                %v1274 = vld [vmem:[%s1252 + $0x50] sm:%s1245]
                %1275 = vst [vmem:[%s1253 + $0xf0] sm:%s1245] %v1274
                %v1276 = vld [vmem:[%s1252 + $0x58] sm:%s1245]
                %1277 = vst [vmem:[%s1253 + $0x108] sm:%s1245] %v1276
                %v1278 = vld [vmem:[%s1252 + $0x60] sm:%s1245]
                %1279 = vst [vmem:[%s1253 + $0x120] sm:%s1245] %v1278
                %v1280 = vld [vmem:[%s1252 + $0x68] sm:%s1245]
                %1281 = vst [vmem:[%s1253 + $0x138] sm:%s1245] %v1280
                %v1282 = vld [vmem:[%s1252 + $0x70] sm:%s1245]
                %1283 = vst [vmem:[%s1253 + $0x150] sm:%s1245] %v1282
                %v1284 = vld [vmem:[%s1252 + $0x78] sm:%s1245]
                %1285 = vst [vmem:[%s1253 + $0x168] sm:%s1245] %v1284
                %v1286 = vld [vmem:[%s1252 + $0x80] sm:%s1245]
                %1287 = vst [vmem:[%s1253 + $0x180] sm:%s1245] %v1286
                %v1288 = vld [vmem:[%s1252 + $0x88] sm:%s1245]
                %1289 = vst [vmem:[%s1253 + $0x198] sm:%s1245] %v1288
                %v1290 = vld [vmem:[%s1252 + $0x90] sm:%s1245]
                %1291 = vst [vmem:[%s1253 + $0x1b0] sm:%s1245] %v1290
                %v1292 = vld [vmem:[%s1252 + $0x98] sm:%s1245]
                %1293 = vst [vmem:[%s1253 + $0x1c8] sm:%s1245] %v1292
                %v1294 = vld [vmem:[%s1252 + $0xa0] sm:%s1245]
                %1295 = vst [vmem:[%s1253 + $0x1e0] sm:%s1245] %v1294
                %v1296 = vld [vmem:[%s1252 + $0xa8] sm:%s1245]
                %1297 = vst [vmem:[%s1253 + $0x1f8] sm:%s1245] %v1296
                %v1298 = vld [vmem:[%s1252 + $0xb0] sm:%s1245]
                %1299 = vst [vmem:[%s1253 + $0x210] sm:%s1245] %v1298
                %v1300 = vld [vmem:[%s1252 + $0xb8] sm:%s1245]
                %1301 = vst [vmem:[%s1253 + $0x228] sm:%s1245] %v1300
                %v1302 = vld [vmem:[%s1252 + $0xc0] sm:%s1245]
                %1303 = vst [vmem:[%s1253 + $0x240] sm:%s1245] %v1302
                %v1304 = vld [vmem:[%s1252 + $0xc8] sm:%s1245]
                %1305 = vst [vmem:[%s1253 + $0x258] sm:%s1245] %v1304
                %v1306 = vld [vmem:[%s1252 + $0xd0] sm:%s1245]
                %1307 = vst [vmem:[%s1253 + $0x270] sm:%s1245] %v1306
                %v1308 = vld [vmem:[%s1252 + $0xd8] sm:%s1245]
                %1309 = vst [vmem:[%s1253 + $0x288] sm:%s1245] %v1308
                %v1310 = vld [vmem:[%s1252 + $0xe0] sm:%s1245]
                %1311 = vst [vmem:[%s1253 + $0x2a0] sm:%s1245] %v1310
                %v1312 = vld [vmem:[%s1252 + $0xe8] sm:%s1245]
                %1313 = vst [vmem:[%s1253 + $0x2b8] sm:%s1245] %v1312
                %v1314 = vld [vmem:[%s1252 + $0xf0] sm:%s1245]
                %1315 = vst [vmem:[%s1253 + $0x2d0] sm:%s1245] %v1314
                %v1316 = vld [vmem:[%s1252 + $0xf8] sm:%s1245]
                %1317 = vst [vmem:[%s1253 + $0x2e8] sm:%s1245] %v1316
              $region91: #{run_with_weights.3} parent=85 // loop_footer
                %s1251 = sadd.s32 1, %s1247
              $region92: #{run_with_weights.3} parent=85 // loop_footer_branch
                %1246 = sbr.rel target = $region88
              $region93: #{run_with_weights.3} parent=85 // loop_exit
                _
            $region86: #{run_with_weights.3} parent=77 // pred_fallthru
              _
          $region78: #{run_with_weights.3} parent=73 // pred_fallthru
            _
          %1394 = vnop
        $region74: #{run_with_weights.3} parent=65 // pred_fallthru
          _
      $region66: #{run_with_weights.3} parent=5 // pred_fallthru
        _
      %p1395 = scmp.le.s32.totalorder 2, %s9
      // Predicated region
      $region109: #{run_with_weights.3} parent=5 // pred_check
        %p1396 = pneg %p1395
      $region110: #{run_with_weights.3} parent=5 // pred_check_branch
        %1398 = sbr.rel (%p1396) target = $region112
      $region111: #{run_with_weights.3} parent=5 // pred_region
        %s1399 = ssub.s32 %s9, 2
        // Predicated region
        $region113: #{run_with_weights.3} parent=111 // pred_check
          %p1400 = pneg %p141
        $region114: #{run_with_weights.3} parent=111 // pred_check_branch
          %1402 = sbr.rel (%p1400) target = $region116
        $region115: #{run_with_weights.3} parent=111 // pred_region
          %s1403 = sand.u32 %s126, 1
          %s1404 = sand.u32 %s126, 1
          %s1405 = smul.addr %s1404, 256
          %s1406 = scalar_lea.vmem [#allocation3], %s1405
        $region116: #{run_with_weights.3} parent=111 // pred_fallthru
          _
      $region112: #{run_with_weights.3} parent=5 // pred_fallthru
        _
    $region6: #{run_with_weights.3} parent=1 // loop_footer
      %s13 = sadd.s32 1, %s9
    $region7: #{run_with_weights.3} parent=1 // loop_footer_branch
      %8 = sbr.rel target = $region3
    $region8: #{run_with_weights.3} parent=1 // loop_exit
      _

// kernel: run_with_weights.5
$region0: #{run_with_weights.5}
  #allocation0 [shape = 'u32[]', space=smem, size = 0x4, offset = 0x4, fixed_abs, tag = 'smem constant byte address 0x4 - core index']
  #allocation1 [shape = 'u32[72,128]{1,0:T(1,128)}', space=vmem, size = 0x9000, scoped, tag = 'internal scratch']
  %s0 = inlined_call_operand.vmem [shape: bf16[512,256], index: 0, kind: input, shape index: {}]
  %s1 = inlined_call_operand.vmem [shape: bf16[256,256], index: 1, kind: input, shape index: {}]
  %s2 = inlined_call_operand.vmem [shape: f32[1,256], index: 2, kind: input, shape index: {}]
  %s3 = inlined_call_operand.hbm [shape: f32[512,256], index: 3, kind: output, shape index: {}]
  %s4 = sld [smem:[#allocation0]]
  $region45: #{run_with_weights.5} parent=0
    _
  %s6 = ssub.s32 1, %s4
  %s7 = scalar_select 0, %s6, %s4
  $region1: #{run_with_weights.5} parent=0
    #allocation2 [shape = 'u8[524288]{0}', space=vmem, size = 0x80000, scoped, tag = 'output window, operand 0']
    #allocation3 [shape = 's32[2]{0}', space=sflag, size = 0x8, scoped, tag = 'scoped memory for run_with_weights.5']
    %8 = vsyncpa [#allocation3], 0
    %s9 = scalar_lea.sflag [#allocation3], 1
    %10 = vsyncpa %s9, 0
    loop: start=0, step=1, limit=4
    $region2: #{run_with_weights.5} parent=1 // loop_pre_header
      _
    $region3: #{run_with_weights.5} parent=1 // loop_header
      %s12 = sphi 0, %s16
      %p13 = scmp.ge.s32.totalorder %s12, 4
      %s19 = sphi 0, %s38
      %s20 = sphi 0, %s34
      %s21 = sphi 0, %s30
      %s22 = sphi 0, %s19
      %s23 = sphi 0, %s20
      %s24 = sphi 0, %s21
      %s25 = sphi 0, %s22
      %s26 = sphi 0, %s23
      %s27 = sphi 0, %s24
      %s43 = sphi 0, %s45
      %s46 = sphi 0, %s43
      %s47 = sphi 0, %s46
      %s63 = sphi 0, %s47
      %s71 = sphi 0, %s73
      %s74 = sphi 0, %s71
      %s75 = sphi 0, %s74
      %s91 = sphi 0, %s75
      %s97 = sphi 0, %s99
      %s100 = sphi 0, %s97
      %s101 = sphi 0, %s100
      %s117 = sphi 0, %s101
      %s125 = sphi 0, %s127
      %s128 = sphi 0, %s125
      %s129 = sphi 0, %s128
      %s145 = sphi 0, %s129
    $region4: #{run_with_weights.5} parent=1 // loop_header_branch
      %15 = sbr.rel (%p13) target = $region8
    $region5: #{run_with_weights.5} parent=1 // loop_body
      %s17 = ssub.s32 %s12, 1
      %s18 = ssub.s32 %s12, 2
      %s28 = sadd.s32 1, %s21
      %p29 = scmp.ge.s32.totalorder %s28, 1
      %s30 = scalar_select %p29, 0, %s28
      %s31 = sadd.s32 1, %s20
      %s32 = scalar_select %p29, %s31, %s20
      %p33 = scmp.ge.s32.totalorder %s32, 1
      %s34 = scalar_select %p33, 0, %s32
      %s35 = sadd.s32 1, %s19
      %s36 = scalar_select %p33, %s35, %s19
      %p37 = scmp.ge.s32.totalorder %s36, 2
      %s38 = scalar_select %p37, 0, %s36
      %s39 = ssub.s32 %s19, %s38
      %s40 = ssub.s32 %s21, %s30
      %s41 = sor.u32 %s39, %s40
      %p42 = scmp.eq.s32.totalorder %s41, 0
      %s44 = sadd.s32 %s43, 1
      %s45 = scalar_select %p42, %s43, %s44
      %p48 = pneg %p42
      %p49 = scmp.eq.s32.totalorder %s12, 1
      %p50 = por %p48, %p49
      %p51 = scmp.ne.s32.totalorder %s43, %s46
      %p52 = scmp.eq.s32.totalorder %s12, 0
      %p53 = por %p51, %p52
      %p54 = scmp.ne.s32.totalorder %s43, %s46
      %p55 = scmp.eq.s32.totalorder %s17, 1
      %p56 = por %p54, %p55
      %p57 = scmp.ne.s32.totalorder %s46, %s47
      %p58 = scmp.eq.s32.totalorder %s17, 0
      %p59 = por %p57, %p58
      %p60 = scmp.ne.s32.totalorder %s46, %s47
      %p61 = scmp.eq.s32.totalorder %s18, 1
      %p62 = por %p60, %p61
      %p64 = scmp.ne.s32.totalorder %s47, %s63
      %p65 = scmp.eq.s32.totalorder %s18, 0
      %p66 = por %p64, %p65
      %s67 = ssub.s32 %s21, %s30
      %s68 = ssub.s32 %s20, %s34
      %s69 = sor.u32 %s67, %s68
      %p70 = scmp.eq.s32.totalorder %s69, 0
      %s72 = sadd.s32 %s71, 1
      %s73 = scalar_select %p70, %s71, %s72
      %p76 = pneg %p70
      %p77 = scmp.eq.s32.totalorder %s12, 1
      %p78 = por %p76, %p77
      %p79 = scmp.ne.s32.totalorder %s71, %s74
      %p80 = scmp.eq.s32.totalorder %s12, 0
      %p81 = por %p79, %p80
      %p82 = scmp.ne.s32.totalorder %s71, %s74
      %p83 = scmp.eq.s32.totalorder %s17, 1
      %p84 = por %p82, %p83
      %p85 = scmp.ne.s32.totalorder %s74, %s75
      %p86 = scmp.eq.s32.totalorder %s17, 0
      %p87 = por %p85, %p86
      %p88 = scmp.ne.s32.totalorder %s74, %s75
      %p89 = scmp.eq.s32.totalorder %s18, 1
      %p90 = por %p88, %p89
      %p92 = scmp.ne.s32.totalorder %s75, %s91
      %p93 = scmp.eq.s32.totalorder %s18, 0
      %p94 = por %p92, %p93
      %s95 = ssub.s32 %s20, %s34
      %p96 = scmp.eq.s32.totalorder %s95, 0
      %s98 = sadd.s32 %s97, 1
      %s99 = scalar_select %p96, %s97, %s98
      %p102 = pneg %p96
      %p103 = scmp.eq.s32.totalorder %s12, 1
      %p104 = por %p102, %p103
      %p105 = scmp.ne.s32.totalorder %s97, %s100
      %p106 = scmp.eq.s32.totalorder %s12, 0
      %p107 = por %p105, %p106
      %p108 = scmp.ne.s32.totalorder %s97, %s100
      %p109 = scmp.eq.s32.totalorder %s17, 1
      %p110 = por %p108, %p109
      %p111 = scmp.ne.s32.totalorder %s100, %s101
      %p112 = scmp.eq.s32.totalorder %s17, 0
      %p113 = por %p111, %p112
      %p114 = scmp.ne.s32.totalorder %s100, %s101
      %p115 = scmp.eq.s32.totalorder %s18, 1
      %p116 = por %p114, %p115
      %p118 = scmp.ne.s32.totalorder %s101, %s117
      %p119 = scmp.eq.s32.totalorder %s18, 0
      %p120 = por %p118, %p119
      %s121 = ssub.s32 %s19, %s38
      %s122 = ssub.s32 %s20, %s34
      %s123 = sor.u32 %s121, %s122
      %p124 = scmp.eq.s32.totalorder %s123, 0
      %s126 = sadd.s32 %s125, 1
      %s127 = scalar_select %p124, %s125, %s126
      %p130 = pneg %p124
      %p131 = scmp.eq.s32.totalorder %s12, 1
      %p132 = por %p130, %p131
      %p133 = scmp.ne.s32.totalorder %s125, %s128
      %p134 = scmp.eq.s32.totalorder %s12, 0
      %p135 = por %p133, %p134
      %p136 = scmp.ne.s32.totalorder %s125, %s128
      %p137 = scmp.eq.s32.totalorder %s17, 1
      %p138 = por %p136, %p137
      %p139 = scmp.ne.s32.totalorder %s128, %s129
      %p140 = scmp.eq.s32.totalorder %s17, 0
      %p141 = por %p139, %p140
      %p142 = scmp.ne.s32.totalorder %s128, %s129
      %p143 = scmp.eq.s32.totalorder %s18, 1
      %p144 = por %p142, %p143
      %p146 = scmp.ne.s32.totalorder %s129, %s145
      %p147 = scmp.eq.s32.totalorder %s18, 0
      %p148 = por %p146, %p147
      %p149 = scmp.le.s32.totalorder 1, %s12
      %p150 = scmp.lt.s32.totalorder %s12, 3
      %p151 = pnand %p149, %p150
      %p152 = pneg %p151
      // Predicated region
      $region9: #{run_with_weights.5} parent=5 // pred_check
        _
      $region10: #{run_with_weights.5} parent=5 // pred_check_branch
        %154 = sbr.rel (%p151) target = $region12
      $region11: #{run_with_weights.5} parent=5 // pred_region
        %s155 = ssub.s32 %s12, 1
        // Predicated region
        $region13: #{run_with_weights.5} parent=11 // pred_check
          %p156 = pneg %p87
        $region14: #{run_with_weights.5} parent=11 // pred_check_branch
          %158 = sbr.rel (%p156) target = $region16
        $region15: #{run_with_weights.5} parent=11 // pred_region
          %s159 = smul.u32 32, %s24
          %s160 = smul.u32 2, %s23
          %p161 = scmp.lt.s32.totalorder %s159, 31
          %s162 = scalar_select %p161, %s159, 31
          %p163 = scmp.lt.s32.totalorder %s160, 1
          %s164 = scalar_select %p163, %s160, 1
          %s165 = smul.addr %s162, 2
          %s166 = sadd.s32 %s164, %s165
          %s167 = smul.addr %s166, 4
          %s168 = scalar_lea.vmem %s1, %s167
          %s169 = smul.u32 32, %s24
          %s170 = smul.u32 2, %s23
        $region16: #{run_with_weights.5} parent=11 // pred_fallthru
          _
        // Predicated region
        $region17: #{run_with_weights.5} parent=11 // pred_check
          %p171 = pneg %p113
        $region18: #{run_with_weights.5} parent=11 // pred_check_branch
          %173 = sbr.rel (%p171) target = $region20
        $region19: #{run_with_weights.5} parent=11 // pred_region
          %s174 = smul.u32 2, %s23
          %p175 = scmp.lt.s32.totalorder %s174, 1
          %s176 = scalar_select %p175, %s174, 1
          %s177 = scalar_lea.vmem %s2, %s176
          %s178 = smul.u32 2, %s23
        $region20: #{run_with_weights.5} parent=11 // pred_fallthru
          _
      $region12: #{run_with_weights.5} parent=5 // pred_fallthru
        _
      %p179 = scmp.lt.s32.totalorder %s12, 2
      // Predicated region
      $region21: #{run_with_weights.5} parent=5 // pred_check
        %p180 = pneg %p179
      $region22: #{run_with_weights.5} parent=5 // pred_check_branch
        %182 = sbr.rel (%p180) target = $region24
      $region23: #{run_with_weights.5} parent=5 // pred_region
        // Predicated region
        $region25: #{run_with_weights.5} parent=23 // pred_check
          %p183 = pneg %p53
        $region26: #{run_with_weights.5} parent=23 // pred_check_branch
          %185 = sbr.rel (%p183) target = $region28
        $region27: #{run_with_weights.5} parent=23 // pred_region
          %s186 = smul.u32 32, %s19
          %s187 = smul.u32 2, %s21
          %p188 = scmp.lt.s32.totalorder %s186, 63
          %s189 = scalar_select %p188, %s186, 63
          %p190 = scmp.lt.s32.totalorder %s187, 1
          %s191 = scalar_select %p190, %s187, 1
          %s192 = smul.addr %s189, 2
          %s193 = sadd.s32 %s191, %s192
          %s194 = smul.addr %s193, 4
          %s195 = scalar_lea.vmem %s0, %s194
          %s196 = smul.u32 32, %s19
          %s197 = smul.u32 2, %s21
        $region28: #{run_with_weights.5} parent=23 // pred_fallthru
          _
      $region24: #{run_with_weights.5} parent=5 // pred_fallthru
        _
      %p198 = scmp.le.s32.totalorder 1, %s12
      %p199 = scmp.lt.s32.totalorder %s12, 3
      %p200 = pnand %p198, %p199
      %p201 = pneg %p200
      // Predicated region
      $region29: #{run_with_weights.5} parent=5 // pred_check
        _
      $region30: #{run_with_weights.5} parent=5 // pred_check_branch
        %203 = sbr.rel (%p200) target = $region32
      $region31: #{run_with_weights.5} parent=5 // pred_region
        %s204 = ssub.s32 %s12, 1
        %s205 = smul.u32 32, %s22
        %s206 = smul.u32 2, %s24
        %p207 = scmp.lt.s32.totalorder %s205, 63
        %s208 = scalar_select %p207, %s205, 63
        %p209 = scmp.lt.s32.totalorder %s206, 1
        %s210 = scalar_select %p209, %s206, 1
        %s211 = smul.addr %s208, 2
        %s212 = sadd.s32 %s210, %s211
        %s213 = smul.addr %s212, 4
        %s214 = scalar_lea.vmem %s0, %s213
        %p215 = pneg %p59
        %p216 = pneg %p56
        %s217 = smul.u32 32, %s24
        %s218 = smul.u32 2, %s23
        %p219 = scmp.lt.s32.totalorder %s217, 31
        %s220 = scalar_select %p219, %s217, 31
        %p221 = scmp.lt.s32.totalorder %s218, 1
        %s222 = scalar_select %p221, %s218, 1
        %s223 = smul.addr %s220, 2
        %s224 = sadd.s32 %s222, %s223
        %s225 = smul.addr %s224, 4
        %s226 = scalar_lea.vmem %s1, %s225
        %p227 = pneg %p87
        %p228 = pneg %p84
        %s229 = smul.u32 2, %s23
        %p230 = scmp.lt.s32.totalorder %s229, 1
        %s231 = scalar_select %p230, %s229, 1
        %s232 = scalar_lea.vmem %s2, %s231
        %p233 = pneg %p113
        %p234 = pneg %p110
        %p235 = pneg %p141
        %p236 = pneg %p138
        %s237 = sand.u32 %s128, 1
        %s238 = scalar_lea.sflag [#allocation3], %s237
        %s239 = sand.u32 %s128, 1
        %s240 = smul.addr %s239, 512
        %s241 = scalar_lea.vmem [#allocation2], %s240
        %s242 = smul.u32 32, %s22
        %s243 = smul.u32 2, %s24
        %p244 = scmp.lt.s32.totalorder %s242, 63
        %s245 = scalar_select %p244, %s242, 63
        %p246 = scmp.lt.s32.totalorder %s243, 1
        %s247 = scalar_select %p246, %s243, 1
        %s248 = smul.addr %s245, 2
        %s249 = sadd.s32 %s247, %s248
        %s250 = smul.addr %s249, 4
        %s251 = scalar_lea.vmem %s0, %s250
        %s252 = smul.u32 32, %s22
        %s253 = smul.u32 2, %s24
        %s254 = smul.u32 32, %s24
        %s255 = smul.u32 2, %s23
        %p256 = scmp.lt.s32.totalorder %s254, 31
        %s257 = scalar_select %p256, %s254, 31
        %p258 = scmp.lt.s32.totalorder %s255, 1
        %s259 = scalar_select %p258, %s255, 1
        %s260 = smul.addr %s257, 2
        %s261 = sadd.s32 %s259, %s260
        %s262 = smul.addr %s261, 4
        %s263 = scalar_lea.vmem %s1, %s262
        %s264 = smul.u32 32, %s24
        %s265 = smul.u32 2, %s23
        %s266 = smul.u32 2, %s23
        %p267 = scmp.lt.s32.totalorder %s266, 1
        %s268 = scalar_select %p267, %s266, 1
        %s269 = scalar_lea.vmem %s2, %s268
        %s270 = smul.u32 2, %s23
        %s271 = smul.u32 32, %s22
        %s272 = smul.u32 2, %s23
        %v273 = vld [vmem:[%s251] sm:$0xff]
        %v274 = vld [vmem:[%s251 + $0x8] sm:$0xff]
        %v275 = vld [vmem:[%s251 + $0x10] sm:$0xff]
        %v276 = vld [vmem:[%s251 + $0x18] sm:$0xff]
        %v277 = vld [vmem:[%s251 + $0x20] sm:$0xff]
        %v278 = vld [vmem:[%s251 + $0x28] sm:$0xff]
        %v279 = vld [vmem:[%s251 + $0x30] sm:$0xff]
        %v280 = vld [vmem:[%s251 + $0x38] sm:$0xff]
        %v281 = vld [vmem:[%s251 + $0x40] sm:$0xff]
        %v282 = vld [vmem:[%s251 + $0x48] sm:$0xff]
        %v283 = vld [vmem:[%s251 + $0x50] sm:$0xff]
        %v284 = vld [vmem:[%s251 + $0x58] sm:$0xff]
        %v285 = vld [vmem:[%s251 + $0x60] sm:$0xff]
        %v286 = vld [vmem:[%s251 + $0x68] sm:$0xff]
        %v287 = vld [vmem:[%s251 + $0x70] sm:$0xff]
        %v288 = vld [vmem:[%s251 + $0x78] sm:$0xff]
        %v289 = vld [vmem:[%s251 + $0x80] sm:$0xff]
        %v290 = vld [vmem:[%s251 + $0x88] sm:$0xff]
        %v291 = vld [vmem:[%s251 + $0x90] sm:$0xff]
        %v292 = vld [vmem:[%s251 + $0x98] sm:$0xff]
        %v293 = vld [vmem:[%s251 + $0xa0] sm:$0xff]
        %v294 = vld [vmem:[%s251 + $0xa8] sm:$0xff]
        %v295 = vld [vmem:[%s251 + $0xb0] sm:$0xff]
        %v296 = vld [vmem:[%s251 + $0xb8] sm:$0xff]
        %v297 = vld [vmem:[%s251 + $0xc0] sm:$0xff]
        %v298 = vld [vmem:[%s251 + $0xc8] sm:$0xff]
        %v299 = vld [vmem:[%s251 + $0xd0] sm:$0xff]
        %v300 = vld [vmem:[%s251 + $0xd8] sm:$0xff]
        %v301 = vld [vmem:[%s251 + $0xe0] sm:$0xff]
        %v302 = vld [vmem:[%s251 + $0xe8] sm:$0xff]
        %v303 = vld [vmem:[%s251 + $0xf0] sm:$0xff]
        %v304 = vld [vmem:[%s251 + $0xf8] sm:$0xff]
        %v305 = vld [vmem:[%s263] sm:$0xff]
        %v306 = vld [vmem:[%s263 + $0x8] sm:$0xff]
        %v307 = vld [vmem:[%s263 + $0x10] sm:$0xff]
        %v308 = vld [vmem:[%s263 + $0x18] sm:$0xff]
        %v309 = vld [vmem:[%s263 + $0x20] sm:$0xff]
        %v310 = vld [vmem:[%s263 + $0x28] sm:$0xff]
        %v311 = vld [vmem:[%s263 + $0x30] sm:$0xff]
        %v312 = vld [vmem:[%s263 + $0x38] sm:$0xff]
        %v313 = vld [vmem:[%s263 + $0x40] sm:$0xff]
        %v314 = vld [vmem:[%s263 + $0x48] sm:$0xff]
        %v315 = vld [vmem:[%s263 + $0x50] sm:$0xff]
        %v316 = vld [vmem:[%s263 + $0x58] sm:$0xff]
        %v317 = vld [vmem:[%s263 + $0x60] sm:$0xff]
        %v318 = vld [vmem:[%s263 + $0x68] sm:$0xff]
        %v319 = vld [vmem:[%s263 + $0x70] sm:$0xff]
        %v320 = vld [vmem:[%s263 + $0x78] sm:$0xff]
        %v321 = vld [vmem:[%s263 + $0x80] sm:$0xff]
        %v322 = vld [vmem:[%s263 + $0x88] sm:$0xff]
        %v323 = vld [vmem:[%s263 + $0x90] sm:$0xff]
        %v324 = vld [vmem:[%s263 + $0x98] sm:$0xff]
        %v325 = vld [vmem:[%s263 + $0xa0] sm:$0xff]
        %v326 = vld [vmem:[%s263 + $0xa8] sm:$0xff]
        %v327 = vld [vmem:[%s263 + $0xb0] sm:$0xff]
        %v328 = vld [vmem:[%s263 + $0xb8] sm:$0xff]
        %v329 = vld [vmem:[%s263 + $0xc0] sm:$0xff]
        %v330 = vld [vmem:[%s263 + $0xc8] sm:$0xff]
        %v331 = vld [vmem:[%s263 + $0xd0] sm:$0xff]
        %v332 = vld [vmem:[%s263 + $0xd8] sm:$0xff]
        %v333 = vld [vmem:[%s263 + $0xe0] sm:$0xff]
        %v334 = vld [vmem:[%s263 + $0xe8] sm:$0xff]
        %v335 = vld [vmem:[%s263 + $0xf0] sm:$0xff]
        %v336 = vld [vmem:[%s263 + $0xf8] sm:$0xff]
        %v337 = vld [vmem:[%s269] sm:$0x3]
        %v339 = vperm.slane %v337, 0
        %v340 = vperm.slane %v337, 1
        %v375 = vunpack.c.l.b16 %v273
        %v376 = vunpack.c.h.b16 %v273
        %v377 = vunpack.c.l.b16 %v274
        %v378 = vunpack.c.h.b16 %v274
        %v379 = vunpack.c.l.b16 %v275
        %v380 = vunpack.c.h.b16 %v275
        %v381 = vunpack.c.l.b16 %v276
        %v382 = vunpack.c.h.b16 %v276
        %v383 = vunpack.c.l.b16 %v277
        %v384 = vunpack.c.h.b16 %v277
        %v385 = vunpack.c.l.b16 %v278
        %v386 = vunpack.c.h.b16 %v278
        %v387 = vunpack.c.l.b16 %v279
        %v388 = vunpack.c.h.b16 %v279
        %v389 = vunpack.c.l.b16 %v280
        %v390 = vunpack.c.h.b16 %v280
        %v391 = vunpack.c.l.b16 %v281
        %v392 = vunpack.c.h.b16 %v281
        %v393 = vunpack.c.l.b16 %v282
        %v394 = vunpack.c.h.b16 %v282
        %v395 = vunpack.c.l.b16 %v283
        %v396 = vunpack.c.h.b16 %v283
        %v397 = vunpack.c.l.b16 %v284
        %v398 = vunpack.c.h.b16 %v284
        %v399 = vunpack.c.l.b16 %v285
        %v400 = vunpack.c.h.b16 %v285
        %v401 = vunpack.c.l.b16 %v286
        %v402 = vunpack.c.h.b16 %v286
        %v403 = vunpack.c.l.b16 %v287
        %v404 = vunpack.c.h.b16 %v287
        %v405 = vunpack.c.l.b16 %v288
        %v406 = vunpack.c.h.b16 %v288
        %v407 = vunpack.c.l.b16 %v289
        %v408 = vunpack.c.h.b16 %v289
        %v409 = vunpack.c.l.b16 %v290
        %v410 = vunpack.c.h.b16 %v290
        %v411 = vunpack.c.l.b16 %v291
        %v412 = vunpack.c.h.b16 %v291
        %v413 = vunpack.c.l.b16 %v292
        %v414 = vunpack.c.h.b16 %v292
        %v415 = vunpack.c.l.b16 %v293
        %v416 = vunpack.c.h.b16 %v293
        %v417 = vunpack.c.l.b16 %v294
        %v418 = vunpack.c.h.b16 %v294
        %v419 = vunpack.c.l.b16 %v295
        %v420 = vunpack.c.h.b16 %v295
        %v421 = vunpack.c.l.b16 %v296
        %v422 = vunpack.c.h.b16 %v296
        %v423 = vunpack.c.l.b16 %v297
        %v424 = vunpack.c.h.b16 %v297
        %v425 = vunpack.c.l.b16 %v298
        %v426 = vunpack.c.h.b16 %v298
        %v427 = vunpack.c.l.b16 %v299
        %v428 = vunpack.c.h.b16 %v299
        %v429 = vunpack.c.l.b16 %v300
        %v430 = vunpack.c.h.b16 %v300
        %v431 = vunpack.c.l.b16 %v301
        %v432 = vunpack.c.h.b16 %v301
        %v433 = vunpack.c.l.b16 %v302
        %v434 = vunpack.c.h.b16 %v302
        %v435 = vunpack.c.l.b16 %v303
        %v436 = vunpack.c.h.b16 %v303
        %v437 = vunpack.c.l.b16 %v304
        %v438 = vunpack.c.h.b16 %v304
        %v439 = vpack.c.b16 %v377, %v375
        %v440 = vpack.c.b16 %v378, %v376
        %v441 = vpack.c.b16 %v381, %v379
        %v442 = vpack.c.b16 %v382, %v380
        %v443 = vpack.c.b16 %v385, %v383
        %v444 = vpack.c.b16 %v386, %v384
        %v445 = vpack.c.b16 %v389, %v387
        %v446 = vpack.c.b16 %v390, %v388
        %v447 = vpack.c.b16 %v393, %v391
        %v448 = vpack.c.b16 %v394, %v392
        %v449 = vpack.c.b16 %v397, %v395
        %v450 = vpack.c.b16 %v398, %v396
        %v451 = vpack.c.b16 %v401, %v399
        %v452 = vpack.c.b16 %v402, %v400
        %v453 = vpack.c.b16 %v405, %v403
        %v454 = vpack.c.b16 %v406, %v404
        %v455 = vpack.c.b16 %v409, %v407
        %v456 = vpack.c.b16 %v410, %v408
        %v457 = vpack.c.b16 %v413, %v411
        %v458 = vpack.c.b16 %v414, %v412
        %v459 = vpack.c.b16 %v417, %v415
        %v460 = vpack.c.b16 %v418, %v416
        %v461 = vpack.c.b16 %v421, %v419
        %v462 = vpack.c.b16 %v422, %v420
        %v463 = vpack.c.b16 %v425, %v423
        %v464 = vpack.c.b16 %v426, %v424
        %v465 = vpack.c.b16 %v429, %v427
        %v466 = vpack.c.b16 %v430, %v428
        %v467 = vpack.c.b16 %v433, %v431
        %v468 = vpack.c.b16 %v434, %v432
        %v469 = vpack.c.b16 %v437, %v435
        %v470 = vpack.c.b16 %v438, %v436
        %v535 = vunpack.c.l.b16 %v305
        %v536 = vunpack.c.h.b16 %v305
        %v537 = vunpack.c.l.b16 %v306
        %v538 = vunpack.c.h.b16 %v306
        %v539 = vunpack.c.l.b16 %v307
        %v540 = vunpack.c.h.b16 %v307
        %v541 = vunpack.c.l.b16 %v308
        %v542 = vunpack.c.h.b16 %v308
        %v543 = vunpack.c.l.b16 %v309
        %v544 = vunpack.c.h.b16 %v309
        %v545 = vunpack.c.l.b16 %v310
        %v546 = vunpack.c.h.b16 %v310
        %v547 = vunpack.c.l.b16 %v311
        %v548 = vunpack.c.h.b16 %v311
        %v549 = vunpack.c.l.b16 %v312
        %v550 = vunpack.c.h.b16 %v312
        %v551 = vunpack.c.l.b16 %v313
        %v552 = vunpack.c.h.b16 %v313
        %v553 = vunpack.c.l.b16 %v314
        %v554 = vunpack.c.h.b16 %v314
        %v555 = vunpack.c.l.b16 %v315
        %v556 = vunpack.c.h.b16 %v315
        %v557 = vunpack.c.l.b16 %v316
        %v558 = vunpack.c.h.b16 %v316
        %v559 = vunpack.c.l.b16 %v317
        %v560 = vunpack.c.h.b16 %v317
        %v561 = vunpack.c.l.b16 %v318
        %v562 = vunpack.c.h.b16 %v318
        %v563 = vunpack.c.l.b16 %v319
        %v564 = vunpack.c.h.b16 %v319
        %v565 = vunpack.c.l.b16 %v320
        %v566 = vunpack.c.h.b16 %v320
        %v567 = vunpack.c.l.b16 %v321
        %v568 = vunpack.c.h.b16 %v321
        %v569 = vunpack.c.l.b16 %v322
        %v570 = vunpack.c.h.b16 %v322
        %v571 = vunpack.c.l.b16 %v323
        %v572 = vunpack.c.h.b16 %v323
        %v573 = vunpack.c.l.b16 %v324
        %v574 = vunpack.c.h.b16 %v324
        %v575 = vunpack.c.l.b16 %v325
        %v576 = vunpack.c.h.b16 %v325
        %v577 = vunpack.c.l.b16 %v326
        %v578 = vunpack.c.h.b16 %v326
        %v579 = vunpack.c.l.b16 %v327
        %v580 = vunpack.c.h.b16 %v327
        %v581 = vunpack.c.l.b16 %v328
        %v582 = vunpack.c.h.b16 %v328
        %v583 = vunpack.c.l.b16 %v329
        %v584 = vunpack.c.h.b16 %v329
        %v585 = vunpack.c.l.b16 %v330
        %v586 = vunpack.c.h.b16 %v330
        %v587 = vunpack.c.l.b16 %v331
        %v588 = vunpack.c.h.b16 %v331
        %v589 = vunpack.c.l.b16 %v332
        %v590 = vunpack.c.h.b16 %v332
        %v591 = vunpack.c.l.b16 %v333
        %v592 = vunpack.c.h.b16 %v333
        %v593 = vunpack.c.l.b16 %v334
        %v594 = vunpack.c.h.b16 %v334
        %v595 = vunpack.c.l.b16 %v335
        %v596 = vunpack.c.h.b16 %v335
        %v597 = vunpack.c.l.b16 %v336
        %v598 = vunpack.c.h.b16 %v336
        %v599 = vpack.c.b16 %v537, %v535
        %v600 = vpack.c.b16 %v538, %v536
        %v601 = vpack.c.b16 %v541, %v539
        %v602 = vpack.c.b16 %v542, %v540
        %v603 = vpack.c.b16 %v545, %v543
        %v604 = vpack.c.b16 %v546, %v544
        %v605 = vpack.c.b16 %v549, %v547
        %v606 = vpack.c.b16 %v550, %v548
        %v607 = vpack.c.b16 %v553, %v551
        %v608 = vpack.c.b16 %v554, %v552
        %v609 = vpack.c.b16 %v557, %v555
        %v610 = vpack.c.b16 %v558, %v556
        %v611 = vpack.c.b16 %v561, %v559
        %v612 = vpack.c.b16 %v562, %v560
        %v613 = vpack.c.b16 %v565, %v563
        %v614 = vpack.c.b16 %v566, %v564
        %v615 = vpack.c.b16 %v569, %v567
        %v616 = vpack.c.b16 %v570, %v568
        %v617 = vpack.c.b16 %v573, %v571
        %v618 = vpack.c.b16 %v574, %v572
        %v619 = vpack.c.b16 %v577, %v575
        %v620 = vpack.c.b16 %v578, %v576
        %v621 = vpack.c.b16 %v581, %v579
        %v622 = vpack.c.b16 %v582, %v580
        %v623 = vpack.c.b16 %v585, %v583
        %v624 = vpack.c.b16 %v586, %v584
        %v625 = vpack.c.b16 %v589, %v587
        %v626 = vpack.c.b16 %v590, %v588
        %v627 = vpack.c.b16 %v593, %v591
        %v628 = vpack.c.b16 %v594, %v592
        %v629 = vpack.c.b16 %v597, %v595
        %v630 = vpack.c.b16 %v598, %v596
        %663 = vmatpush.bf16.msra.mxu0 %v613
        %664 = vmatpush.bf16.msra.mxu0 %v611
        %665 = vmatpush.bf16.msra.mxu0 %v609
        %666 = vmatpush.bf16.msra.mxu0 %v607
        %667 = vmatpush.bf16.msra.mxu0 %v605
        %668 = vmatpush.bf16.msra.mxu0 %v603
        %669 = vmatpush.bf16.msra.mxu0 %v601
        %670 = vmatpush.bf16.msra.mxu0 %v599
        %671 = vmatmul.bf16.gmra.mxu0 %v439
        %v672 = vpop.f32.mrf.mxu0
        %v673 = vadd.f32 %v339, %v672
        %v674 = vpop.f32.mrf.mxu0
        %v675 = vadd.f32 %v339, %v674
        %676 = vmatmul.bf16.gmra.mxu0 %v441
        %v677 = vpop.f32.mrf.mxu0
        %v678 = vadd.f32 %v339, %v677
        %v679 = vpop.f32.mrf.mxu0
        %v680 = vadd.f32 %v339, %v679
        %681 = vmatmul.bf16.gmra.mxu0 %v443
        %v682 = vpop.f32.mrf.mxu0
        %v683 = vadd.f32 %v339, %v682
        %v684 = vpop.f32.mrf.mxu0
        %v685 = vadd.f32 %v339, %v684
        %686 = vmatmul.bf16.gmra.mxu0 %v445
        %v687 = vpop.f32.mrf.mxu0
        %v688 = vadd.f32 %v339, %v687
        %v689 = vpop.f32.mrf.mxu0
        %v690 = vadd.f32 %v339, %v689
        %691 = vmatmul.bf16.gmra.mxu0 %v447
        %v692 = vpop.f32.mrf.mxu0
        %v693 = vadd.f32 %v339, %v692
        %v694 = vpop.f32.mrf.mxu0
        %v695 = vadd.f32 %v339, %v694
        %696 = vmatmul.bf16.gmra.mxu0 %v449
        %v697 = vpop.f32.mrf.mxu0
        %v698 = vadd.f32 %v339, %v697
        %v699 = vpop.f32.mrf.mxu0
        %v700 = vadd.f32 %v339, %v699
        %701 = vmatmul.bf16.gmra.mxu0 %v451
        %v702 = vpop.f32.mrf.mxu0
        %v703 = vadd.f32 %v339, %v702
        %v704 = vpop.f32.mrf.mxu0
        %v705 = vadd.f32 %v339, %v704
        %706 = vmatmul.bf16.gmra.mxu0 %v453
        %v707 = vpop.f32.mrf.mxu0
        %v708 = vadd.f32 %v339, %v707
        %v709 = vpop.f32.mrf.mxu0
        %v710 = vadd.f32 %v339, %v709
        %711 = vmatmul.bf16.gmra.mxu0 %v455
        %v712 = vpop.f32.mrf.mxu0
        %v713 = vadd.f32 %v339, %v712
        %v714 = vpop.f32.mrf.mxu0
        %v715 = vadd.f32 %v339, %v714
        %716 = vmatmul.bf16.gmra.mxu0 %v457
        %v717 = vpop.f32.mrf.mxu0
        %v718 = vadd.f32 %v339, %v717
        %v719 = vpop.f32.mrf.mxu0
        %v720 = vadd.f32 %v339, %v719
        %721 = vmatmul.bf16.gmra.mxu0 %v459
        %v722 = vpop.f32.mrf.mxu0
        %v723 = vadd.f32 %v339, %v722
        %v724 = vpop.f32.mrf.mxu0
        %v725 = vadd.f32 %v339, %v724
        %726 = vmatmul.bf16.gmra.mxu0 %v461
        %v727 = vpop.f32.mrf.mxu0
        %v728 = vadd.f32 %v339, %v727
        %v729 = vpop.f32.mrf.mxu0
        %v730 = vadd.f32 %v339, %v729
        %731 = vmatmul.bf16.gmra.mxu0 %v463
        %v732 = vpop.f32.mrf.mxu0
        %v733 = vadd.f32 %v339, %v732
        %v734 = vpop.f32.mrf.mxu0
        %v735 = vadd.f32 %v339, %v734
        %736 = vmatmul.bf16.gmra.mxu0 %v465
        %v737 = vpop.f32.mrf.mxu0
        %v738 = vadd.f32 %v339, %v737
        %v739 = vpop.f32.mrf.mxu0
        %v740 = vadd.f32 %v339, %v739
        %741 = vmatmul.bf16.gmra.mxu0 %v467
        %v742 = vpop.f32.mrf.mxu0
        %v743 = vadd.f32 %v339, %v742
        %v744 = vpop.f32.mrf.mxu0
        %v745 = vadd.f32 %v339, %v744
        %746 = vmatmul.bf16.gmra.mxu0 %v469
        %v747 = vpop.f32.mrf.mxu0
        %v748 = vadd.f32 %v339, %v747
        %v749 = vpop.f32.mrf.mxu0
        %v750 = vadd.f32 %v339, %v749
        %751 = vdwg.mxu0
        %752 = vmatpush.bf16.msra.mxu0 %v629
        %753 = vmatpush.bf16.msra.mxu0 %v627
        %754 = vmatpush.bf16.msra.mxu0 %v625
        %755 = vmatpush.bf16.msra.mxu0 %v623
        %756 = vmatpush.bf16.msra.mxu0 %v621
        %757 = vmatpush.bf16.msra.mxu0 %v619
        %758 = vmatpush.bf16.msra.mxu0 %v617
        %759 = vmatpush.bf16.msra.mxu0 %v615
        %760 = vmatmul.bf16.gmra.mxu0 %v440
        %v761 = vpop.f32.mrf.mxu0
        %v762 = vadd.f32 %v673, %v761
        %v763 = vpop.f32.mrf.mxu0
        %v764 = vadd.f32 %v675, %v763
        %765 = vmatmul.bf16.gmra.mxu0 %v442
        %v766 = vpop.f32.mrf.mxu0
        %v767 = vadd.f32 %v678, %v766
        %v768 = vpop.f32.mrf.mxu0
        %v769 = vadd.f32 %v680, %v768
        %770 = vmatmul.bf16.gmra.mxu0 %v444
        %v771 = vpop.f32.mrf.mxu0
        %v772 = vadd.f32 %v683, %v771
        %v773 = vpop.f32.mrf.mxu0
        %v774 = vadd.f32 %v685, %v773
        %775 = vmatmul.bf16.gmra.mxu0 %v446
        %v776 = vpop.f32.mrf.mxu0
        %v777 = vadd.f32 %v688, %v776
        %v778 = vpop.f32.mrf.mxu0
        %v779 = vadd.f32 %v690, %v778
        %780 = vmatmul.bf16.gmra.mxu0 %v448
        %v781 = vpop.f32.mrf.mxu0
        %v782 = vadd.f32 %v693, %v781
        %v783 = vpop.f32.mrf.mxu0
        %v784 = vadd.f32 %v695, %v783
        %785 = vmatmul.bf16.gmra.mxu0 %v450
        %v786 = vpop.f32.mrf.mxu0
        %v787 = vadd.f32 %v698, %v786
        %v788 = vpop.f32.mrf.mxu0
        %v789 = vadd.f32 %v700, %v788
        %790 = vmatmul.bf16.gmra.mxu0 %v452
        %v791 = vpop.f32.mrf.mxu0
        %v792 = vadd.f32 %v703, %v791
        %v793 = vpop.f32.mrf.mxu0
        %v794 = vadd.f32 %v705, %v793
        %795 = vmatmul.bf16.gmra.mxu0 %v454
        %v796 = vpop.f32.mrf.mxu0
        %v797 = vadd.f32 %v708, %v796
        %v798 = vpop.f32.mrf.mxu0
        %v799 = vadd.f32 %v710, %v798
        %800 = vmatmul.bf16.gmra.mxu0 %v456
        %v801 = vpop.f32.mrf.mxu0
        %v802 = vadd.f32 %v713, %v801
        %v803 = vpop.f32.mrf.mxu0
        %v804 = vadd.f32 %v715, %v803
        %805 = vmatmul.bf16.gmra.mxu0 %v458
        %v806 = vpop.f32.mrf.mxu0
        %v807 = vadd.f32 %v718, %v806
        %v808 = vpop.f32.mrf.mxu0
        %v809 = vadd.f32 %v720, %v808
        %810 = vmatmul.bf16.gmra.mxu0 %v460
        %v811 = vpop.f32.mrf.mxu0
        %v812 = vadd.f32 %v723, %v811
        %v813 = vpop.f32.mrf.mxu0
        %v814 = vadd.f32 %v725, %v813
        %815 = vmatmul.bf16.gmra.mxu0 %v462
        %v816 = vpop.f32.mrf.mxu0
        %v817 = vadd.f32 %v728, %v816
        %v818 = vpop.f32.mrf.mxu0
        %v819 = vadd.f32 %v730, %v818
        %820 = vmatmul.bf16.gmra.mxu0 %v464
        %v821 = vpop.f32.mrf.mxu0
        %v822 = vadd.f32 %v733, %v821
        %v823 = vpop.f32.mrf.mxu0
        %v824 = vadd.f32 %v735, %v823
        %825 = vmatmul.bf16.gmra.mxu0 %v466
        %v826 = vpop.f32.mrf.mxu0
        %v827 = vadd.f32 %v738, %v826
        %v828 = vpop.f32.mrf.mxu0
        %v829 = vadd.f32 %v740, %v828
        %830 = vmatmul.bf16.gmra.mxu0 %v468
        %v831 = vpop.f32.mrf.mxu0
        %v832 = vadd.f32 %v743, %v831
        %v833 = vpop.f32.mrf.mxu0
        %v834 = vadd.f32 %v745, %v833
        %835 = vmatmul.bf16.gmra.mxu0 %v470
        %v836 = vpop.f32.mrf.mxu0
        %v837 = vadd.f32 %v748, %v836
        %v838 = vpop.f32.mrf.mxu0
        %v839 = vadd.f32 %v750, %v838
        %840 = vdwg.mxu0
        %841 = vmatpush.bf16.msra.mxu0 %v614
        %842 = vmatpush.bf16.msra.mxu0 %v612
        %843 = vmatpush.bf16.msra.mxu0 %v610
        %844 = vmatpush.bf16.msra.mxu0 %v608
        %845 = vmatpush.bf16.msra.mxu0 %v606
        %846 = vmatpush.bf16.msra.mxu0 %v604
        %847 = vmatpush.bf16.msra.mxu0 %v602
        %848 = vmatpush.bf16.msra.mxu0 %v600
        %849 = vmatmul.bf16.gmra.mxu0 %v439
        %v850 = vpop.f32.mrf.mxu0
        %v851 = vadd.f32 %v340, %v850
        %v852 = vpop.f32.mrf.mxu0
        %v853 = vadd.f32 %v340, %v852
        %854 = vmatmul.bf16.gmra.mxu0 %v441
        %v855 = vpop.f32.mrf.mxu0
        %v856 = vadd.f32 %v340, %v855
        %v857 = vpop.f32.mrf.mxu0
        %v858 = vadd.f32 %v340, %v857
        %859 = vmatmul.bf16.gmra.mxu0 %v443
        %v860 = vpop.f32.mrf.mxu0
        %v861 = vadd.f32 %v340, %v860
        %v862 = vpop.f32.mrf.mxu0
        %v863 = vadd.f32 %v340, %v862
        %864 = vmatmul.bf16.gmra.mxu0 %v445
        %v865 = vpop.f32.mrf.mxu0
        %v866 = vadd.f32 %v340, %v865
        %v867 = vpop.f32.mrf.mxu0
        %v868 = vadd.f32 %v340, %v867
        %869 = vmatmul.bf16.gmra.mxu0 %v447
        %v870 = vpop.f32.mrf.mxu0
        %v871 = vadd.f32 %v340, %v870
        %v872 = vpop.f32.mrf.mxu0
        %v873 = vadd.f32 %v340, %v872
        %874 = vmatmul.bf16.gmra.mxu0 %v449
        %v875 = vpop.f32.mrf.mxu0
        %v876 = vadd.f32 %v340, %v875
        %v877 = vpop.f32.mrf.mxu0
        %v878 = vadd.f32 %v340, %v877
        %879 = vmatmul.bf16.gmra.mxu0 %v451
        %v880 = vpop.f32.mrf.mxu0
        %v881 = vadd.f32 %v340, %v880
        %v882 = vpop.f32.mrf.mxu0
        %v883 = vadd.f32 %v340, %v882
        %884 = vmatmul.bf16.gmra.mxu0 %v453
        %v885 = vpop.f32.mrf.mxu0
        %v886 = vadd.f32 %v340, %v885
        %v887 = vpop.f32.mrf.mxu0
        %v888 = vadd.f32 %v340, %v887
        %889 = vmatmul.bf16.gmra.mxu0 %v455
        %v890 = vpop.f32.mrf.mxu0
        %v891 = vadd.f32 %v340, %v890
        %v892 = vpop.f32.mrf.mxu0
        %v893 = vadd.f32 %v340, %v892
        %894 = vmatmul.bf16.gmra.mxu0 %v457
        %v895 = vpop.f32.mrf.mxu0
        %v896 = vadd.f32 %v340, %v895
        %v897 = vpop.f32.mrf.mxu0
        %v898 = vadd.f32 %v340, %v897
        %899 = vmatmul.bf16.gmra.mxu0 %v459
        %v900 = vpop.f32.mrf.mxu0
        %v901 = vadd.f32 %v340, %v900
        %v902 = vpop.f32.mrf.mxu0
        %v903 = vadd.f32 %v340, %v902
        %904 = vmatmul.bf16.gmra.mxu0 %v461
        %v905 = vpop.f32.mrf.mxu0
        %v906 = vadd.f32 %v340, %v905
        %v907 = vpop.f32.mrf.mxu0
        %v908 = vadd.f32 %v340, %v907
        %909 = vmatmul.bf16.gmra.mxu0 %v463
        %v910 = vpop.f32.mrf.mxu0
        %v911 = vadd.f32 %v340, %v910
        %v912 = vpop.f32.mrf.mxu0
        %v913 = vadd.f32 %v340, %v912
        %914 = vmatmul.bf16.gmra.mxu0 %v465
        %v915 = vpop.f32.mrf.mxu0
        %v916 = vadd.f32 %v340, %v915
        %v917 = vpop.f32.mrf.mxu0
        %v918 = vadd.f32 %v340, %v917
        %919 = vmatmul.bf16.gmra.mxu0 %v467
        %v920 = vpop.f32.mrf.mxu0
        %v921 = vadd.f32 %v340, %v920
        %v922 = vpop.f32.mrf.mxu0
        %v923 = vadd.f32 %v340, %v922
        %924 = vmatmul.bf16.gmra.mxu0 %v469
        %v925 = vpop.f32.mrf.mxu0
        %v926 = vadd.f32 %v340, %v925
        %v927 = vpop.f32.mrf.mxu0
        %v928 = vadd.f32 %v340, %v927
        %929 = vdwg.mxu0
        %930 = vmatpush.bf16.msra.mxu0 %v630
        %931 = vmatpush.bf16.msra.mxu0 %v628
        %932 = vmatpush.bf16.msra.mxu0 %v626
        %933 = vmatpush.bf16.msra.mxu0 %v624
        %934 = vmatpush.bf16.msra.mxu0 %v622
        %935 = vmatpush.bf16.msra.mxu0 %v620
        %936 = vmatpush.bf16.msra.mxu0 %v618
        %937 = vmatpush.bf16.msra.mxu0 %v616
        %938 = vmatmul.bf16.gmra.mxu0 %v440
        %v939 = vpop.f32.mrf.mxu0
        %v940 = vadd.f32 %v851, %v939
        %v941 = vpop.f32.mrf.mxu0
        %v942 = vadd.f32 %v853, %v941
        %943 = vmatmul.bf16.gmra.mxu0 %v442
        %v944 = vpop.f32.mrf.mxu0
        %v945 = vadd.f32 %v856, %v944
        %v946 = vpop.f32.mrf.mxu0
        %v947 = vadd.f32 %v858, %v946
        %948 = vmatmul.bf16.gmra.mxu0 %v444
        %v949 = vpop.f32.mrf.mxu0
        %v950 = vadd.f32 %v861, %v949
        %v951 = vpop.f32.mrf.mxu0
        %v952 = vadd.f32 %v863, %v951
        %953 = vmatmul.bf16.gmra.mxu0 %v446
        %v954 = vpop.f32.mrf.mxu0
        %v955 = vadd.f32 %v866, %v954
        %v956 = vpop.f32.mrf.mxu0
        %v957 = vadd.f32 %v868, %v956
        %958 = vmatmul.bf16.gmra.mxu0 %v448
        %v959 = vpop.f32.mrf.mxu0
        %v960 = vadd.f32 %v871, %v959
        %v961 = vpop.f32.mrf.mxu0
        %v962 = vadd.f32 %v873, %v961
        %963 = vmatmul.bf16.gmra.mxu0 %v450
        %v964 = vpop.f32.mrf.mxu0
        %v965 = vadd.f32 %v876, %v964
        %v966 = vpop.f32.mrf.mxu0
        %v967 = vadd.f32 %v878, %v966
        %968 = vmatmul.bf16.gmra.mxu0 %v452
        %v969 = vpop.f32.mrf.mxu0
        %v970 = vadd.f32 %v881, %v969
        %v971 = vpop.f32.mrf.mxu0
        %v972 = vadd.f32 %v883, %v971
        %973 = vmatmul.bf16.gmra.mxu0 %v454
        %v974 = vpop.f32.mrf.mxu0
        %v975 = vadd.f32 %v886, %v974
        %v976 = vpop.f32.mrf.mxu0
        %v977 = vadd.f32 %v888, %v976
        %978 = vmatmul.bf16.gmra.mxu0 %v456
        %v979 = vpop.f32.mrf.mxu0
        %v980 = vadd.f32 %v891, %v979
        %v981 = vpop.f32.mrf.mxu0
        %v982 = vadd.f32 %v893, %v981
        %983 = vmatmul.bf16.gmra.mxu0 %v458
        %v984 = vpop.f32.mrf.mxu0
        %v985 = vadd.f32 %v896, %v984
        %v986 = vpop.f32.mrf.mxu0
        %v987 = vadd.f32 %v898, %v986
        %988 = vmatmul.bf16.gmra.mxu0 %v460
        %v989 = vpop.f32.mrf.mxu0
        %v990 = vadd.f32 %v901, %v989
        %v991 = vpop.f32.mrf.mxu0
        %v992 = vadd.f32 %v903, %v991
        %993 = vmatmul.bf16.gmra.mxu0 %v462
        %v994 = vpop.f32.mrf.mxu0
        %v995 = vadd.f32 %v906, %v994
        %v996 = vpop.f32.mrf.mxu0
        %v997 = vadd.f32 %v908, %v996
        %998 = vmatmul.bf16.gmra.mxu0 %v464
        %v999 = vpop.f32.mrf.mxu0
        %v1000 = vadd.f32 %v911, %v999
        %v1001 = vpop.f32.mrf.mxu0
        %v1002 = vadd.f32 %v913, %v1001
        %1003 = vmatmul.bf16.gmra.mxu0 %v466
        %v1004 = vpop.f32.mrf.mxu0
        %v1005 = vadd.f32 %v916, %v1004
        %v1006 = vpop.f32.mrf.mxu0
        %v1007 = vadd.f32 %v918, %v1006
        %1008 = vmatmul.bf16.gmra.mxu0 %v468
        %v1009 = vpop.f32.mrf.mxu0
        %v1010 = vadd.f32 %v921, %v1009
        %v1011 = vpop.f32.mrf.mxu0
        %v1012 = vadd.f32 %v923, %v1011
        %1013 = vmatmul.bf16.gmra.mxu0 %v470
        %v1014 = vpop.f32.mrf.mxu0
        %v1015 = vadd.f32 %v926, %v1014
        %v1016 = vpop.f32.mrf.mxu0
        %v1017 = vadd.f32 %v928, %v1016
        %1018 = vdwg.mxu0
        %1019 = vst [vmem:[%s241] sm:$0xff] %v762
        %1020 = vst [vmem:[%s241 + $0x8] sm:$0xff] %v940
        %1021 = vst [vmem:[%s241 + $0x10] sm:$0xff] %v764
        %1022 = vst [vmem:[%s241 + $0x18] sm:$0xff] %v942
        %1023 = vst [vmem:[%s241 + $0x20] sm:$0xff] %v767
        %1024 = vst [vmem:[%s241 + $0x28] sm:$0xff] %v945
        %1025 = vst [vmem:[%s241 + $0x30] sm:$0xff] %v769
        %1026 = vst [vmem:[%s241 + $0x38] sm:$0xff] %v947
        %1027 = vst [vmem:[%s241 + $0x40] sm:$0xff] %v772
        %1028 = vst [vmem:[%s241 + $0x48] sm:$0xff] %v950
        %1029 = vst [vmem:[%s241 + $0x50] sm:$0xff] %v774
        %1030 = vst [vmem:[%s241 + $0x58] sm:$0xff] %v952
        %1031 = vst [vmem:[%s241 + $0x60] sm:$0xff] %v777
        %1032 = vst [vmem:[%s241 + $0x68] sm:$0xff] %v955
        %1033 = vst [vmem:[%s241 + $0x70] sm:$0xff] %v779
        %1034 = vst [vmem:[%s241 + $0x78] sm:$0xff] %v957
        %1035 = vst [vmem:[%s241 + $0x80] sm:$0xff] %v782
        %1036 = vst [vmem:[%s241 + $0x88] sm:$0xff] %v960
        %1037 = vst [vmem:[%s241 + $0x90] sm:$0xff] %v784
        %1038 = vst [vmem:[%s241 + $0x98] sm:$0xff] %v962
        %1039 = vst [vmem:[%s241 + $0xa0] sm:$0xff] %v787
        %1040 = vst [vmem:[%s241 + $0xa8] sm:$0xff] %v965
        %1041 = vst [vmem:[%s241 + $0xb0] sm:$0xff] %v789
        %1042 = vst [vmem:[%s241 + $0xb8] sm:$0xff] %v967
        %1043 = vst [vmem:[%s241 + $0xc0] sm:$0xff] %v792
        %1044 = vst [vmem:[%s241 + $0xc8] sm:$0xff] %v970
        %1045 = vst [vmem:[%s241 + $0xd0] sm:$0xff] %v794
        %1046 = vst [vmem:[%s241 + $0xd8] sm:$0xff] %v972
        %1047 = vst [vmem:[%s241 + $0xe0] sm:$0xff] %v797
        %1048 = vst [vmem:[%s241 + $0xe8] sm:$0xff] %v975
        %1049 = vst [vmem:[%s241 + $0xf0] sm:$0xff] %v799
        %1050 = vst [vmem:[%s241 + $0xf8] sm:$0xff] %v977
        %1051 = vst [vmem:[%s241 + $0x100] sm:$0xff] %v802
        %1052 = vst [vmem:[%s241 + $0x108] sm:$0xff] %v980
        %1053 = vst [vmem:[%s241 + $0x110] sm:$0xff] %v804
        %1054 = vst [vmem:[%s241 + $0x118] sm:$0xff] %v982
        %1055 = vst [vmem:[%s241 + $0x120] sm:$0xff] %v807
        %1056 = vst [vmem:[%s241 + $0x128] sm:$0xff] %v985
        %1057 = vst [vmem:[%s241 + $0x130] sm:$0xff] %v809
        %1058 = vst [vmem:[%s241 + $0x138] sm:$0xff] %v987
        %1059 = vst [vmem:[%s241 + $0x140] sm:$0xff] %v812
        %1060 = vst [vmem:[%s241 + $0x148] sm:$0xff] %v990
        %1061 = vst [vmem:[%s241 + $0x150] sm:$0xff] %v814
        %1062 = vst [vmem:[%s241 + $0x158] sm:$0xff] %v992
        %1063 = vst [vmem:[%s241 + $0x160] sm:$0xff] %v817
        %1064 = vst [vmem:[%s241 + $0x168] sm:$0xff] %v995
        %1065 = vst [vmem:[%s241 + $0x170] sm:$0xff] %v819
        %1066 = vst [vmem:[%s241 + $0x178] sm:$0xff] %v997
        %1067 = vst [vmem:[%s241 + $0x180] sm:$0xff] %v822
        %1068 = vst [vmem:[%s241 + $0x188] sm:$0xff] %v1000
        %1069 = vst [vmem:[%s241 + $0x190] sm:$0xff] %v824
        %1070 = vst [vmem:[%s241 + $0x198] sm:$0xff] %v1002
        %1071 = vst [vmem:[%s241 + $0x1a0] sm:$0xff] %v827
        %1072 = vst [vmem:[%s241 + $0x1a8] sm:$0xff] %v1005
        %1073 = vst [vmem:[%s241 + $0x1b0] sm:$0xff] %v829
        %1074 = vst [vmem:[%s241 + $0x1b8] sm:$0xff] %v1007
        %1075 = vst [vmem:[%s241 + $0x1c0] sm:$0xff] %v832
        %1076 = vst [vmem:[%s241 + $0x1c8] sm:$0xff] %v1010
        %1077 = vst [vmem:[%s241 + $0x1d0] sm:$0xff] %v834
        %1078 = vst [vmem:[%s241 + $0x1d8] sm:$0xff] %v1012
        %1079 = vst [vmem:[%s241 + $0x1e0] sm:$0xff] %v837
        %1080 = vst [vmem:[%s241 + $0x1e8] sm:$0xff] %v1015
        %1081 = vst [vmem:[%s241 + $0x1f0] sm:$0xff] %v839
        %1082 = vst [vmem:[%s241 + $0x1f8] sm:$0xff] %v1017
        %s1083 = sand.u32 %s128, 1
        %s1084 = scalar_lea.sflag [#allocation3], %s1083
        %s1085 = sand.u32 %s128, 1
        %s1086 = smul.addr %s1085, 512
        %s1087 = scalar_lea.vmem [#allocation2], %s1086
        // Predicated region
        $region33: #{run_with_weights.5} parent=31 // pred_check
          %p1088 = pneg %p138
        $region34: #{run_with_weights.5} parent=31 // pred_check_branch
          %1090 = sbr.rel (%p1088) target = $region36
        $region35: #{run_with_weights.5} parent=31 // pred_region
          %s1091 = smul.u32 32, %s22
          %s1092 = smul.u32 2, %s23
          %1094 = vsyncadd %s1084, 0
          %s1095 = smul.addr %s1091, 2
          %s1096 = sadd.s32 %s1092, %s1095
          %s1097 = smul.addr %s1096, 8
          %s1098 = scalar_lea.hbm %s3, %s1097
          %s1099 = sshll.u32 %s1087, 4
          %s1100 = int_to_ptr.vmem [resolvable:$true] %s1099
          %s1101 = sshll.u32 %s1098, 4
          %s1102 = int_to_ptr.hbm [resolvable:$true] %s1101
          %1107 = dma.vmem_to_hbm [thread:$0]  %s1100, 8192, %s1102, %s1084, 256, 256, 16
        $region36: #{run_with_weights.5} parent=31 // pred_fallthru
          _
      $region32: #{run_with_weights.5} parent=5 // pred_fallthru
        _
      %p1108 = scmp.le.s32.totalorder 2, %s12
      // Predicated region
      $region37: #{run_with_weights.5} parent=5 // pred_check
        %p1109 = pneg %p1108
      $region38: #{run_with_weights.5} parent=5 // pred_check_branch
        %1111 = sbr.rel (%p1109) target = $region40
      $region39: #{run_with_weights.5} parent=5 // pred_region
        %s1112 = ssub.s32 %s12, 2
        // Predicated region
        $region41: #{run_with_weights.5} parent=39 // pred_check
          %p1113 = pneg %p144
        $region42: #{run_with_weights.5} parent=39 // pred_check_branch
          %1115 = sbr.rel (%p1113) target = $region44
        $region43: #{run_with_weights.5} parent=39 // pred_region
          %s1116 = sand.u32 %s129, 1
          %s1117 = scalar_lea.sflag [#allocation3], %s1116
          %s1118 = sand.u32 %s129, 1
          %s1119 = smul.addr %s1118, 512
          %s1120 = scalar_lea.vmem [#allocation2], %s1119
          %1122 = dma.done %s1117, 8192
        $region44: #{run_with_weights.5} parent=39 // pred_fallthru
          _
      $region40: #{run_with_weights.5} parent=5 // pred_fallthru
        _
    $region6: #{run_with_weights.5} parent=1 // loop_footer
      %s16 = sadd.s32 1, %s12
    $region7: #{run_with_weights.5} parent=1 // loop_footer_branch
      %11 = sbr.rel target = $region3
    $region8: #{run_with_weights.5} parent=1 // loop_exit
      _
    %1123 = vsyncpa [#allocation3], 1
    %s1124 = scalar_lea.sflag [#allocation3], 1
    %1125 = vsyncpa %s1124, 1

// kernel: run_with_weights.4
$region0: #{run_with_weights.4}
  #allocation0 [shape = 'u32[]', space=smem, size = 0x4, offset = 0x4, fixed_abs, tag = 'smem constant byte address 0x4 - core index']
  #allocation1 [shape = 'u32[72,128]{1,0:T(1,128)}', space=vmem, size = 0x9000, scoped, tag = 'internal scratch']
  %s0 = inlined_call_operand.vmem [shape: bf16[2,256,768], index: 0, kind: input, shape index: {}, may-alias: {0,1,2}]
  %s1 = inlined_call_operand.vmem [shape: bf16[2,256,768], index: 1, kind: input, shape index: {}, may-alias: {0,1,2}]
  %s2 = inlined_call_operand.vmem [shape: bf16[2,256,768], index: 2, kind: input, shape index: {}, may-alias: {0,1,2}]
  %s3 = inlined_call_operand.vmem [shape: bf16[2,256,256], index: 3, kind: output, shape index: {0}]
  %s4 = inlined_call_operand.hbm [shape: f32[2,2,256,256], index: 4, kind: output, shape index: {1}]
  %5 = xla_tuple %s3, %s4
  %s6 = sld [smem:[#allocation0]]
  $region213: #{run_with_weights.4} parent=0
    _
  %s8 = ssub.s32 1, %s6
  %s9 = scalar_select 0, %s8, %s6
  $region1: #{run_with_weights.4} parent=0
    #allocation2 [shape = 'u8[131072]{0}', space=vmem, size = 0x20000, scoped, tag = 'input window, operand 0']
    #allocation3 [shape = 'u8[131072]{0}', space=vmem, size = 0x20000, scoped, tag = 'input window, operand 1']
    #allocation4 [shape = 'u8[131072]{0}', space=vmem, size = 0x20000, scoped, tag = 'input window, operand 2']
    #allocation5 [shape = 'u8[131072]{0}', space=vmem, size = 0x20000, scoped, tag = 'output window, operand 0']
    #allocation6 [shape = 'u8[524288]{0}', space=vmem, size = 0x80000, scoped, tag = 'output window, operand 1']
    #allocation7 [shape = 's32[2]{0}', space=sflag, size = 0x8, scoped, tag = 'scoped memory for run_with_weights.4']
    %10 = vsyncpa [#allocation7], 0
    %s11 = scalar_lea.sflag [#allocation7], 1
    %12 = vsyncpa %s11, 0
    loop: start=0, step=1, limit=6
    $region2: #{run_with_weights.4} parent=1 // loop_pre_header
      _
    $region3: #{run_with_weights.4} parent=1 // loop_header
      %s14 = sphi 0, %s18
      %p15 = scmp.ge.s32.totalorder %s14, 6
      %s21 = sphi 0, %s40
      %s22 = sphi 0, %s36
      %s23 = sphi 0, %s32
      %s24 = sphi 0, %s21
      %s25 = sphi 0, %s22
      %s26 = sphi 0, %s23
      %s27 = sphi 0, %s24
      %s28 = sphi 0, %s25
      %s29 = sphi 0, %s26
      %s47 = sphi 0, %s49
      %s50 = sphi 0, %s47
      %s51 = sphi 0, %s50
      %s67 = sphi 0, %s51
      %s77 = sphi 0, %s79
      %s80 = sphi 0, %s77
      %s81 = sphi 0, %s80
      %s97 = sphi 0, %s81
      %s107 = sphi 0, %s109
      %s110 = sphi 0, %s107
      %s111 = sphi 0, %s110
      %s127 = sphi 0, %s111
      %s137 = sphi 0, %s139
      %s140 = sphi 0, %s137
      %s141 = sphi 0, %s140
      %s157 = sphi 0, %s141
      %s167 = sphi 0, %s169
      %s170 = sphi 0, %s167
      %s171 = sphi 0, %s170
      %s187 = sphi 0, %s171
    $region4: #{run_with_weights.4} parent=1 // loop_header_branch
      %17 = sbr.rel (%p15) target = $region8
    $region5: #{run_with_weights.4} parent=1 // loop_body
      %s19 = ssub.s32 %s14, 1
      %s20 = ssub.s32 %s14, 2
      %s30 = sadd.s32 1, %s23
      %p31 = scmp.ge.s32.totalorder %s30, 1
      %s32 = scalar_select %p31, 0, %s30
      %s33 = sadd.s32 1, %s22
      %s34 = scalar_select %p31, %s33, %s22
      %p35 = scmp.ge.s32.totalorder %s34, 2
      %s36 = scalar_select %p35, 0, %s34
      %s37 = sadd.s32 1, %s21
      %s38 = scalar_select %p35, %s37, %s21
      %p39 = scmp.ge.s32.totalorder %s38, 2
      %s40 = scalar_select %p39, 0, %s38
      %s41 = ssub.s32 %s21, %s40
      %s42 = ssub.s32 %s23, %s32
      %s43 = sor.u32 %s41, %s42
      %s44 = ssub.s32 %s22, %s36
      %s45 = sor.u32 %s43, %s44
      %p46 = scmp.eq.s32.totalorder %s45, 0
      %s48 = sadd.s32 %s47, 1
      %s49 = scalar_select %p46, %s47, %s48
      %p52 = pneg %p46
      %p53 = scmp.eq.s32.totalorder %s14, 3
      %p54 = por %p52, %p53
      %p55 = scmp.ne.s32.totalorder %s47, %s50
      %p56 = scmp.eq.s32.totalorder %s14, 0
      %p57 = por %p55, %p56
      %p58 = scmp.ne.s32.totalorder %s47, %s50
      %p59 = scmp.eq.s32.totalorder %s19, 3
      %p60 = por %p58, %p59
      %p61 = scmp.ne.s32.totalorder %s50, %s51
      %p62 = scmp.eq.s32.totalorder %s19, 0
      %p63 = por %p61, %p62
      %p64 = scmp.ne.s32.totalorder %s50, %s51
      %p65 = scmp.eq.s32.totalorder %s20, 3
      %p66 = por %p64, %p65
      %p68 = scmp.ne.s32.totalorder %s51, %s67
      %p69 = scmp.eq.s32.totalorder %s20, 0
      %p70 = por %p68, %p69
      %s71 = sadd.s32 %s22, 2
      %s72 = sadd.s32 %s36, 2
      %s73 = ssub.s32 %s21, %s40
      %s74 = ssub.s32 %s71, %s72
      %s75 = sor.u32 %s73, %s74
      %p76 = scmp.eq.s32.totalorder %s75, 0
      %s78 = sadd.s32 %s77, 1
      %s79 = scalar_select %p76, %s77, %s78
      %p82 = pneg %p76
      %p83 = scmp.eq.s32.totalorder %s14, 3
      %p84 = por %p82, %p83
      %p85 = scmp.ne.s32.totalorder %s77, %s80
      %p86 = scmp.eq.s32.totalorder %s14, 0
      %p87 = por %p85, %p86
      %p88 = scmp.ne.s32.totalorder %s77, %s80
      %p89 = scmp.eq.s32.totalorder %s19, 3
      %p90 = por %p88, %p89
      %p91 = scmp.ne.s32.totalorder %s80, %s81
      %p92 = scmp.eq.s32.totalorder %s19, 0
      %p93 = por %p91, %p92
      %p94 = scmp.ne.s32.totalorder %s80, %s81
      %p95 = scmp.eq.s32.totalorder %s20, 3
      %p96 = por %p94, %p95
      %p98 = scmp.ne.s32.totalorder %s81, %s97
      %p99 = scmp.eq.s32.totalorder %s20, 0
      %p100 = por %p98, %p99
      %s101 = sadd.s32 %s22, 4
      %s102 = sadd.s32 %s36, 4
      %s103 = ssub.s32 %s21, %s40
      %s104 = ssub.s32 %s101, %s102
      %s105 = sor.u32 %s103, %s104
      %p106 = scmp.eq.s32.totalorder %s105, 0
      %s108 = sadd.s32 %s107, 1
      %s109 = scalar_select %p106, %s107, %s108
      %p112 = pneg %p106
      %p113 = scmp.eq.s32.totalorder %s14, 3
      %p114 = por %p112, %p113
      %p115 = scmp.ne.s32.totalorder %s107, %s110
      %p116 = scmp.eq.s32.totalorder %s14, 0
      %p117 = por %p115, %p116
      %p118 = scmp.ne.s32.totalorder %s107, %s110
      %p119 = scmp.eq.s32.totalorder %s19, 3
      %p120 = por %p118, %p119
      %p121 = scmp.ne.s32.totalorder %s110, %s111
      %p122 = scmp.eq.s32.totalorder %s19, 0
      %p123 = por %p121, %p122
      %p124 = scmp.ne.s32.totalorder %s110, %s111
      %p125 = scmp.eq.s32.totalorder %s20, 3
      %p126 = por %p124, %p125
      %p128 = scmp.ne.s32.totalorder %s111, %s127
      %p129 = scmp.eq.s32.totalorder %s20, 0
      %p130 = por %p128, %p129
      %s131 = ssub.s32 %s21, %s40
      %s132 = ssub.s32 %s23, %s32
      %s133 = sor.u32 %s131, %s132
      %s134 = ssub.s32 %s22, %s36
      %s135 = sor.u32 %s133, %s134
      %p136 = scmp.eq.s32.totalorder %s135, 0
      %s138 = sadd.s32 %s137, 1
      %s139 = scalar_select %p136, %s137, %s138
      %p142 = pneg %p136
      %p143 = scmp.eq.s32.totalorder %s14, 3
      %p144 = por %p142, %p143
      %p145 = scmp.ne.s32.totalorder %s137, %s140
      %p146 = scmp.eq.s32.totalorder %s14, 0
      %p147 = por %p145, %p146
      %p148 = scmp.ne.s32.totalorder %s137, %s140
      %p149 = scmp.eq.s32.totalorder %s19, 3
      %p150 = por %p148, %p149
      %p151 = scmp.ne.s32.totalorder %s140, %s141
      %p152 = scmp.eq.s32.totalorder %s19, 0
      %p153 = por %p151, %p152
      %p154 = scmp.ne.s32.totalorder %s140, %s141
      %p155 = scmp.eq.s32.totalorder %s20, 3
      %p156 = por %p154, %p155
      %p158 = scmp.ne.s32.totalorder %s141, %s157
      %p159 = scmp.eq.s32.totalorder %s20, 0
      %p160 = por %p158, %p159
      %s161 = ssub.s32 %s21, %s40
      %s162 = ssub.s32 %s22, %s36
      %s163 = sor.u32 %s161, %s162
      %s164 = ssub.s32 %s23, %s32
      %s165 = sor.u32 %s163, %s164
      %p166 = scmp.eq.s32.totalorder %s165, 0
      %s168 = sadd.s32 %s167, 1
      %s169 = scalar_select %p166, %s167, %s168
      %p172 = pneg %p166
      %p173 = scmp.eq.s32.totalorder %s14, 3
      %p174 = por %p172, %p173
      %p175 = scmp.ne.s32.totalorder %s167, %s170
      %p176 = scmp.eq.s32.totalorder %s14, 0
      %p177 = por %p175, %p176
      %p178 = scmp.ne.s32.totalorder %s167, %s170
      %p179 = scmp.eq.s32.totalorder %s19, 3
      %p180 = por %p178, %p179
      %p181 = scmp.ne.s32.totalorder %s170, %s171
      %p182 = scmp.eq.s32.totalorder %s19, 0
      %p183 = por %p181, %p182
      %p184 = scmp.ne.s32.totalorder %s170, %s171
      %p185 = scmp.eq.s32.totalorder %s20, 3
      %p186 = por %p184, %p185
      %p188 = scmp.ne.s32.totalorder %s171, %s187
      %p189 = scmp.eq.s32.totalorder %s20, 0
      %p190 = por %p188, %p189
      %p191 = scmp.le.s32.totalorder 1, %s14
      %p192 = scmp.lt.s32.totalorder %s14, 5
      %p193 = pnand %p191, %p192
      %p194 = pneg %p193
      // Predicated region
      $region9: #{run_with_weights.4} parent=5 // pred_check
        _
      $region10: #{run_with_weights.4} parent=5 // pred_check_branch
        %196 = sbr.rel (%p193) target = $region12
      $region11: #{run_with_weights.4} parent=5 // pred_region
        %s197 = ssub.s32 %s14, 1
      $region12: #{run_with_weights.4} parent=5 // pred_fallthru
        _
      %p198 = scmp.lt.s32.totalorder %s14, 4
      // Predicated region
      $region13: #{run_with_weights.4} parent=5 // pred_check
        %p199 = pneg %p198
      $region14: #{run_with_weights.4} parent=5 // pred_check_branch
        %201 = sbr.rel (%p199) target = $region16
      $region15: #{run_with_weights.4} parent=5 // pred_region
        // Predicated region
        $region17: #{run_with_weights.4} parent=15 // pred_check
          %p202 = pneg %p57
        $region18: #{run_with_weights.4} parent=15 // pred_check_branch
          %204 = sbr.rel (%p202) target = $region20
        $region19: #{run_with_weights.4} parent=15 // pred_region
          %s205 = sand.u32 %s47, 1
          %s206 = sand.u32 %s47, 1
          %s207 = smul.addr %s206, 128
          %s208 = scalar_lea.vmem [#allocation2], %s207
          %s209 = smul.u32 32, %s23
          %s210 = smul.addr %s209, 6
          %s211 = sadd.s32 %s22, %s210
          %s212 = smul.addr %s21, 192
          %s213 = sadd.s32 %s211, %s212
          %s214 = smul.addr %s213, 4
          %s215 = scalar_lea.vmem %s0, %s214
          // Predicated region
          $region21: #{run_with_weights.4} parent=19 // pred_check
            _
          $region22: #{run_with_weights.4} parent=19 // pred_check_branch
            %217 = sbr.rel (0) target = $region24
          $region23: #{run_with_weights.4} parent=19 // pred_region
            // Predicated region
            $region25: #{run_with_weights.4} parent=23 // pred_check
              _
            $region26: #{run_with_weights.4} parent=23 // pred_check_branch
              %219 = sbr.rel target = $region28
            $region27: #{run_with_weights.4} parent=23 // pred_region
              // Predicated region
              $region40: #{run_with_weights.4} parent=27 // pred_check
                _
              $region41: #{run_with_weights.4} parent=27 // pred_check_branch
                %297 = sbr.rel (0) target = $region43
              $region42: #{run_with_weights.4} parent=27 // pred_region
                loop: start=0, step=1, limit=1
                $region44: #{run_with_weights.4} parent=42 // loop_pre_header
                  _
                $region45: #{run_with_weights.4} parent=42 // loop_header
                  %s299 = sphi 0, %s303
                  %p300 = scmp.ge.s32.totalorder %s299, 1
                  %s304 = sphi %s215, %s215
                  %s305 = sphi %s208, %s208
                $region46: #{run_with_weights.4} parent=42 // loop_header_branch
                  %302 = sbr.rel (%p300) target = $region50
                $region47: #{run_with_weights.4} parent=42 // loop_body
                  _
                $region48: #{run_with_weights.4} parent=42 // loop_footer
                  %s303 = sadd.s32 1, %s299
                $region49: #{run_with_weights.4} parent=42 // loop_footer_branch
                  %298 = sbr.rel target = $region45
                $region50: #{run_with_weights.4} parent=42 // loop_exit
                  _
                %s307 = ssub.s32 16, 1
                loop: start=0, step=1, limit=1
                $region51: #{run_with_weights.4} parent=42 // loop_pre_header
                  _
                $region52: #{run_with_weights.4} parent=42 // loop_header
                  %s309 = sphi 0, %s313
                  %p310 = scmp.ge.s32.totalorder %s309, 1
                  %s314 = sphi %s215, %s215
                  %s315 = sphi %s208, %s208
                $region53: #{run_with_weights.4} parent=42 // loop_header_branch
                  %312 = sbr.rel (%p310) target = $region57
                $region54: #{run_with_weights.4} parent=42 // loop_body
                  %v316 = vld [vmem:[%s314] sm:%s307]
                  %317 = vst [vmem:[%s315] sm:%s307] %v316
                  %v318 = vld [vmem:[%s314 + $0x18] sm:%s307]
                  %319 = vst [vmem:[%s315 + $0x4] sm:%s307] %v318
                  %v320 = vld [vmem:[%s314 + $0x30] sm:%s307]
                  %321 = vst [vmem:[%s315 + $0x8] sm:%s307] %v320
                  %v322 = vld [vmem:[%s314 + $0x48] sm:%s307]
                  %323 = vst [vmem:[%s315 + $0xc] sm:%s307] %v322
                  %v324 = vld [vmem:[%s314 + $0x60] sm:%s307]
                  %325 = vst [vmem:[%s315 + $0x10] sm:%s307] %v324
                  %v326 = vld [vmem:[%s314 + $0x78] sm:%s307]
                  %327 = vst [vmem:[%s315 + $0x14] sm:%s307] %v326
                  %v328 = vld [vmem:[%s314 + $0x90] sm:%s307]
                  %329 = vst [vmem:[%s315 + $0x18] sm:%s307] %v328
                  %v330 = vld [vmem:[%s314 + $0xa8] sm:%s307]
                  %331 = vst [vmem:[%s315 + $0x1c] sm:%s307] %v330
                  %v332 = vld [vmem:[%s314 + $0xc0] sm:%s307]
                  %333 = vst [vmem:[%s315 + $0x20] sm:%s307] %v332
                  %v334 = vld [vmem:[%s314 + $0xd8] sm:%s307]
                  %335 = vst [vmem:[%s315 + $0x24] sm:%s307] %v334
                  %v336 = vld [vmem:[%s314 + $0xf0] sm:%s307]
                  %337 = vst [vmem:[%s315 + $0x28] sm:%s307] %v336
                  %v338 = vld [vmem:[%s314 + $0x108] sm:%s307]
                  %339 = vst [vmem:[%s315 + $0x2c] sm:%s307] %v338
                  %v340 = vld [vmem:[%s314 + $0x120] sm:%s307]
                  %341 = vst [vmem:[%s315 + $0x30] sm:%s307] %v340
                  %v342 = vld [vmem:[%s314 + $0x138] sm:%s307]
                  %343 = vst [vmem:[%s315 + $0x34] sm:%s307] %v342
                  %v344 = vld [vmem:[%s314 + $0x150] sm:%s307]
                  %345 = vst [vmem:[%s315 + $0x38] sm:%s307] %v344
                  %v346 = vld [vmem:[%s314 + $0x168] sm:%s307]
                  %347 = vst [vmem:[%s315 + $0x3c] sm:%s307] %v346
                  %v348 = vld [vmem:[%s314 + $0x180] sm:%s307]
                  %349 = vst [vmem:[%s315 + $0x40] sm:%s307] %v348
                  %v350 = vld [vmem:[%s314 + $0x198] sm:%s307]
                  %351 = vst [vmem:[%s315 + $0x44] sm:%s307] %v350
                  %v352 = vld [vmem:[%s314 + $0x1b0] sm:%s307]
                  %353 = vst [vmem:[%s315 + $0x48] sm:%s307] %v352
                  %v354 = vld [vmem:[%s314 + $0x1c8] sm:%s307]
                  %355 = vst [vmem:[%s315 + $0x4c] sm:%s307] %v354
                  %v356 = vld [vmem:[%s314 + $0x1e0] sm:%s307]
                  %357 = vst [vmem:[%s315 + $0x50] sm:%s307] %v356
                  %v358 = vld [vmem:[%s314 + $0x1f8] sm:%s307]
                  %359 = vst [vmem:[%s315 + $0x54] sm:%s307] %v358
                  %v360 = vld [vmem:[%s314 + $0x210] sm:%s307]
                  %361 = vst [vmem:[%s315 + $0x58] sm:%s307] %v360
                  %v362 = vld [vmem:[%s314 + $0x228] sm:%s307]
                  %363 = vst [vmem:[%s315 + $0x5c] sm:%s307] %v362
                  %v364 = vld [vmem:[%s314 + $0x240] sm:%s307]
                  %365 = vst [vmem:[%s315 + $0x60] sm:%s307] %v364
                  %v366 = vld [vmem:[%s314 + $0x258] sm:%s307]
                  %367 = vst [vmem:[%s315 + $0x64] sm:%s307] %v366
                  %v368 = vld [vmem:[%s314 + $0x270] sm:%s307]
                  %369 = vst [vmem:[%s315 + $0x68] sm:%s307] %v368
                  %v370 = vld [vmem:[%s314 + $0x288] sm:%s307]
                  %371 = vst [vmem:[%s315 + $0x6c] sm:%s307] %v370
                  %v372 = vld [vmem:[%s314 + $0x2a0] sm:%s307]
                  %373 = vst [vmem:[%s315 + $0x70] sm:%s307] %v372
                  %v374 = vld [vmem:[%s314 + $0x2b8] sm:%s307]
                  %375 = vst [vmem:[%s315 + $0x74] sm:%s307] %v374
                  %v376 = vld [vmem:[%s314 + $0x2d0] sm:%s307]
                  %377 = vst [vmem:[%s315 + $0x78] sm:%s307] %v376
                  %v378 = vld [vmem:[%s314 + $0x2e8] sm:%s307]
                  %379 = vst [vmem:[%s315 + $0x7c] sm:%s307] %v378
                $region55: #{run_with_weights.4} parent=42 // loop_footer
                  %s313 = sadd.s32 1, %s309
                $region56: #{run_with_weights.4} parent=42 // loop_footer_branch
                  %308 = sbr.rel target = $region52
                $region57: #{run_with_weights.4} parent=42 // loop_exit
                  _
              $region43: #{run_with_weights.4} parent=27 // pred_fallthru
                _
            $region28: #{run_with_weights.4} parent=23 // pred_fallthru
              _
            // Predicated region
            $region29: #{run_with_weights.4} parent=23 // pred_check
              _
            $region30: #{run_with_weights.4} parent=23 // pred_check_branch
              %221 = sbr.rel (0) target = $region32
            $region31: #{run_with_weights.4} parent=23 // pred_region
              %s223 = ssub.s32 16, 1
              loop: start=0, step=1, limit=1
              $region33: #{run_with_weights.4} parent=31 // loop_pre_header
                _
              $region34: #{run_with_weights.4} parent=31 // loop_header
                %s225 = sphi 0, %s229
                %p226 = scmp.ge.s32.totalorder %s225, 1
                %s230 = sphi %s215, %s215
                %s231 = sphi %s208, %s208
              $region35: #{run_with_weights.4} parent=31 // loop_header_branch
                %228 = sbr.rel (%p226) target = $region39
              $region36: #{run_with_weights.4} parent=31 // loop_body
                %v232 = vld [vmem:[%s230] sm:%s223]
                %233 = vst [vmem:[%s231] sm:%s223] %v232
                %v234 = vld [vmem:[%s230 + $0x18] sm:%s223]
                %235 = vst [vmem:[%s231 + $0x4] sm:%s223] %v234
                %v236 = vld [vmem:[%s230 + $0x30] sm:%s223]
                %237 = vst [vmem:[%s231 + $0x8] sm:%s223] %v236
                %v238 = vld [vmem:[%s230 + $0x48] sm:%s223]
                %239 = vst [vmem:[%s231 + $0xc] sm:%s223] %v238
                %v240 = vld [vmem:[%s230 + $0x60] sm:%s223]
                %241 = vst [vmem:[%s231 + $0x10] sm:%s223] %v240
                %v242 = vld [vmem:[%s230 + $0x78] sm:%s223]
                %243 = vst [vmem:[%s231 + $0x14] sm:%s223] %v242
                %v244 = vld [vmem:[%s230 + $0x90] sm:%s223]
                %245 = vst [vmem:[%s231 + $0x18] sm:%s223] %v244
                %v246 = vld [vmem:[%s230 + $0xa8] sm:%s223]
                %247 = vst [vmem:[%s231 + $0x1c] sm:%s223] %v246
                %v248 = vld [vmem:[%s230 + $0xc0] sm:%s223]
                %249 = vst [vmem:[%s231 + $0x20] sm:%s223] %v248
                %v250 = vld [vmem:[%s230 + $0xd8] sm:%s223]
                %251 = vst [vmem:[%s231 + $0x24] sm:%s223] %v250
                %v252 = vld [vmem:[%s230 + $0xf0] sm:%s223]
                %253 = vst [vmem:[%s231 + $0x28] sm:%s223] %v252
                %v254 = vld [vmem:[%s230 + $0x108] sm:%s223]
                %255 = vst [vmem:[%s231 + $0x2c] sm:%s223] %v254
                %v256 = vld [vmem:[%s230 + $0x120] sm:%s223]
                %257 = vst [vmem:[%s231 + $0x30] sm:%s223] %v256
                %v258 = vld [vmem:[%s230 + $0x138] sm:%s223]
                %259 = vst [vmem:[%s231 + $0x34] sm:%s223] %v258
                %v260 = vld [vmem:[%s230 + $0x150] sm:%s223]
                %261 = vst [vmem:[%s231 + $0x38] sm:%s223] %v260
                %v262 = vld [vmem:[%s230 + $0x168] sm:%s223]
                %263 = vst [vmem:[%s231 + $0x3c] sm:%s223] %v262
                %v264 = vld [vmem:[%s230 + $0x180] sm:%s223]
                %265 = vst [vmem:[%s231 + $0x40] sm:%s223] %v264
                %v266 = vld [vmem:[%s230 + $0x198] sm:%s223]
                %267 = vst [vmem:[%s231 + $0x44] sm:%s223] %v266
                %v268 = vld [vmem:[%s230 + $0x1b0] sm:%s223]
                %269 = vst [vmem:[%s231 + $0x48] sm:%s223] %v268
                %v270 = vld [vmem:[%s230 + $0x1c8] sm:%s223]
                %271 = vst [vmem:[%s231 + $0x4c] sm:%s223] %v270
                %v272 = vld [vmem:[%s230 + $0x1e0] sm:%s223]
                %273 = vst [vmem:[%s231 + $0x50] sm:%s223] %v272
                %v274 = vld [vmem:[%s230 + $0x1f8] sm:%s223]
                %275 = vst [vmem:[%s231 + $0x54] sm:%s223] %v274
                %v276 = vld [vmem:[%s230 + $0x210] sm:%s223]
                %277 = vst [vmem:[%s231 + $0x58] sm:%s223] %v276
                %v278 = vld [vmem:[%s230 + $0x228] sm:%s223]
                %279 = vst [vmem:[%s231 + $0x5c] sm:%s223] %v278
                %v280 = vld [vmem:[%s230 + $0x240] sm:%s223]
                %281 = vst [vmem:[%s231 + $0x60] sm:%s223] %v280
                %v282 = vld [vmem:[%s230 + $0x258] sm:%s223]
                %283 = vst [vmem:[%s231 + $0x64] sm:%s223] %v282
                %v284 = vld [vmem:[%s230 + $0x270] sm:%s223]
                %285 = vst [vmem:[%s231 + $0x68] sm:%s223] %v284
                %v286 = vld [vmem:[%s230 + $0x288] sm:%s223]
                %287 = vst [vmem:[%s231 + $0x6c] sm:%s223] %v286
                %v288 = vld [vmem:[%s230 + $0x2a0] sm:%s223]
                %289 = vst [vmem:[%s231 + $0x70] sm:%s223] %v288
                %v290 = vld [vmem:[%s230 + $0x2b8] sm:%s223]
                %291 = vst [vmem:[%s231 + $0x74] sm:%s223] %v290
                %v292 = vld [vmem:[%s230 + $0x2d0] sm:%s223]
                %293 = vst [vmem:[%s231 + $0x78] sm:%s223] %v292
                %v294 = vld [vmem:[%s230 + $0x2e8] sm:%s223]
                %295 = vst [vmem:[%s231 + $0x7c] sm:%s223] %v294
              $region37: #{run_with_weights.4} parent=31 // loop_footer
                %s229 = sadd.s32 1, %s225
              $region38: #{run_with_weights.4} parent=31 // loop_footer_branch
                %224 = sbr.rel target = $region34
              $region39: #{run_with_weights.4} parent=31 // loop_exit
                _
            $region32: #{run_with_weights.4} parent=23 // pred_fallthru
              _
          $region24: #{run_with_weights.4} parent=19 // pred_fallthru
            _
          %380 = vnop
        $region20: #{run_with_weights.4} parent=15 // pred_fallthru
          _
        // Predicated region
        $region58: #{run_with_weights.4} parent=15 // pred_check
          %p381 = pneg %p87
        $region59: #{run_with_weights.4} parent=15 // pred_check_branch
          %383 = sbr.rel (%p381) target = $region61
        $region60: #{run_with_weights.4} parent=15 // pred_region
          %s384 = sand.u32 %s77, 1
          %s385 = sand.u32 %s77, 1
          %s386 = smul.addr %s385, 128
          %s387 = scalar_lea.vmem [#allocation3], %s386
          %s388 = sadd.s32 %s22, 2
          %s389 = smul.addr %s21, 192
          %s390 = sadd.s32 %s388, %s389
          %s391 = smul.addr %s390, 4
          %s392 = scalar_lea.vmem %s1, %s391
          // Predicated region
          $region62: #{run_with_weights.4} parent=60 // pred_check
            _
          $region63: #{run_with_weights.4} parent=60 // pred_check_branch
            %394 = sbr.rel (0) target = $region65
          $region64: #{run_with_weights.4} parent=60 // pred_region
            // Predicated region
            $region66: #{run_with_weights.4} parent=64 // pred_check
              _
            $region67: #{run_with_weights.4} parent=64 // pred_check_branch
              %396 = sbr.rel target = $region69
            $region68: #{run_with_weights.4} parent=64 // pred_region
              // Predicated region
              $region81: #{run_with_weights.4} parent=68 // pred_check
                _
              $region82: #{run_with_weights.4} parent=68 // pred_check_branch
                %474 = sbr.rel (0) target = $region84
              $region83: #{run_with_weights.4} parent=68 // pred_region
                loop: start=0, step=1, limit=1
                $region85: #{run_with_weights.4} parent=83 // loop_pre_header
                  _
                $region86: #{run_with_weights.4} parent=83 // loop_header
                  %s476 = sphi 0, %s480
                  %p477 = scmp.ge.s32.totalorder %s476, 1
                  %s481 = sphi %s392, %s392
                  %s482 = sphi %s387, %s387
                $region87: #{run_with_weights.4} parent=83 // loop_header_branch
                  %479 = sbr.rel (%p477) target = $region91
                $region88: #{run_with_weights.4} parent=83 // loop_body
                  _
                $region89: #{run_with_weights.4} parent=83 // loop_footer
                  %s480 = sadd.s32 1, %s476
                $region90: #{run_with_weights.4} parent=83 // loop_footer_branch
                  %475 = sbr.rel target = $region86
                $region91: #{run_with_weights.4} parent=83 // loop_exit
                  _
                %s484 = ssub.s32 16, 1
                loop: start=0, step=1, limit=1
                $region92: #{run_with_weights.4} parent=83 // loop_pre_header
                  _
                $region93: #{run_with_weights.4} parent=83 // loop_header
                  %s486 = sphi 0, %s490
                  %p487 = scmp.ge.s32.totalorder %s486, 1
                  %s491 = sphi %s392, %s392
                  %s492 = sphi %s387, %s387
                $region94: #{run_with_weights.4} parent=83 // loop_header_branch
                  %489 = sbr.rel (%p487) target = $region98
                $region95: #{run_with_weights.4} parent=83 // loop_body
                  %v493 = vld [vmem:[%s491] sm:%s484]
                  %494 = vst [vmem:[%s492] sm:%s484] %v493
                  %v495 = vld [vmem:[%s491 + $0x18] sm:%s484]
                  %496 = vst [vmem:[%s492 + $0x4] sm:%s484] %v495
                  %v497 = vld [vmem:[%s491 + $0x30] sm:%s484]
                  %498 = vst [vmem:[%s492 + $0x8] sm:%s484] %v497
                  %v499 = vld [vmem:[%s491 + $0x48] sm:%s484]
                  %500 = vst [vmem:[%s492 + $0xc] sm:%s484] %v499
                  %v501 = vld [vmem:[%s491 + $0x60] sm:%s484]
                  %502 = vst [vmem:[%s492 + $0x10] sm:%s484] %v501
                  %v503 = vld [vmem:[%s491 + $0x78] sm:%s484]
                  %504 = vst [vmem:[%s492 + $0x14] sm:%s484] %v503
                  %v505 = vld [vmem:[%s491 + $0x90] sm:%s484]
                  %506 = vst [vmem:[%s492 + $0x18] sm:%s484] %v505
                  %v507 = vld [vmem:[%s491 + $0xa8] sm:%s484]
                  %508 = vst [vmem:[%s492 + $0x1c] sm:%s484] %v507
                  %v509 = vld [vmem:[%s491 + $0xc0] sm:%s484]
                  %510 = vst [vmem:[%s492 + $0x20] sm:%s484] %v509
                  %v511 = vld [vmem:[%s491 + $0xd8] sm:%s484]
                  %512 = vst [vmem:[%s492 + $0x24] sm:%s484] %v511
                  %v513 = vld [vmem:[%s491 + $0xf0] sm:%s484]
                  %514 = vst [vmem:[%s492 + $0x28] sm:%s484] %v513
                  %v515 = vld [vmem:[%s491 + $0x108] sm:%s484]
                  %516 = vst [vmem:[%s492 + $0x2c] sm:%s484] %v515
                  %v517 = vld [vmem:[%s491 + $0x120] sm:%s484]
                  %518 = vst [vmem:[%s492 + $0x30] sm:%s484] %v517
                  %v519 = vld [vmem:[%s491 + $0x138] sm:%s484]
                  %520 = vst [vmem:[%s492 + $0x34] sm:%s484] %v519
                  %v521 = vld [vmem:[%s491 + $0x150] sm:%s484]
                  %522 = vst [vmem:[%s492 + $0x38] sm:%s484] %v521
                  %v523 = vld [vmem:[%s491 + $0x168] sm:%s484]
                  %524 = vst [vmem:[%s492 + $0x3c] sm:%s484] %v523
                  %v525 = vld [vmem:[%s491 + $0x180] sm:%s484]
                  %526 = vst [vmem:[%s492 + $0x40] sm:%s484] %v525
                  %v527 = vld [vmem:[%s491 + $0x198] sm:%s484]
                  %528 = vst [vmem:[%s492 + $0x44] sm:%s484] %v527
                  %v529 = vld [vmem:[%s491 + $0x1b0] sm:%s484]
                  %530 = vst [vmem:[%s492 + $0x48] sm:%s484] %v529
                  %v531 = vld [vmem:[%s491 + $0x1c8] sm:%s484]
                  %532 = vst [vmem:[%s492 + $0x4c] sm:%s484] %v531
                  %v533 = vld [vmem:[%s491 + $0x1e0] sm:%s484]
                  %534 = vst [vmem:[%s492 + $0x50] sm:%s484] %v533
                  %v535 = vld [vmem:[%s491 + $0x1f8] sm:%s484]
                  %536 = vst [vmem:[%s492 + $0x54] sm:%s484] %v535
                  %v537 = vld [vmem:[%s491 + $0x210] sm:%s484]
                  %538 = vst [vmem:[%s492 + $0x58] sm:%s484] %v537
                  %v539 = vld [vmem:[%s491 + $0x228] sm:%s484]
                  %540 = vst [vmem:[%s492 + $0x5c] sm:%s484] %v539
                  %v541 = vld [vmem:[%s491 + $0x240] sm:%s484]
                  %542 = vst [vmem:[%s492 + $0x60] sm:%s484] %v541
                  %v543 = vld [vmem:[%s491 + $0x258] sm:%s484]
                  %544 = vst [vmem:[%s492 + $0x64] sm:%s484] %v543
                  %v545 = vld [vmem:[%s491 + $0x270] sm:%s484]
                  %546 = vst [vmem:[%s492 + $0x68] sm:%s484] %v545
                  %v547 = vld [vmem:[%s491 + $0x288] sm:%s484]
                  %548 = vst [vmem:[%s492 + $0x6c] sm:%s484] %v547
                  %v549 = vld [vmem:[%s491 + $0x2a0] sm:%s484]
                  %550 = vst [vmem:[%s492 + $0x70] sm:%s484] %v549
                  %v551 = vld [vmem:[%s491 + $0x2b8] sm:%s484]
                  %552 = vst [vmem:[%s492 + $0x74] sm:%s484] %v551
                  %v553 = vld [vmem:[%s491 + $0x2d0] sm:%s484]
                  %554 = vst [vmem:[%s492 + $0x78] sm:%s484] %v553
                  %v555 = vld [vmem:[%s491 + $0x2e8] sm:%s484]
                  %556 = vst [vmem:[%s492 + $0x7c] sm:%s484] %v555
                $region96: #{run_with_weights.4} parent=83 // loop_footer
                  %s490 = sadd.s32 1, %s486
                $region97: #{run_with_weights.4} parent=83 // loop_footer_branch
                  %485 = sbr.rel target = $region93
                $region98: #{run_with_weights.4} parent=83 // loop_exit
                  _
              $region84: #{run_with_weights.4} parent=68 // pred_fallthru
                _
            $region69: #{run_with_weights.4} parent=64 // pred_fallthru
              _
            // Predicated region
            $region70: #{run_with_weights.4} parent=64 // pred_check
              _
            $region71: #{run_with_weights.4} parent=64 // pred_check_branch
              %398 = sbr.rel (0) target = $region73
            $region72: #{run_with_weights.4} parent=64 // pred_region
              %s400 = ssub.s32 16, 1
              loop: start=0, step=1, limit=1
              $region74: #{run_with_weights.4} parent=72 // loop_pre_header
                _
              $region75: #{run_with_weights.4} parent=72 // loop_header
                %s402 = sphi 0, %s406
                %p403 = scmp.ge.s32.totalorder %s402, 1
                %s407 = sphi %s392, %s392
                %s408 = sphi %s387, %s387
              $region76: #{run_with_weights.4} parent=72 // loop_header_branch
                %405 = sbr.rel (%p403) target = $region80
              $region77: #{run_with_weights.4} parent=72 // loop_body
                %v409 = vld [vmem:[%s407] sm:%s400]
                %410 = vst [vmem:[%s408] sm:%s400] %v409
                %v411 = vld [vmem:[%s407 + $0x18] sm:%s400]
                %412 = vst [vmem:[%s408 + $0x4] sm:%s400] %v411
                %v413 = vld [vmem:[%s407 + $0x30] sm:%s400]
                %414 = vst [vmem:[%s408 + $0x8] sm:%s400] %v413
                %v415 = vld [vmem:[%s407 + $0x48] sm:%s400]
                %416 = vst [vmem:[%s408 + $0xc] sm:%s400] %v415
                %v417 = vld [vmem:[%s407 + $0x60] sm:%s400]
                %418 = vst [vmem:[%s408 + $0x10] sm:%s400] %v417
                %v419 = vld [vmem:[%s407 + $0x78] sm:%s400]
                %420 = vst [vmem:[%s408 + $0x14] sm:%s400] %v419
                %v421 = vld [vmem:[%s407 + $0x90] sm:%s400]
                %422 = vst [vmem:[%s408 + $0x18] sm:%s400] %v421
                %v423 = vld [vmem:[%s407 + $0xa8] sm:%s400]
                %424 = vst [vmem:[%s408 + $0x1c] sm:%s400] %v423
                %v425 = vld [vmem:[%s407 + $0xc0] sm:%s400]
                %426 = vst [vmem:[%s408 + $0x20] sm:%s400] %v425
                %v427 = vld [vmem:[%s407 + $0xd8] sm:%s400]
                %428 = vst [vmem:[%s408 + $0x24] sm:%s400] %v427
                %v429 = vld [vmem:[%s407 + $0xf0] sm:%s400]
                %430 = vst [vmem:[%s408 + $0x28] sm:%s400] %v429
                %v431 = vld [vmem:[%s407 + $0x108] sm:%s400]
                %432 = vst [vmem:[%s408 + $0x2c] sm:%s400] %v431
                %v433 = vld [vmem:[%s407 + $0x120] sm:%s400]
                %434 = vst [vmem:[%s408 + $0x30] sm:%s400] %v433
                %v435 = vld [vmem:[%s407 + $0x138] sm:%s400]
                %436 = vst [vmem:[%s408 + $0x34] sm:%s400] %v435
                %v437 = vld [vmem:[%s407 + $0x150] sm:%s400]
                %438 = vst [vmem:[%s408 + $0x38] sm:%s400] %v437
                %v439 = vld [vmem:[%s407 + $0x168] sm:%s400]
                %440 = vst [vmem:[%s408 + $0x3c] sm:%s400] %v439
                %v441 = vld [vmem:[%s407 + $0x180] sm:%s400]
                %442 = vst [vmem:[%s408 + $0x40] sm:%s400] %v441
                %v443 = vld [vmem:[%s407 + $0x198] sm:%s400]
                %444 = vst [vmem:[%s408 + $0x44] sm:%s400] %v443
                %v445 = vld [vmem:[%s407 + $0x1b0] sm:%s400]
                %446 = vst [vmem:[%s408 + $0x48] sm:%s400] %v445
                %v447 = vld [vmem:[%s407 + $0x1c8] sm:%s400]
                %448 = vst [vmem:[%s408 + $0x4c] sm:%s400] %v447
                %v449 = vld [vmem:[%s407 + $0x1e0] sm:%s400]
                %450 = vst [vmem:[%s408 + $0x50] sm:%s400] %v449
                %v451 = vld [vmem:[%s407 + $0x1f8] sm:%s400]
                %452 = vst [vmem:[%s408 + $0x54] sm:%s400] %v451
                %v453 = vld [vmem:[%s407 + $0x210] sm:%s400]
                %454 = vst [vmem:[%s408 + $0x58] sm:%s400] %v453
                %v455 = vld [vmem:[%s407 + $0x228] sm:%s400]
                %456 = vst [vmem:[%s408 + $0x5c] sm:%s400] %v455
                %v457 = vld [vmem:[%s407 + $0x240] sm:%s400]
                %458 = vst [vmem:[%s408 + $0x60] sm:%s400] %v457
                %v459 = vld [vmem:[%s407 + $0x258] sm:%s400]
                %460 = vst [vmem:[%s408 + $0x64] sm:%s400] %v459
                %v461 = vld [vmem:[%s407 + $0x270] sm:%s400]
                %462 = vst [vmem:[%s408 + $0x68] sm:%s400] %v461
                %v463 = vld [vmem:[%s407 + $0x288] sm:%s400]
                %464 = vst [vmem:[%s408 + $0x6c] sm:%s400] %v463
                %v465 = vld [vmem:[%s407 + $0x2a0] sm:%s400]
                %466 = vst [vmem:[%s408 + $0x70] sm:%s400] %v465
                %v467 = vld [vmem:[%s407 + $0x2b8] sm:%s400]
                %468 = vst [vmem:[%s408 + $0x74] sm:%s400] %v467
                %v469 = vld [vmem:[%s407 + $0x2d0] sm:%s400]
                %470 = vst [vmem:[%s408 + $0x78] sm:%s400] %v469
                %v471 = vld [vmem:[%s407 + $0x2e8] sm:%s400]
                %472 = vst [vmem:[%s408 + $0x7c] sm:%s400] %v471
              $region78: #{run_with_weights.4} parent=72 // loop_footer
                %s406 = sadd.s32 1, %s402
              $region79: #{run_with_weights.4} parent=72 // loop_footer_branch
                %401 = sbr.rel target = $region75
              $region80: #{run_with_weights.4} parent=72 // loop_exit
                _
            $region73: #{run_with_weights.4} parent=64 // pred_fallthru
              _
          $region65: #{run_with_weights.4} parent=60 // pred_fallthru
            _
          %557 = vnop
        $region61: #{run_with_weights.4} parent=15 // pred_fallthru
          _
        // Predicated region
        $region99: #{run_with_weights.4} parent=15 // pred_check
          %p558 = pneg %p117
        $region100: #{run_with_weights.4} parent=15 // pred_check_branch
          %560 = sbr.rel (%p558) target = $region102
        $region101: #{run_with_weights.4} parent=15 // pred_region
          %s561 = sand.u32 %s107, 1
          %s562 = sand.u32 %s107, 1
          %s563 = smul.addr %s562, 128
          %s564 = scalar_lea.vmem [#allocation4], %s563
          %s565 = sadd.s32 %s22, 4
          %s566 = smul.addr %s21, 192
          %s567 = sadd.s32 %s565, %s566
          %s568 = smul.addr %s567, 4
          %s569 = scalar_lea.vmem %s2, %s568
          // Predicated region
          $region103: #{run_with_weights.4} parent=101 // pred_check
            _
          $region104: #{run_with_weights.4} parent=101 // pred_check_branch
            %571 = sbr.rel (0) target = $region106
          $region105: #{run_with_weights.4} parent=101 // pred_region
            // Predicated region
            $region107: #{run_with_weights.4} parent=105 // pred_check
              _
            $region108: #{run_with_weights.4} parent=105 // pred_check_branch
              %573 = sbr.rel target = $region110
            $region109: #{run_with_weights.4} parent=105 // pred_region
              // Predicated region
              $region122: #{run_with_weights.4} parent=109 // pred_check
                _
              $region123: #{run_with_weights.4} parent=109 // pred_check_branch
                %651 = sbr.rel (0) target = $region125
              $region124: #{run_with_weights.4} parent=109 // pred_region
                loop: start=0, step=1, limit=1
                $region126: #{run_with_weights.4} parent=124 // loop_pre_header
                  _
                $region127: #{run_with_weights.4} parent=124 // loop_header
                  %s653 = sphi 0, %s657
                  %p654 = scmp.ge.s32.totalorder %s653, 1
                  %s658 = sphi %s569, %s569
                  %s659 = sphi %s564, %s564
                $region128: #{run_with_weights.4} parent=124 // loop_header_branch
                  %656 = sbr.rel (%p654) target = $region132
                $region129: #{run_with_weights.4} parent=124 // loop_body
                  _
                $region130: #{run_with_weights.4} parent=124 // loop_footer
                  %s657 = sadd.s32 1, %s653
                $region131: #{run_with_weights.4} parent=124 // loop_footer_branch
                  %652 = sbr.rel target = $region127
                $region132: #{run_with_weights.4} parent=124 // loop_exit
                  _
                %s661 = ssub.s32 16, 1
                loop: start=0, step=1, limit=1
                $region133: #{run_with_weights.4} parent=124 // loop_pre_header
                  _
                $region134: #{run_with_weights.4} parent=124 // loop_header
                  %s663 = sphi 0, %s667
                  %p664 = scmp.ge.s32.totalorder %s663, 1
                  %s668 = sphi %s569, %s569
                  %s669 = sphi %s564, %s564
                $region135: #{run_with_weights.4} parent=124 // loop_header_branch
                  %666 = sbr.rel (%p664) target = $region139
                $region136: #{run_with_weights.4} parent=124 // loop_body
                  %v670 = vld [vmem:[%s668] sm:%s661]
                  %671 = vst [vmem:[%s669] sm:%s661] %v670
                  %v672 = vld [vmem:[%s668 + $0x18] sm:%s661]
                  %673 = vst [vmem:[%s669 + $0x4] sm:%s661] %v672
                  %v674 = vld [vmem:[%s668 + $0x30] sm:%s661]
                  %675 = vst [vmem:[%s669 + $0x8] sm:%s661] %v674
                  %v676 = vld [vmem:[%s668 + $0x48] sm:%s661]
                  %677 = vst [vmem:[%s669 + $0xc] sm:%s661] %v676
                  %v678 = vld [vmem:[%s668 + $0x60] sm:%s661]
                  %679 = vst [vmem:[%s669 + $0x10] sm:%s661] %v678
                  %v680 = vld [vmem:[%s668 + $0x78] sm:%s661]
                  %681 = vst [vmem:[%s669 + $0x14] sm:%s661] %v680
                  %v682 = vld [vmem:[%s668 + $0x90] sm:%s661]
                  %683 = vst [vmem:[%s669 + $0x18] sm:%s661] %v682
                  %v684 = vld [vmem:[%s668 + $0xa8] sm:%s661]
                  %685 = vst [vmem:[%s669 + $0x1c] sm:%s661] %v684
                  %v686 = vld [vmem:[%s668 + $0xc0] sm:%s661]
                  %687 = vst [vmem:[%s669 + $0x20] sm:%s661] %v686
                  %v688 = vld [vmem:[%s668 + $0xd8] sm:%s661]
                  %689 = vst [vmem:[%s669 + $0x24] sm:%s661] %v688
                  %v690 = vld [vmem:[%s668 + $0xf0] sm:%s661]
                  %691 = vst [vmem:[%s669 + $0x28] sm:%s661] %v690
                  %v692 = vld [vmem:[%s668 + $0x108] sm:%s661]
                  %693 = vst [vmem:[%s669 + $0x2c] sm:%s661] %v692
                  %v694 = vld [vmem:[%s668 + $0x120] sm:%s661]
                  %695 = vst [vmem:[%s669 + $0x30] sm:%s661] %v694
                  %v696 = vld [vmem:[%s668 + $0x138] sm:%s661]
                  %697 = vst [vmem:[%s669 + $0x34] sm:%s661] %v696
                  %v698 = vld [vmem:[%s668 + $0x150] sm:%s661]
                  %699 = vst [vmem:[%s669 + $0x38] sm:%s661] %v698
                  %v700 = vld [vmem:[%s668 + $0x168] sm:%s661]
                  %701 = vst [vmem:[%s669 + $0x3c] sm:%s661] %v700
                  %v702 = vld [vmem:[%s668 + $0x180] sm:%s661]
                  %703 = vst [vmem:[%s669 + $0x40] sm:%s661] %v702
                  %v704 = vld [vmem:[%s668 + $0x198] sm:%s661]
                  %705 = vst [vmem:[%s669 + $0x44] sm:%s661] %v704
                  %v706 = vld [vmem:[%s668 + $0x1b0] sm:%s661]
                  %707 = vst [vmem:[%s669 + $0x48] sm:%s661] %v706
                  %v708 = vld [vmem:[%s668 + $0x1c8] sm:%s661]
                  %709 = vst [vmem:[%s669 + $0x4c] sm:%s661] %v708
                  %v710 = vld [vmem:[%s668 + $0x1e0] sm:%s661]
                  %711 = vst [vmem:[%s669 + $0x50] sm:%s661] %v710
                  %v712 = vld [vmem:[%s668 + $0x1f8] sm:%s661]
                  %713 = vst [vmem:[%s669 + $0x54] sm:%s661] %v712
                  %v714 = vld [vmem:[%s668 + $0x210] sm:%s661]
                  %715 = vst [vmem:[%s669 + $0x58] sm:%s661] %v714
                  %v716 = vld [vmem:[%s668 + $0x228] sm:%s661]
                  %717 = vst [vmem:[%s669 + $0x5c] sm:%s661] %v716
                  %v718 = vld [vmem:[%s668 + $0x240] sm:%s661]
                  %719 = vst [vmem:[%s669 + $0x60] sm:%s661] %v718
                  %v720 = vld [vmem:[%s668 + $0x258] sm:%s661]
                  %721 = vst [vmem:[%s669 + $0x64] sm:%s661] %v720
                  %v722 = vld [vmem:[%s668 + $0x270] sm:%s661]
                  %723 = vst [vmem:[%s669 + $0x68] sm:%s661] %v722
                  %v724 = vld [vmem:[%s668 + $0x288] sm:%s661]
                  %725 = vst [vmem:[%s669 + $0x6c] sm:%s661] %v724
                  %v726 = vld [vmem:[%s668 + $0x2a0] sm:%s661]
                  %727 = vst [vmem:[%s669 + $0x70] sm:%s661] %v726
                  %v728 = vld [vmem:[%s668 + $0x2b8] sm:%s661]
                  %729 = vst [vmem:[%s669 + $0x74] sm:%s661] %v728
                  %v730 = vld [vmem:[%s668 + $0x2d0] sm:%s661]
                  %731 = vst [vmem:[%s669 + $0x78] sm:%s661] %v730
                  %v732 = vld [vmem:[%s668 + $0x2e8] sm:%s661]
                  %733 = vst [vmem:[%s669 + $0x7c] sm:%s661] %v732
                $region137: #{run_with_weights.4} parent=124 // loop_footer
                  %s667 = sadd.s32 1, %s663
                $region138: #{run_with_weights.4} parent=124 // loop_footer_branch
                  %662 = sbr.rel target = $region134
                $region139: #{run_with_weights.4} parent=124 // loop_exit
                  _
              $region125: #{run_with_weights.4} parent=109 // pred_fallthru
                _
            $region110: #{run_with_weights.4} parent=105 // pred_fallthru
              _
            // Predicated region
            $region111: #{run_with_weights.4} parent=105 // pred_check
              _
            $region112: #{run_with_weights.4} parent=105 // pred_check_branch
              %575 = sbr.rel (0) target = $region114
            $region113: #{run_with_weights.4} parent=105 // pred_region
              %s577 = ssub.s32 16, 1
              loop: start=0, step=1, limit=1
              $region115: #{run_with_weights.4} parent=113 // loop_pre_header
                _
              $region116: #{run_with_weights.4} parent=113 // loop_header
                %s579 = sphi 0, %s583
                %p580 = scmp.ge.s32.totalorder %s579, 1
                %s584 = sphi %s569, %s569
                %s585 = sphi %s564, %s564
              $region117: #{run_with_weights.4} parent=113 // loop_header_branch
                %582 = sbr.rel (%p580) target = $region121
              $region118: #{run_with_weights.4} parent=113 // loop_body
                %v586 = vld [vmem:[%s584] sm:%s577]
                %587 = vst [vmem:[%s585] sm:%s577] %v586
                %v588 = vld [vmem:[%s584 + $0x18] sm:%s577]
                %589 = vst [vmem:[%s585 + $0x4] sm:%s577] %v588
                %v590 = vld [vmem:[%s584 + $0x30] sm:%s577]
                %591 = vst [vmem:[%s585 + $0x8] sm:%s577] %v590
                %v592 = vld [vmem:[%s584 + $0x48] sm:%s577]
                %593 = vst [vmem:[%s585 + $0xc] sm:%s577] %v592
                %v594 = vld [vmem:[%s584 + $0x60] sm:%s577]
                %595 = vst [vmem:[%s585 + $0x10] sm:%s577] %v594
                %v596 = vld [vmem:[%s584 + $0x78] sm:%s577]
                %597 = vst [vmem:[%s585 + $0x14] sm:%s577] %v596
                %v598 = vld [vmem:[%s584 + $0x90] sm:%s577]
                %599 = vst [vmem:[%s585 + $0x18] sm:%s577] %v598
                %v600 = vld [vmem:[%s584 + $0xa8] sm:%s577]
                %601 = vst [vmem:[%s585 + $0x1c] sm:%s577] %v600
                %v602 = vld [vmem:[%s584 + $0xc0] sm:%s577]
                %603 = vst [vmem:[%s585 + $0x20] sm:%s577] %v602
                %v604 = vld [vmem:[%s584 + $0xd8] sm:%s577]
                %605 = vst [vmem:[%s585 + $0x24] sm:%s577] %v604
                %v606 = vld [vmem:[%s584 + $0xf0] sm:%s577]
                %607 = vst [vmem:[%s585 + $0x28] sm:%s577] %v606
                %v608 = vld [vmem:[%s584 + $0x108] sm:%s577]
                %609 = vst [vmem:[%s585 + $0x2c] sm:%s577] %v608
                %v610 = vld [vmem:[%s584 + $0x120] sm:%s577]
                %611 = vst [vmem:[%s585 + $0x30] sm:%s577] %v610
                %v612 = vld [vmem:[%s584 + $0x138] sm:%s577]
                %613 = vst [vmem:[%s585 + $0x34] sm:%s577] %v612
                %v614 = vld [vmem:[%s584 + $0x150] sm:%s577]
                %615 = vst [vmem:[%s585 + $0x38] sm:%s577] %v614
                %v616 = vld [vmem:[%s584 + $0x168] sm:%s577]
                %617 = vst [vmem:[%s585 + $0x3c] sm:%s577] %v616
                %v618 = vld [vmem:[%s584 + $0x180] sm:%s577]
                %619 = vst [vmem:[%s585 + $0x40] sm:%s577] %v618
                %v620 = vld [vmem:[%s584 + $0x198] sm:%s577]
                %621 = vst [vmem:[%s585 + $0x44] sm:%s577] %v620
                %v622 = vld [vmem:[%s584 + $0x1b0] sm:%s577]
                %623 = vst [vmem:[%s585 + $0x48] sm:%s577] %v622
                %v624 = vld [vmem:[%s584 + $0x1c8] sm:%s577]
                %625 = vst [vmem:[%s585 + $0x4c] sm:%s577] %v624
                %v626 = vld [vmem:[%s584 + $0x1e0] sm:%s577]
                %627 = vst [vmem:[%s585 + $0x50] sm:%s577] %v626
                %v628 = vld [vmem:[%s584 + $0x1f8] sm:%s577]
                %629 = vst [vmem:[%s585 + $0x54] sm:%s577] %v628
                %v630 = vld [vmem:[%s584 + $0x210] sm:%s577]
                %631 = vst [vmem:[%s585 + $0x58] sm:%s577] %v630
                %v632 = vld [vmem:[%s584 + $0x228] sm:%s577]
                %633 = vst [vmem:[%s585 + $0x5c] sm:%s577] %v632
                %v634 = vld [vmem:[%s584 + $0x240] sm:%s577]
                %635 = vst [vmem:[%s585 + $0x60] sm:%s577] %v634
                %v636 = vld [vmem:[%s584 + $0x258] sm:%s577]
                %637 = vst [vmem:[%s585 + $0x64] sm:%s577] %v636
                %v638 = vld [vmem:[%s584 + $0x270] sm:%s577]
                %639 = vst [vmem:[%s585 + $0x68] sm:%s577] %v638
                %v640 = vld [vmem:[%s584 + $0x288] sm:%s577]
                %641 = vst [vmem:[%s585 + $0x6c] sm:%s577] %v640
                %v642 = vld [vmem:[%s584 + $0x2a0] sm:%s577]
                %643 = vst [vmem:[%s585 + $0x70] sm:%s577] %v642
                %v644 = vld [vmem:[%s584 + $0x2b8] sm:%s577]
                %645 = vst [vmem:[%s585 + $0x74] sm:%s577] %v644
                %v646 = vld [vmem:[%s584 + $0x2d0] sm:%s577]
                %647 = vst [vmem:[%s585 + $0x78] sm:%s577] %v646
                %v648 = vld [vmem:[%s584 + $0x2e8] sm:%s577]
                %649 = vst [vmem:[%s585 + $0x7c] sm:%s577] %v648
              $region119: #{run_with_weights.4} parent=113 // loop_footer
                %s583 = sadd.s32 1, %s579
              $region120: #{run_with_weights.4} parent=113 // loop_footer_branch
                %578 = sbr.rel target = $region116
              $region121: #{run_with_weights.4} parent=113 // loop_exit
                _
            $region114: #{run_with_weights.4} parent=105 // pred_fallthru
              _
          $region106: #{run_with_weights.4} parent=101 // pred_fallthru
            _
          %734 = vnop
        $region102: #{run_with_weights.4} parent=15 // pred_fallthru
          _
      $region16: #{run_with_weights.4} parent=5 // pred_fallthru
        _
      %p735 = scmp.le.s32.totalorder 1, %s14
      %p736 = scmp.lt.s32.totalorder %s14, 5
      %p737 = pnand %p735, %p736
      %p738 = pneg %p737
      // Predicated region
      $region140: #{run_with_weights.4} parent=5 // pred_check
        _
      $region141: #{run_with_weights.4} parent=5 // pred_check_branch
        %740 = sbr.rel (%p737) target = $region143
      $region142: #{run_with_weights.4} parent=5 // pred_region
        %s741 = ssub.s32 %s14, 1
        %s742 = sand.u32 %s50, 1
        %s743 = sand.u32 %s50, 1
        %s744 = smul.addr %s743, 128
        %s745 = scalar_lea.vmem [#allocation2], %s744
        // Predicated region
        $region144: #{run_with_weights.4} parent=142 // pred_check
          %p746 = pneg %p63
        $region145: #{run_with_weights.4} parent=142 // pred_check_branch
          %748 = sbr.rel (%p746) target = $region147
        $region146: #{run_with_weights.4} parent=142 // pred_region
          _
        $region147: #{run_with_weights.4} parent=142 // pred_fallthru
          _
        %s749 = sand.u32 %s80, 1
        %s750 = sand.u32 %s80, 1
        %s751 = smul.addr %s750, 128
        %s752 = scalar_lea.vmem [#allocation3], %s751
        // Predicated region
        $region148: #{run_with_weights.4} parent=142 // pred_check
          %p753 = pneg %p93
        $region149: #{run_with_weights.4} parent=142 // pred_check_branch
          %755 = sbr.rel (%p753) target = $region151
        $region150: #{run_with_weights.4} parent=142 // pred_region
          _
        $region151: #{run_with_weights.4} parent=142 // pred_fallthru
          _
        %s756 = sand.u32 %s110, 1
        %s757 = sand.u32 %s110, 1
        %s758 = smul.addr %s757, 128
        %s759 = scalar_lea.vmem [#allocation4], %s758
        // Predicated region
        $region152: #{run_with_weights.4} parent=142 // pred_check
          %p760 = pneg %p123
        $region153: #{run_with_weights.4} parent=142 // pred_check_branch
          %762 = sbr.rel (%p760) target = $region155
        $region154: #{run_with_weights.4} parent=142 // pred_region
          _
        $region155: #{run_with_weights.4} parent=142 // pred_fallthru
          _
        %s763 = sand.u32 %s50, 1
        %s764 = sand.u32 %s50, 1
        %s765 = smul.addr %s764, 128
        %s766 = scalar_lea.vmem [#allocation2], %s765
        %p767 = pneg %p63
        %p768 = pneg %p60
        %s769 = sand.u32 %s80, 1
        %s770 = sand.u32 %s80, 1
        %s771 = smul.addr %s770, 128
        %s772 = scalar_lea.vmem [#allocation3], %s771
        %p773 = pneg %p93
        %p774 = pneg %p90
        %s775 = sand.u32 %s110, 1
        %s776 = sand.u32 %s110, 1
        %s777 = smul.addr %s776, 128
        %s778 = scalar_lea.vmem [#allocation4], %s777
        %p779 = pneg %p123
        %p780 = pneg %p120
        %p781 = pneg %p153
        %p782 = pneg %p150
        %s783 = sand.u32 %s140, 1
        %s784 = sand.u32 %s140, 1
        %s785 = smul.addr %s784, 128
        %s786 = scalar_lea.vmem [#allocation5], %s785
        %p787 = pneg %p183
        %p788 = pneg %p180
        %s789 = sand.u32 %s170, 1
        %s790 = scalar_lea.sflag [#allocation7], %s789
        %s791 = sand.u32 %s170, 1
        %s792 = smul.addr %s791, 512
        %s793 = scalar_lea.vmem [#allocation6], %s792
        %s794 = smul.u32 32, %s26
        %s795 = sadd.s32 %s25, 2
        %s796 = sadd.s32 %s25, 4
        %s797 = smul.u32 32, %s26
        %s798 = smul.u32 32, %s26
        %v799 = vld [vmem:[%s745] sm:$0xf]
        %v800 = vld [vmem:[%s745 + $0x4] sm:$0xf]
        %v801 = vld [vmem:[%s745 + $0x8] sm:$0xf]
        %v802 = vld [vmem:[%s745 + $0xc] sm:$0xf]
        %v803 = vld [vmem:[%s745 + $0x10] sm:$0xf]
        %v804 = vld [vmem:[%s745 + $0x14] sm:$0xf]
        %v805 = vld [vmem:[%s745 + $0x18] sm:$0xf]
        %v806 = vld [vmem:[%s745 + $0x1c] sm:$0xf]
        %v807 = vld [vmem:[%s745 + $0x20] sm:$0xf]
        %v808 = vld [vmem:[%s745 + $0x24] sm:$0xf]
        %v809 = vld [vmem:[%s745 + $0x28] sm:$0xf]
        %v810 = vld [vmem:[%s745 + $0x2c] sm:$0xf]
        %v811 = vld [vmem:[%s745 + $0x30] sm:$0xf]
        %v812 = vld [vmem:[%s745 + $0x34] sm:$0xf]
        %v813 = vld [vmem:[%s745 + $0x38] sm:$0xf]
        %v814 = vld [vmem:[%s745 + $0x3c] sm:$0xf]
        %v815 = vld [vmem:[%s745 + $0x40] sm:$0xf]
        %v816 = vld [vmem:[%s745 + $0x44] sm:$0xf]
        %v817 = vld [vmem:[%s745 + $0x48] sm:$0xf]
        %v818 = vld [vmem:[%s745 + $0x4c] sm:$0xf]
        %v819 = vld [vmem:[%s745 + $0x50] sm:$0xf]
        %v820 = vld [vmem:[%s745 + $0x54] sm:$0xf]
        %v821 = vld [vmem:[%s745 + $0x58] sm:$0xf]
        %v822 = vld [vmem:[%s745 + $0x5c] sm:$0xf]
        %v823 = vld [vmem:[%s745 + $0x60] sm:$0xf]
        %v824 = vld [vmem:[%s745 + $0x64] sm:$0xf]
        %v825 = vld [vmem:[%s745 + $0x68] sm:$0xf]
        %v826 = vld [vmem:[%s745 + $0x6c] sm:$0xf]
        %v827 = vld [vmem:[%s745 + $0x70] sm:$0xf]
        %v828 = vld [vmem:[%s745 + $0x74] sm:$0xf]
        %v829 = vld [vmem:[%s745 + $0x78] sm:$0xf]
        %v830 = vld [vmem:[%s745 + $0x7c] sm:$0xf]
        %v831 = vld [vmem:[%s752] sm:$0xf]
        %v832 = vld [vmem:[%s752 + $0x4] sm:$0xf]
        %v833 = vld [vmem:[%s752 + $0x8] sm:$0xf]
        %v834 = vld [vmem:[%s752 + $0xc] sm:$0xf]
        %v835 = vld [vmem:[%s752 + $0x10] sm:$0xf]
        %v836 = vld [vmem:[%s752 + $0x14] sm:$0xf]
        %v837 = vld [vmem:[%s752 + $0x18] sm:$0xf]
        %v838 = vld [vmem:[%s752 + $0x1c] sm:$0xf]
        %v839 = vld [vmem:[%s752 + $0x20] sm:$0xf]
        %v840 = vld [vmem:[%s752 + $0x24] sm:$0xf]
        %v841 = vld [vmem:[%s752 + $0x28] sm:$0xf]
        %v842 = vld [vmem:[%s752 + $0x2c] sm:$0xf]
        %v843 = vld [vmem:[%s752 + $0x30] sm:$0xf]
        %v844 = vld [vmem:[%s752 + $0x34] sm:$0xf]
        %v845 = vld [vmem:[%s752 + $0x38] sm:$0xf]
        %v846 = vld [vmem:[%s752 + $0x3c] sm:$0xf]
        %v847 = vld [vmem:[%s752 + $0x40] sm:$0xf]
        %v848 = vld [vmem:[%s752 + $0x44] sm:$0xf]
        %v849 = vld [vmem:[%s752 + $0x48] sm:$0xf]
        %v850 = vld [vmem:[%s752 + $0x4c] sm:$0xf]
        %v851 = vld [vmem:[%s752 + $0x50] sm:$0xf]
        %v852 = vld [vmem:[%s752 + $0x54] sm:$0xf]
        %v853 = vld [vmem:[%s752 + $0x58] sm:$0xf]
        %v854 = vld [vmem:[%s752 + $0x5c] sm:$0xf]
        %v855 = vld [vmem:[%s752 + $0x60] sm:$0xf]
        %v856 = vld [vmem:[%s752 + $0x64] sm:$0xf]
        %v857 = vld [vmem:[%s752 + $0x68] sm:$0xf]
        %v858 = vld [vmem:[%s752 + $0x6c] sm:$0xf]
        %v859 = vld [vmem:[%s752 + $0x70] sm:$0xf]
        %v860 = vld [vmem:[%s752 + $0x74] sm:$0xf]
        %v861 = vld [vmem:[%s752 + $0x78] sm:$0xf]
        %v862 = vld [vmem:[%s752 + $0x7c] sm:$0xf]
        %v895 = vunpack.c.l.b16 %v799
        %v896 = vunpack.c.l.b16 %v800
        %v897 = vunpack.c.l.b16 %v801
        %v898 = vunpack.c.l.b16 %v802
        %v899 = vunpack.c.l.b16 %v803
        %v900 = vunpack.c.l.b16 %v804
        %v901 = vunpack.c.l.b16 %v805
        %v902 = vunpack.c.l.b16 %v806
        %v903 = vunpack.c.l.b16 %v807
        %v904 = vunpack.c.l.b16 %v808
        %v905 = vunpack.c.l.b16 %v809
        %v906 = vunpack.c.l.b16 %v810
        %v907 = vunpack.c.l.b16 %v811
        %v908 = vunpack.c.l.b16 %v812
        %v909 = vunpack.c.l.b16 %v813
        %v910 = vunpack.c.l.b16 %v814
        %v911 = vunpack.c.l.b16 %v815
        %v912 = vunpack.c.l.b16 %v816
        %v913 = vunpack.c.l.b16 %v817
        %v914 = vunpack.c.l.b16 %v818
        %v915 = vunpack.c.l.b16 %v819
        %v916 = vunpack.c.l.b16 %v820
        %v917 = vunpack.c.l.b16 %v821
        %v918 = vunpack.c.l.b16 %v822
        %v919 = vunpack.c.l.b16 %v823
        %v920 = vunpack.c.l.b16 %v824
        %v921 = vunpack.c.l.b16 %v825
        %v922 = vunpack.c.l.b16 %v826
        %v923 = vunpack.c.l.b16 %v827
        %v924 = vunpack.c.l.b16 %v828
        %v925 = vunpack.c.l.b16 %v829
        %v926 = vunpack.c.l.b16 %v830
        %v927 = vpack.c.b16 %v896, %v895
        %v928 = vpack.c.b16 %v898, %v897
        %v929 = vpack.c.b16 %v900, %v899
        %v930 = vpack.c.b16 %v902, %v901
        %v931 = vpack.c.b16 %v904, %v903
        %v932 = vpack.c.b16 %v906, %v905
        %v933 = vpack.c.b16 %v908, %v907
        %v934 = vpack.c.b16 %v910, %v909
        %v935 = vpack.c.b16 %v912, %v911
        %v936 = vpack.c.b16 %v914, %v913
        %v937 = vpack.c.b16 %v916, %v915
        %v938 = vpack.c.b16 %v918, %v917
        %v939 = vpack.c.b16 %v920, %v919
        %v940 = vpack.c.b16 %v922, %v921
        %v941 = vpack.c.b16 %v924, %v923
        %v942 = vpack.c.b16 %v926, %v925
        %v991 = vunpack.c.l.b16 %v831
        %v992 = vunpack.c.l.b16 %v832
        %v993 = vunpack.c.l.b16 %v833
        %v994 = vunpack.c.l.b16 %v834
        %v995 = vunpack.c.l.b16 %v835
        %v996 = vunpack.c.l.b16 %v836
        %v997 = vunpack.c.l.b16 %v837
        %v998 = vunpack.c.l.b16 %v838
        %v999 = vunpack.c.l.b16 %v839
        %v1000 = vunpack.c.l.b16 %v840
        %v1001 = vunpack.c.l.b16 %v841
        %v1002 = vunpack.c.l.b16 %v842
        %v1003 = vunpack.c.l.b16 %v843
        %v1004 = vunpack.c.l.b16 %v844
        %v1005 = vunpack.c.l.b16 %v845
        %v1006 = vunpack.c.l.b16 %v846
        %v1007 = vunpack.c.l.b16 %v847
        %v1008 = vunpack.c.l.b16 %v848
        %v1009 = vunpack.c.l.b16 %v849
        %v1010 = vunpack.c.l.b16 %v850
        %v1011 = vunpack.c.l.b16 %v851
        %v1012 = vunpack.c.l.b16 %v852
        %v1013 = vunpack.c.l.b16 %v853
        %v1014 = vunpack.c.l.b16 %v854
        %v1015 = vunpack.c.l.b16 %v855
        %v1016 = vunpack.c.l.b16 %v856
        %v1017 = vunpack.c.l.b16 %v857
        %v1018 = vunpack.c.l.b16 %v858
        %v1019 = vunpack.c.l.b16 %v859
        %v1020 = vunpack.c.l.b16 %v860
        %v1021 = vunpack.c.l.b16 %v861
        %v1022 = vunpack.c.l.b16 %v862
        %v1023 = vpack.c.b16 %v992, %v991
        %v1024 = vpack.c.b16 %v994, %v993
        %v1025 = vpack.c.b16 %v996, %v995
        %v1026 = vpack.c.b16 %v998, %v997
        %v1027 = vpack.c.b16 %v1000, %v999
        %v1028 = vpack.c.b16 %v1002, %v1001
        %v1029 = vpack.c.b16 %v1004, %v1003
        %v1030 = vpack.c.b16 %v1006, %v1005
        %v1031 = vpack.c.b16 %v1008, %v1007
        %v1032 = vpack.c.b16 %v1010, %v1009
        %v1033 = vpack.c.b16 %v1012, %v1011
        %v1034 = vpack.c.b16 %v1014, %v1013
        %v1035 = vpack.c.b16 %v1016, %v1015
        %v1036 = vpack.c.b16 %v1018, %v1017
        %v1037 = vpack.c.b16 %v1020, %v1019
        %v1038 = vpack.c.b16 %v1022, %v1021
        %1055 = vmatpush.bf16.xpose.msra.mxu0 %v1030
        %1056 = vmatpush.bf16.xpose.msra.mxu0 %v1029
        %1057 = vmatpush.bf16.xpose.msra.mxu0 %v1028
        %1058 = vmatpush.bf16.xpose.msra.mxu0 %v1027
        %1059 = vmatpush.bf16.xpose.msra.mxu0 %v1026
        %1060 = vmatpush.bf16.xpose.msra.mxu0 %v1025
        %1061 = vmatpush.bf16.xpose.msra.mxu0 %v1024
        %1062 = vmatpush.bf16.xpose.msra.mxu0 %v1023
        %1063 = vmatmul.bf16.gmra.mxu0 %v927
        %v1064 = vpop.f32.mrf.mxu0
        %v1065 = vadd.f32 0.0, %v1064
        %v1066 = vpop.f32.mrf.mxu0
        %v1067 = vadd.f32 0.0, %v1066
        %1068 = vmatmul.bf16.gmra.mxu0 %v928
        %v1069 = vpop.f32.mrf.mxu0
        %v1070 = vadd.f32 0.0, %v1069
        %v1071 = vpop.f32.mrf.mxu0
        %v1072 = vadd.f32 0.0, %v1071
        %1073 = vmatmul.bf16.gmra.mxu0 %v929
        %v1074 = vpop.f32.mrf.mxu0
        %v1075 = vadd.f32 0.0, %v1074
        %v1076 = vpop.f32.mrf.mxu0
        %v1077 = vadd.f32 0.0, %v1076
        %1078 = vmatmul.bf16.gmra.mxu0 %v930
        %v1079 = vpop.f32.mrf.mxu0
        %v1080 = vadd.f32 0.0, %v1079
        %v1081 = vpop.f32.mrf.mxu0
        %v1082 = vadd.f32 0.0, %v1081
        %1083 = vmatmul.bf16.gmra.mxu0 %v931
        %v1084 = vpop.f32.mrf.mxu0
        %v1085 = vadd.f32 0.0, %v1084
        %v1086 = vpop.f32.mrf.mxu0
        %v1087 = vadd.f32 0.0, %v1086
        %1088 = vmatmul.bf16.gmra.mxu0 %v932
        %v1089 = vpop.f32.mrf.mxu0
        %v1090 = vadd.f32 0.0, %v1089
        %v1091 = vpop.f32.mrf.mxu0
        %v1092 = vadd.f32 0.0, %v1091
        %1093 = vmatmul.bf16.gmra.mxu0 %v933
        %v1094 = vpop.f32.mrf.mxu0
        %v1095 = vadd.f32 0.0, %v1094
        %v1096 = vpop.f32.mrf.mxu0
        %v1097 = vadd.f32 0.0, %v1096
        %1098 = vmatmul.bf16.gmra.mxu0 %v934
        %v1099 = vpop.f32.mrf.mxu0
        %v1100 = vadd.f32 0.0, %v1099
        %v1101 = vpop.f32.mrf.mxu0
        %v1102 = vadd.f32 0.0, %v1101
        %1103 = vmatmul.bf16.gmra.mxu0 %v935
        %v1104 = vpop.f32.mrf.mxu0
        %v1105 = vadd.f32 0.0, %v1104
        %v1106 = vpop.f32.mrf.mxu0
        %v1107 = vadd.f32 0.0, %v1106
        %1108 = vmatmul.bf16.gmra.mxu0 %v936
        %v1109 = vpop.f32.mrf.mxu0
        %v1110 = vadd.f32 0.0, %v1109
        %v1111 = vpop.f32.mrf.mxu0
        %v1112 = vadd.f32 0.0, %v1111
        %1113 = vmatmul.bf16.gmra.mxu0 %v937
        %v1114 = vpop.f32.mrf.mxu0
        %v1115 = vadd.f32 0.0, %v1114
        %v1116 = vpop.f32.mrf.mxu0
        %v1117 = vadd.f32 0.0, %v1116
        %1118 = vmatmul.bf16.gmra.mxu0 %v938
        %v1119 = vpop.f32.mrf.mxu0
        %v1120 = vadd.f32 0.0, %v1119
        %v1121 = vpop.f32.mrf.mxu0
        %v1122 = vadd.f32 0.0, %v1121
        %1123 = vmatmul.bf16.gmra.mxu0 %v939
        %v1124 = vpop.f32.mrf.mxu0
        %v1125 = vadd.f32 0.0, %v1124
        %v1126 = vpop.f32.mrf.mxu0
        %v1127 = vadd.f32 0.0, %v1126
        %1128 = vmatmul.bf16.gmra.mxu0 %v940
        %v1129 = vpop.f32.mrf.mxu0
        %v1130 = vadd.f32 0.0, %v1129
        %v1131 = vpop.f32.mrf.mxu0
        %v1132 = vadd.f32 0.0, %v1131
        %1133 = vmatmul.bf16.gmra.mxu0 %v941
        %v1134 = vpop.f32.mrf.mxu0
        %v1135 = vadd.f32 0.0, %v1134
        %v1136 = vpop.f32.mrf.mxu0
        %v1137 = vadd.f32 0.0, %v1136
        %1138 = vmatmul.bf16.gmra.mxu0 %v942
        %v1139 = vpop.f32.mrf.mxu0
        %v1140 = vadd.f32 0.0, %v1139
        %v1141 = vpop.f32.mrf.mxu0
        %v1142 = vadd.f32 0.0, %v1141
        %1143 = vdwg.mxu0
        %1144 = vmatpush.bf16.xpose.msra.mxu0 %v1038
        %1145 = vmatpush.bf16.xpose.msra.mxu0 %v1037
        %1146 = vmatpush.bf16.xpose.msra.mxu0 %v1036
        %1147 = vmatpush.bf16.xpose.msra.mxu0 %v1035
        %1148 = vmatpush.bf16.xpose.msra.mxu0 %v1034
        %1149 = vmatpush.bf16.xpose.msra.mxu0 %v1033
        %1150 = vmatpush.bf16.xpose.msra.mxu0 %v1032
        %1151 = vmatpush.bf16.xpose.msra.mxu0 %v1031
        %1152 = vmatmul.bf16.gmra.mxu0 %v927
        %v1153 = vpop.f32.mrf.mxu0
        %v1154 = vadd.f32 0.0, %v1153
        %v1155 = vpop.f32.mrf.mxu0
        %v1156 = vadd.f32 0.0, %v1155
        %1157 = vmatmul.bf16.gmra.mxu0 %v928
        %v1158 = vpop.f32.mrf.mxu0
        %v1159 = vadd.f32 0.0, %v1158
        %v1160 = vpop.f32.mrf.mxu0
        %v1161 = vadd.f32 0.0, %v1160
        %1162 = vmatmul.bf16.gmra.mxu0 %v929
        %v1163 = vpop.f32.mrf.mxu0
        %v1164 = vadd.f32 0.0, %v1163
        %v1165 = vpop.f32.mrf.mxu0
        %v1166 = vadd.f32 0.0, %v1165
        %1167 = vmatmul.bf16.gmra.mxu0 %v930
        %v1168 = vpop.f32.mrf.mxu0
        %v1169 = vadd.f32 0.0, %v1168
        %v1170 = vpop.f32.mrf.mxu0
        %v1171 = vadd.f32 0.0, %v1170
        %1172 = vmatmul.bf16.gmra.mxu0 %v931
        %v1173 = vpop.f32.mrf.mxu0
        %v1174 = vadd.f32 0.0, %v1173
        %v1175 = vpop.f32.mrf.mxu0
        %v1176 = vadd.f32 0.0, %v1175
        %1177 = vmatmul.bf16.gmra.mxu0 %v932
        %v1178 = vpop.f32.mrf.mxu0
        %v1179 = vadd.f32 0.0, %v1178
        %v1180 = vpop.f32.mrf.mxu0
        %v1181 = vadd.f32 0.0, %v1180
        %1182 = vmatmul.bf16.gmra.mxu0 %v933
        %v1183 = vpop.f32.mrf.mxu0
        %v1184 = vadd.f32 0.0, %v1183
        %v1185 = vpop.f32.mrf.mxu0
        %v1186 = vadd.f32 0.0, %v1185
        %1187 = vmatmul.bf16.gmra.mxu0 %v934
        %v1188 = vpop.f32.mrf.mxu0
        %v1189 = vadd.f32 0.0, %v1188
        %v1190 = vpop.f32.mrf.mxu0
        %v1191 = vadd.f32 0.0, %v1190
        %1192 = vmatmul.bf16.gmra.mxu0 %v935
        %v1193 = vpop.f32.mrf.mxu0
        %v1194 = vadd.f32 0.0, %v1193
        %v1195 = vpop.f32.mrf.mxu0
        %v1196 = vadd.f32 0.0, %v1195
        %1197 = vmatmul.bf16.gmra.mxu0 %v936
        %v1198 = vpop.f32.mrf.mxu0
        %v1199 = vadd.f32 0.0, %v1198
        %v1200 = vpop.f32.mrf.mxu0
        %v1201 = vadd.f32 0.0, %v1200
        %1202 = vmatmul.bf16.gmra.mxu0 %v937
        %v1203 = vpop.f32.mrf.mxu0
        %v1204 = vadd.f32 0.0, %v1203
        %v1205 = vpop.f32.mrf.mxu0
        %v1206 = vadd.f32 0.0, %v1205
        %1207 = vmatmul.bf16.gmra.mxu0 %v938
        %v1208 = vpop.f32.mrf.mxu0
        %v1209 = vadd.f32 0.0, %v1208
        %v1210 = vpop.f32.mrf.mxu0
        %v1211 = vadd.f32 0.0, %v1210
        %1212 = vmatmul.bf16.gmra.mxu0 %v939
        %v1213 = vpop.f32.mrf.mxu0
        %v1214 = vadd.f32 0.0, %v1213
        %v1215 = vpop.f32.mrf.mxu0
        %v1216 = vadd.f32 0.0, %v1215
        %1217 = vmatmul.bf16.gmra.mxu0 %v940
        %v1218 = vpop.f32.mrf.mxu0
        %v1219 = vadd.f32 0.0, %v1218
        %v1220 = vpop.f32.mrf.mxu0
        %v1221 = vadd.f32 0.0, %v1220
        %1222 = vmatmul.bf16.gmra.mxu0 %v941
        %v1223 = vpop.f32.mrf.mxu0
        %v1224 = vadd.f32 0.0, %v1223
        %v1225 = vpop.f32.mrf.mxu0
        %v1226 = vadd.f32 0.0, %v1225
        %1227 = vmatmul.bf16.gmra.mxu0 %v942
        %v1228 = vpop.f32.mrf.mxu0
        %v1229 = vadd.f32 0.0, %v1228
        %v1230 = vpop.f32.mrf.mxu0
        %v1231 = vadd.f32 0.0, %v1230
        %1232 = vdwg.mxu0
        %v1233 = vmax.f32 %v1065, %v1154
        %1234 = vmax.xlane.f32.xlu0 %v1233
        %v1235 = vpop.xlane.xlu0 %1234
        %v1236 = vmax.f32 %v1067, %v1156
        %1237 = vmax.xlane.f32.xlu0 %v1236
        %v1238 = vpop.xlane.xlu0 %1237
        %v1239 = vmax.f32 %v1070, %v1159
        %1240 = vmax.xlane.f32.xlu0 %v1239
        %v1241 = vpop.xlane.xlu0 %1240
        %v1242 = vmax.f32 %v1072, %v1161
        %1243 = vmax.xlane.f32.xlu0 %v1242
        %v1244 = vpop.xlane.xlu0 %1243
        %v1245 = vmax.f32 %v1075, %v1164
        %1246 = vmax.xlane.f32.xlu0 %v1245
        %v1247 = vpop.xlane.xlu0 %1246
        %v1248 = vmax.f32 %v1077, %v1166
        %1249 = vmax.xlane.f32.xlu0 %v1248
        %v1250 = vpop.xlane.xlu0 %1249
        %v1251 = vmax.f32 %v1080, %v1169
        %1252 = vmax.xlane.f32.xlu0 %v1251
        %v1253 = vpop.xlane.xlu0 %1252
        %v1254 = vmax.f32 %v1082, %v1171
        %1255 = vmax.xlane.f32.xlu0 %v1254
        %v1256 = vpop.xlane.xlu0 %1255
        %v1257 = vmax.f32 %v1085, %v1174
        %1258 = vmax.xlane.f32.xlu0 %v1257
        %v1259 = vpop.xlane.xlu0 %1258
        %v1260 = vmax.f32 %v1087, %v1176
        %1261 = vmax.xlane.f32.xlu0 %v1260
        %v1262 = vpop.xlane.xlu0 %1261
        %v1263 = vmax.f32 %v1090, %v1179
        %1264 = vmax.xlane.f32.xlu0 %v1263
        %v1265 = vpop.xlane.xlu0 %1264
        %v1266 = vmax.f32 %v1092, %v1181
        %1267 = vmax.xlane.f32.xlu0 %v1266
        %v1268 = vpop.xlane.xlu0 %1267
        %v1269 = vmax.f32 %v1095, %v1184
        %1270 = vmax.xlane.f32.xlu0 %v1269
        %v1271 = vpop.xlane.xlu0 %1270
        %v1272 = vmax.f32 %v1097, %v1186
        %1273 = vmax.xlane.f32.xlu0 %v1272
        %v1274 = vpop.xlane.xlu0 %1273
        %v1275 = vmax.f32 %v1100, %v1189
        %1276 = vmax.xlane.f32.xlu0 %v1275
        %v1277 = vpop.xlane.xlu0 %1276
        %v1278 = vmax.f32 %v1102, %v1191
        %1279 = vmax.xlane.f32.xlu0 %v1278
        %v1280 = vpop.xlane.xlu0 %1279
        %v1281 = vmax.f32 %v1105, %v1194
        %1282 = vmax.xlane.f32.xlu0 %v1281
        %v1283 = vpop.xlane.xlu0 %1282
        %v1284 = vmax.f32 %v1107, %v1196
        %1285 = vmax.xlane.f32.xlu0 %v1284
        %v1286 = vpop.xlane.xlu0 %1285
        %v1287 = vmax.f32 %v1110, %v1199
        %1288 = vmax.xlane.f32.xlu0 %v1287
        %v1289 = vpop.xlane.xlu0 %1288
        %v1290 = vmax.f32 %v1112, %v1201
        %1291 = vmax.xlane.f32.xlu0 %v1290
        %v1292 = vpop.xlane.xlu0 %1291
        %v1293 = vmax.f32 %v1115, %v1204
        %1294 = vmax.xlane.f32.xlu0 %v1293
        %v1295 = vpop.xlane.xlu0 %1294
        %v1296 = vmax.f32 %v1117, %v1206
        %1297 = vmax.xlane.f32.xlu0 %v1296
        %v1298 = vpop.xlane.xlu0 %1297
        %v1299 = vmax.f32 %v1120, %v1209
        %1300 = vmax.xlane.f32.xlu0 %v1299
        %v1301 = vpop.xlane.xlu0 %1300
        %v1302 = vmax.f32 %v1122, %v1211
        %1303 = vmax.xlane.f32.xlu0 %v1302
        %v1304 = vpop.xlane.xlu0 %1303
        %v1305 = vmax.f32 %v1125, %v1214
        %1306 = vmax.xlane.f32.xlu0 %v1305
        %v1307 = vpop.xlane.xlu0 %1306
        %v1308 = vmax.f32 %v1127, %v1216
        %1309 = vmax.xlane.f32.xlu0 %v1308
        %v1310 = vpop.xlane.xlu0 %1309
        %v1311 = vmax.f32 %v1130, %v1219
        %1312 = vmax.xlane.f32.xlu0 %v1311
        %v1313 = vpop.xlane.xlu0 %1312
        %v1314 = vmax.f32 %v1132, %v1221
        %1315 = vmax.xlane.f32.xlu0 %v1314
        %v1316 = vpop.xlane.xlu0 %1315
        %v1317 = vmax.f32 %v1135, %v1224
        %1318 = vmax.xlane.f32.xlu0 %v1317
        %v1319 = vpop.xlane.xlu0 %1318
        %v1320 = vmax.f32 %v1137, %v1226
        %1321 = vmax.xlane.f32.xlu0 %v1320
        %v1322 = vpop.xlane.xlu0 %1321
        %v1323 = vmax.f32 %v1140, %v1229
        %1324 = vmax.xlane.f32.xlu0 %v1323
        %v1325 = vpop.xlane.xlu0 %1324
        %v1326 = vmax.f32 %v1142, %v1231
        %1327 = vmax.xlane.f32.xlu0 %v1326
        %v1328 = vpop.xlane.xlu0 %1327
        %v1329 = vsub.f32 %v1065, %v1235
        %v1330 = vsub.f32 %v1154, %v1235
        %v1331 = vsub.f32 %v1067, %v1238
        %v1332 = vsub.f32 %v1156, %v1238
        %v1333 = vsub.f32 %v1070, %v1241
        %v1334 = vsub.f32 %v1159, %v1241
        %v1335 = vsub.f32 %v1072, %v1244
        %v1336 = vsub.f32 %v1161, %v1244
        %v1337 = vsub.f32 %v1075, %v1247
        %v1338 = vsub.f32 %v1164, %v1247
        %v1339 = vsub.f32 %v1077, %v1250
        %v1340 = vsub.f32 %v1166, %v1250
        %v1341 = vsub.f32 %v1080, %v1253
        %v1342 = vsub.f32 %v1169, %v1253
        %v1343 = vsub.f32 %v1082, %v1256
        %v1344 = vsub.f32 %v1171, %v1256
        %v1345 = vsub.f32 %v1085, %v1259
        %v1346 = vsub.f32 %v1174, %v1259
        %v1347 = vsub.f32 %v1087, %v1262
        %v1348 = vsub.f32 %v1176, %v1262
        %v1349 = vsub.f32 %v1090, %v1265
        %v1350 = vsub.f32 %v1179, %v1265
        %v1351 = vsub.f32 %v1092, %v1268
        %v1352 = vsub.f32 %v1181, %v1268
        %v1353 = vsub.f32 %v1095, %v1271
        %v1354 = vsub.f32 %v1184, %v1271
        %v1355 = vsub.f32 %v1097, %v1274
        %v1356 = vsub.f32 %v1186, %v1274
        %v1357 = vsub.f32 %v1100, %v1277
        %v1358 = vsub.f32 %v1189, %v1277
        %v1359 = vsub.f32 %v1102, %v1280
        %v1360 = vsub.f32 %v1191, %v1280
        %v1361 = vsub.f32 %v1105, %v1283
        %v1362 = vsub.f32 %v1194, %v1283
        %v1363 = vsub.f32 %v1107, %v1286
        %v1364 = vsub.f32 %v1196, %v1286
        %v1365 = vsub.f32 %v1110, %v1289
        %v1366 = vsub.f32 %v1199, %v1289
        %v1367 = vsub.f32 %v1112, %v1292
        %v1368 = vsub.f32 %v1201, %v1292
        %v1369 = vsub.f32 %v1115, %v1295
        %v1370 = vsub.f32 %v1204, %v1295
        %v1371 = vsub.f32 %v1117, %v1298
        %v1372 = vsub.f32 %v1206, %v1298
        %v1373 = vsub.f32 %v1120, %v1301
        %v1374 = vsub.f32 %v1209, %v1301
        %v1375 = vsub.f32 %v1122, %v1304
        %v1376 = vsub.f32 %v1211, %v1304
        %v1377 = vsub.f32 %v1125, %v1307
        %v1378 = vsub.f32 %v1214, %v1307
        %v1379 = vsub.f32 %v1127, %v1310
        %v1380 = vsub.f32 %v1216, %v1310
        %v1381 = vsub.f32 %v1130, %v1313
        %v1382 = vsub.f32 %v1219, %v1313
        %v1383 = vsub.f32 %v1132, %v1316
        %v1384 = vsub.f32 %v1221, %v1316
        %v1385 = vsub.f32 %v1135, %v1319
        %v1386 = vsub.f32 %v1224, %v1319
        %v1387 = vsub.f32 %v1137, %v1322
        %v1388 = vsub.f32 %v1226, %v1322
        %v1389 = vsub.f32 %v1140, %v1325
        %v1390 = vsub.f32 %v1229, %v1325
        %v1391 = vsub.f32 %v1142, %v1328
        %v1392 = vsub.f32 %v1231, %v1328
        %v1393 = vmul.f32 %v1329, 1.442695
        %v1394 = vpow.pop %v1393
        %v1395 = vmul.f32 %v1330, 1.442695
        %v1396 = vpow.pop %v1395
        %v1397 = vmul.f32 %v1331, 1.442695
        %v1398 = vpow.pop %v1397
        %v1399 = vmul.f32 %v1332, 1.442695
        %v1400 = vpow.pop %v1399
        %v1401 = vmul.f32 %v1333, 1.442695
        %v1402 = vpow.pop %v1401
        %v1403 = vmul.f32 %v1334, 1.442695
        %v1404 = vpow.pop %v1403
        %v1405 = vmul.f32 %v1335, 1.442695
        %v1406 = vpow.pop %v1405
        %v1407 = vmul.f32 %v1336, 1.442695
        %v1408 = vpow.pop %v1407
        %v1409 = vmul.f32 %v1337, 1.442695
        %v1410 = vpow.pop %v1409
        %v1411 = vmul.f32 %v1338, 1.442695
        %v1412 = vpow.pop %v1411
        %v1413 = vmul.f32 %v1339, 1.442695
        %v1414 = vpow.pop %v1413
        %v1415 = vmul.f32 %v1340, 1.442695
        %v1416 = vpow.pop %v1415
        %v1417 = vmul.f32 %v1341, 1.442695
        %v1418 = vpow.pop %v1417
        %v1419 = vmul.f32 %v1342, 1.442695
        %v1420 = vpow.pop %v1419
        %v1421 = vmul.f32 %v1343, 1.442695
        %v1422 = vpow.pop %v1421
        %v1423 = vmul.f32 %v1344, 1.442695
        %v1424 = vpow.pop %v1423
        %v1425 = vmul.f32 %v1345, 1.442695
        %v1426 = vpow.pop %v1425
        %v1427 = vmul.f32 %v1346, 1.442695
        %v1428 = vpow.pop %v1427
        %v1429 = vmul.f32 %v1347, 1.442695
        %v1430 = vpow.pop %v1429
        %v1431 = vmul.f32 %v1348, 1.442695
        %v1432 = vpow.pop %v1431
        %v1433 = vmul.f32 %v1349, 1.442695
        %v1434 = vpow.pop %v1433
        %v1435 = vmul.f32 %v1350, 1.442695
        %v1436 = vpow.pop %v1435
        %v1437 = vmul.f32 %v1351, 1.442695
        %v1438 = vpow.pop %v1437
        %v1439 = vmul.f32 %v1352, 1.442695
        %v1440 = vpow.pop %v1439
        %v1441 = vmul.f32 %v1353, 1.442695
        %v1442 = vpow.pop %v1441
        %v1443 = vmul.f32 %v1354, 1.442695
        %v1444 = vpow.pop %v1443
        %v1445 = vmul.f32 %v1355, 1.442695
        %v1446 = vpow.pop %v1445
        %v1447 = vmul.f32 %v1356, 1.442695
        %v1448 = vpow.pop %v1447
        %v1449 = vmul.f32 %v1357, 1.442695
        %v1450 = vpow.pop %v1449
        %v1451 = vmul.f32 %v1358, 1.442695
        %v1452 = vpow.pop %v1451
        %v1453 = vmul.f32 %v1359, 1.442695
        %v1454 = vpow.pop %v1453
        %v1455 = vmul.f32 %v1360, 1.442695
        %v1456 = vpow.pop %v1455
        %v1457 = vmul.f32 %v1361, 1.442695
        %v1458 = vpow.pop %v1457
        %v1459 = vmul.f32 %v1362, 1.442695
        %v1460 = vpow.pop %v1459
        %v1461 = vmul.f32 %v1363, 1.442695
        %v1462 = vpow.pop %v1461
        %v1463 = vmul.f32 %v1364, 1.442695
        %v1464 = vpow.pop %v1463
        %v1465 = vmul.f32 %v1365, 1.442695
        %v1466 = vpow.pop %v1465
        %v1467 = vmul.f32 %v1366, 1.442695
        %v1468 = vpow.pop %v1467
        %v1469 = vmul.f32 %v1367, 1.442695
        %v1470 = vpow.pop %v1469
        %v1471 = vmul.f32 %v1368, 1.442695
        %v1472 = vpow.pop %v1471
        %v1473 = vmul.f32 %v1369, 1.442695
        %v1474 = vpow.pop %v1473
        %v1475 = vmul.f32 %v1370, 1.442695
        %v1476 = vpow.pop %v1475
        %v1477 = vmul.f32 %v1371, 1.442695
        %v1478 = vpow.pop %v1477
        %v1479 = vmul.f32 %v1372, 1.442695
        %v1480 = vpow.pop %v1479
        %v1481 = vmul.f32 %v1373, 1.442695
        %v1482 = vpow.pop %v1481
        %v1483 = vmul.f32 %v1374, 1.442695
        %v1484 = vpow.pop %v1483
        %v1485 = vmul.f32 %v1375, 1.442695
        %v1486 = vpow.pop %v1485
        %v1487 = vmul.f32 %v1376, 1.442695
        %v1488 = vpow.pop %v1487
        %v1489 = vmul.f32 %v1377, 1.442695
        %v1490 = vpow.pop %v1489
        %v1491 = vmul.f32 %v1378, 1.442695
        %v1492 = vpow.pop %v1491
        %v1493 = vmul.f32 %v1379, 1.442695
        %v1494 = vpow.pop %v1493
        %v1495 = vmul.f32 %v1380, 1.442695
        %v1496 = vpow.pop %v1495
        %v1497 = vmul.f32 %v1381, 1.442695
        %v1498 = vpow.pop %v1497
        %v1499 = vmul.f32 %v1382, 1.442695
        %v1500 = vpow.pop %v1499
        %v1501 = vmul.f32 %v1383, 1.442695
        %v1502 = vpow.pop %v1501
        %v1503 = vmul.f32 %v1384, 1.442695
        %v1504 = vpow.pop %v1503
        %v1505 = vmul.f32 %v1385, 1.442695
        %v1506 = vpow.pop %v1505
        %v1507 = vmul.f32 %v1386, 1.442695
        %v1508 = vpow.pop %v1507
        %v1509 = vmul.f32 %v1387, 1.442695
        %v1510 = vpow.pop %v1509
        %v1511 = vmul.f32 %v1388, 1.442695
        %v1512 = vpow.pop %v1511
        %v1513 = vmul.f32 %v1389, 1.442695
        %v1514 = vpow.pop %v1513
        %v1515 = vmul.f32 %v1390, 1.442695
        %v1516 = vpow.pop %v1515
        %v1517 = vmul.f32 %v1391, 1.442695
        %v1518 = vpow.pop %v1517
        %v1519 = vmul.f32 %v1392, 1.442695
        %v1520 = vpow.pop %v1519
        %v1521 = vadd.f32 %v1394, %v1396
        %1522 = vadd.xlane.f32.xlu0 %v1521
        %v1523 = vpop.xlane.xlu0 %1522
        %v1524 = vadd.f32 %v1398, %v1400
        %1525 = vadd.xlane.f32.xlu0 %v1524
        %v1526 = vpop.xlane.xlu0 %1525
        %v1527 = vadd.f32 %v1402, %v1404
        %1528 = vadd.xlane.f32.xlu0 %v1527
        %v1529 = vpop.xlane.xlu0 %1528
        %v1530 = vadd.f32 %v1406, %v1408
        %1531 = vadd.xlane.f32.xlu0 %v1530
        %v1532 = vpop.xlane.xlu0 %1531
        %v1533 = vadd.f32 %v1410, %v1412
        %1534 = vadd.xlane.f32.xlu0 %v1533
        %v1535 = vpop.xlane.xlu0 %1534
        %v1536 = vadd.f32 %v1414, %v1416
        %1537 = vadd.xlane.f32.xlu0 %v1536
        %v1538 = vpop.xlane.xlu0 %1537
        %v1539 = vadd.f32 %v1418, %v1420
        %1540 = vadd.xlane.f32.xlu0 %v1539
        %v1541 = vpop.xlane.xlu0 %1540
        %v1542 = vadd.f32 %v1422, %v1424
        %1543 = vadd.xlane.f32.xlu0 %v1542
        %v1544 = vpop.xlane.xlu0 %1543
        %v1545 = vadd.f32 %v1426, %v1428
        %1546 = vadd.xlane.f32.xlu0 %v1545
        %v1547 = vpop.xlane.xlu0 %1546
        %v1548 = vadd.f32 %v1430, %v1432
        %1549 = vadd.xlane.f32.xlu0 %v1548
        %v1550 = vpop.xlane.xlu0 %1549
        %v1551 = vadd.f32 %v1434, %v1436
        %1552 = vadd.xlane.f32.xlu0 %v1551
        %v1553 = vpop.xlane.xlu0 %1552
        %v1554 = vadd.f32 %v1438, %v1440
        %1555 = vadd.xlane.f32.xlu0 %v1554
        %v1556 = vpop.xlane.xlu0 %1555
        %v1557 = vadd.f32 %v1442, %v1444
        %1558 = vadd.xlane.f32.xlu0 %v1557
        %v1559 = vpop.xlane.xlu0 %1558
        %v1560 = vadd.f32 %v1446, %v1448
        %1561 = vadd.xlane.f32.xlu0 %v1560
        %v1562 = vpop.xlane.xlu0 %1561
        %v1563 = vadd.f32 %v1450, %v1452
        %1564 = vadd.xlane.f32.xlu0 %v1563
        %v1565 = vpop.xlane.xlu0 %1564
        %v1566 = vadd.f32 %v1454, %v1456
        %1567 = vadd.xlane.f32.xlu0 %v1566
        %v1568 = vpop.xlane.xlu0 %1567
        %v1569 = vadd.f32 %v1458, %v1460
        %1570 = vadd.xlane.f32.xlu0 %v1569
        %v1571 = vpop.xlane.xlu0 %1570
        %v1572 = vadd.f32 %v1462, %v1464
        %1573 = vadd.xlane.f32.xlu0 %v1572
        %v1574 = vpop.xlane.xlu0 %1573
        %v1575 = vadd.f32 %v1466, %v1468
        %1576 = vadd.xlane.f32.xlu0 %v1575
        %v1577 = vpop.xlane.xlu0 %1576
        %v1578 = vadd.f32 %v1470, %v1472
        %1579 = vadd.xlane.f32.xlu0 %v1578
        %v1580 = vpop.xlane.xlu0 %1579
        %v1581 = vadd.f32 %v1474, %v1476
        %1582 = vadd.xlane.f32.xlu0 %v1581
        %v1583 = vpop.xlane.xlu0 %1582
        %v1584 = vadd.f32 %v1478, %v1480
        %1585 = vadd.xlane.f32.xlu0 %v1584
        %v1586 = vpop.xlane.xlu0 %1585
        %v1587 = vadd.f32 %v1482, %v1484
        %1588 = vadd.xlane.f32.xlu0 %v1587
        %v1589 = vpop.xlane.xlu0 %1588
        %v1590 = vadd.f32 %v1486, %v1488
        %1591 = vadd.xlane.f32.xlu0 %v1590
        %v1592 = vpop.xlane.xlu0 %1591
        %v1593 = vadd.f32 %v1490, %v1492
        %1594 = vadd.xlane.f32.xlu0 %v1593
        %v1595 = vpop.xlane.xlu0 %1594
        %v1596 = vadd.f32 %v1494, %v1496
        %1597 = vadd.xlane.f32.xlu0 %v1596
        %v1598 = vpop.xlane.xlu0 %1597
        %v1599 = vadd.f32 %v1498, %v1500
        %1600 = vadd.xlane.f32.xlu0 %v1599
        %v1601 = vpop.xlane.xlu0 %1600
        %v1602 = vadd.f32 %v1502, %v1504
        %1603 = vadd.xlane.f32.xlu0 %v1602
        %v1604 = vpop.xlane.xlu0 %1603
        %v1605 = vadd.f32 %v1506, %v1508
        %1606 = vadd.xlane.f32.xlu0 %v1605
        %v1607 = vpop.xlane.xlu0 %1606
        %v1608 = vadd.f32 %v1510, %v1512
        %1609 = vadd.xlane.f32.xlu0 %v1608
        %v1610 = vpop.xlane.xlu0 %1609
        %v1611 = vadd.f32 %v1514, %v1516
        %1612 = vadd.xlane.f32.xlu0 %v1611
        %v1613 = vpop.xlane.xlu0 %1612
        %v1614 = vadd.f32 %v1518, %v1520
        %1615 = vadd.xlane.f32.xlu0 %v1614
        %v1616 = vpop.xlane.xlu0 %1615
        %v1617 = vrcp.pop %v1523
        %v1618 = vrcp.pop %v1526
        %v1619 = vrcp.pop %v1529
        %v1620 = vrcp.pop %v1532
        %v1621 = vrcp.pop %v1535
        %v1622 = vrcp.pop %v1538
        %v1623 = vrcp.pop %v1541
        %v1624 = vrcp.pop %v1544
        %v1625 = vrcp.pop %v1547
        %v1626 = vrcp.pop %v1550
        %v1627 = vrcp.pop %v1553
        %v1628 = vrcp.pop %v1556
        %v1629 = vrcp.pop %v1559
        %v1630 = vrcp.pop %v1562
        %v1631 = vrcp.pop %v1565
        %v1632 = vrcp.pop %v1568
        %v1633 = vrcp.pop %v1571
        %v1634 = vrcp.pop %v1574
        %v1635 = vrcp.pop %v1577
        %v1636 = vrcp.pop %v1580
        %v1637 = vrcp.pop %v1583
        %v1638 = vrcp.pop %v1586
        %v1639 = vrcp.pop %v1589
        %v1640 = vrcp.pop %v1592
        %v1641 = vrcp.pop %v1595
        %v1642 = vrcp.pop %v1598
        %v1643 = vrcp.pop %v1601
        %v1644 = vrcp.pop %v1604
        %v1645 = vrcp.pop %v1607
        %v1646 = vrcp.pop %v1610
        %v1647 = vrcp.pop %v1613
        %v1648 = vrcp.pop %v1616
        %v1649 = vmul.f32 %v1394, %v1617
        %v1650 = vmul.f32 %v1396, %v1617
        %v1651 = vmul.f32 %v1398, %v1618
        %v1652 = vmul.f32 %v1400, %v1618
        %v1653 = vmul.f32 %v1402, %v1619
        %v1654 = vmul.f32 %v1404, %v1619
        %v1655 = vmul.f32 %v1406, %v1620
        %v1656 = vmul.f32 %v1408, %v1620
        %v1657 = vmul.f32 %v1410, %v1621
        %v1658 = vmul.f32 %v1412, %v1621
        %v1659 = vmul.f32 %v1414, %v1622
        %v1660 = vmul.f32 %v1416, %v1622
        %v1661 = vmul.f32 %v1418, %v1623
        %v1662 = vmul.f32 %v1420, %v1623
        %v1663 = vmul.f32 %v1422, %v1624
        %v1664 = vmul.f32 %v1424, %v1624
        %v1665 = vmul.f32 %v1426, %v1625
        %v1666 = vmul.f32 %v1428, %v1625
        %v1667 = vmul.f32 %v1430, %v1626
        %v1668 = vmul.f32 %v1432, %v1626
        %v1669 = vmul.f32 %v1434, %v1627
        %v1670 = vmul.f32 %v1436, %v1627
        %v1671 = vmul.f32 %v1438, %v1628
        %v1672 = vmul.f32 %v1440, %v1628
        %v1673 = vmul.f32 %v1442, %v1629
        %v1674 = vmul.f32 %v1444, %v1629
        %v1675 = vmul.f32 %v1446, %v1630
        %v1676 = vmul.f32 %v1448, %v1630
        %v1677 = vmul.f32 %v1450, %v1631
        %v1678 = vmul.f32 %v1452, %v1631
        %v1679 = vmul.f32 %v1454, %v1632
        %v1680 = vmul.f32 %v1456, %v1632
        %v1681 = vmul.f32 %v1458, %v1633
        %v1682 = vmul.f32 %v1460, %v1633
        %v1683 = vmul.f32 %v1462, %v1634
        %v1684 = vmul.f32 %v1464, %v1634
        %v1685 = vmul.f32 %v1466, %v1635
        %v1686 = vmul.f32 %v1468, %v1635
        %v1687 = vmul.f32 %v1470, %v1636
        %v1688 = vmul.f32 %v1472, %v1636
        %v1689 = vmul.f32 %v1474, %v1637
        %v1690 = vmul.f32 %v1476, %v1637
        %v1691 = vmul.f32 %v1478, %v1638
        %v1692 = vmul.f32 %v1480, %v1638
        %v1693 = vmul.f32 %v1482, %v1639
        %v1694 = vmul.f32 %v1484, %v1639
        %v1695 = vmul.f32 %v1486, %v1640
        %v1696 = vmul.f32 %v1488, %v1640
        %v1697 = vmul.f32 %v1490, %v1641
        %v1698 = vmul.f32 %v1492, %v1641
        %v1699 = vmul.f32 %v1494, %v1642
        %v1700 = vmul.f32 %v1496, %v1642
        %v1701 = vmul.f32 %v1498, %v1643
        %v1702 = vmul.f32 %v1500, %v1643
        %v1703 = vmul.f32 %v1502, %v1644
        %v1704 = vmul.f32 %v1504, %v1644
        %v1705 = vmul.f32 %v1506, %v1645
        %v1706 = vmul.f32 %v1508, %v1645
        %v1707 = vmul.f32 %v1510, %v1646
        %v1708 = vmul.f32 %v1512, %v1646
        %v1709 = vmul.f32 %v1514, %v1647
        %v1710 = vmul.f32 %v1516, %v1647
        %v1711 = vmul.f32 %v1518, %v1648
        %v1712 = vmul.f32 %v1520, %v1648
        %1713 = vst [vmem:[%s793] sm:$0xff] %v1649
        %1714 = vst [vmem:[%s793 + $0x8] sm:$0xff] %v1650
        %1715 = vst [vmem:[%s793 + $0x10] sm:$0xff] %v1651
        %1716 = vst [vmem:[%s793 + $0x18] sm:$0xff] %v1652
        %1717 = vst [vmem:[%s793 + $0x20] sm:$0xff] %v1653
        %1718 = vst [vmem:[%s793 + $0x28] sm:$0xff] %v1654
        %1719 = vst [vmem:[%s793 + $0x30] sm:$0xff] %v1655
        %1720 = vst [vmem:[%s793 + $0x38] sm:$0xff] %v1656
        %1721 = vst [vmem:[%s793 + $0x40] sm:$0xff] %v1657
        %1722 = vst [vmem:[%s793 + $0x48] sm:$0xff] %v1658
        %1723 = vst [vmem:[%s793 + $0x50] sm:$0xff] %v1659
        %1724 = vst [vmem:[%s793 + $0x58] sm:$0xff] %v1660
        %1725 = vst [vmem:[%s793 + $0x60] sm:$0xff] %v1661
        %1726 = vst [vmem:[%s793 + $0x68] sm:$0xff] %v1662
        %1727 = vst [vmem:[%s793 + $0x70] sm:$0xff] %v1663
        %1728 = vst [vmem:[%s793 + $0x78] sm:$0xff] %v1664
        %1729 = vst [vmem:[%s793 + $0x80] sm:$0xff] %v1665
        %1730 = vst [vmem:[%s793 + $0x88] sm:$0xff] %v1666
        %1731 = vst [vmem:[%s793 + $0x90] sm:$0xff] %v1667
        %1732 = vst [vmem:[%s793 + $0x98] sm:$0xff] %v1668
        %1733 = vst [vmem:[%s793 + $0xa0] sm:$0xff] %v1669
        %1734 = vst [vmem:[%s793 + $0xa8] sm:$0xff] %v1670
        %1735 = vst [vmem:[%s793 + $0xb0] sm:$0xff] %v1671
        %1736 = vst [vmem:[%s793 + $0xb8] sm:$0xff] %v1672
        %1737 = vst [vmem:[%s793 + $0xc0] sm:$0xff] %v1673
        %1738 = vst [vmem:[%s793 + $0xc8] sm:$0xff] %v1674
        %1739 = vst [vmem:[%s793 + $0xd0] sm:$0xff] %v1675
        %1740 = vst [vmem:[%s793 + $0xd8] sm:$0xff] %v1676
        %1741 = vst [vmem:[%s793 + $0xe0] sm:$0xff] %v1677
        %1742 = vst [vmem:[%s793 + $0xe8] sm:$0xff] %v1678
        %1743 = vst [vmem:[%s793 + $0xf0] sm:$0xff] %v1679
        %1744 = vst [vmem:[%s793 + $0xf8] sm:$0xff] %v1680
        %1745 = vst [vmem:[%s793 + $0x100] sm:$0xff] %v1681
        %1746 = vst [vmem:[%s793 + $0x108] sm:$0xff] %v1682
        %1747 = vst [vmem:[%s793 + $0x110] sm:$0xff] %v1683
        %1748 = vst [vmem:[%s793 + $0x118] sm:$0xff] %v1684
        %1749 = vst [vmem:[%s793 + $0x120] sm:$0xff] %v1685
        %1750 = vst [vmem:[%s793 + $0x128] sm:$0xff] %v1686
        %1751 = vst [vmem:[%s793 + $0x130] sm:$0xff] %v1687
        %1752 = vst [vmem:[%s793 + $0x138] sm:$0xff] %v1688
        %1753 = vst [vmem:[%s793 + $0x140] sm:$0xff] %v1689
        %1754 = vst [vmem:[%s793 + $0x148] sm:$0xff] %v1690
        %1755 = vst [vmem:[%s793 + $0x150] sm:$0xff] %v1691
        %1756 = vst [vmem:[%s793 + $0x158] sm:$0xff] %v1692
        %1757 = vst [vmem:[%s793 + $0x160] sm:$0xff] %v1693
        %1758 = vst [vmem:[%s793 + $0x168] sm:$0xff] %v1694
        %1759 = vst [vmem:[%s793 + $0x170] sm:$0xff] %v1695
        %1760 = vst [vmem:[%s793 + $0x178] sm:$0xff] %v1696
        %1761 = vst [vmem:[%s793 + $0x180] sm:$0xff] %v1697
        %1762 = vst [vmem:[%s793 + $0x188] sm:$0xff] %v1698
        %1763 = vst [vmem:[%s793 + $0x190] sm:$0xff] %v1699
        %1764 = vst [vmem:[%s793 + $0x198] sm:$0xff] %v1700
        %1765 = vst [vmem:[%s793 + $0x1a0] sm:$0xff] %v1701
        %1766 = vst [vmem:[%s793 + $0x1a8] sm:$0xff] %v1702
        %1767 = vst [vmem:[%s793 + $0x1b0] sm:$0xff] %v1703
        %1768 = vst [vmem:[%s793 + $0x1b8] sm:$0xff] %v1704
        %1769 = vst [vmem:[%s793 + $0x1c0] sm:$0xff] %v1705
        %1770 = vst [vmem:[%s793 + $0x1c8] sm:$0xff] %v1706
        %1771 = vst [vmem:[%s793 + $0x1d0] sm:$0xff] %v1707
        %1772 = vst [vmem:[%s793 + $0x1d8] sm:$0xff] %v1708
        %1773 = vst [vmem:[%s793 + $0x1e0] sm:$0xff] %v1709
        %1774 = vst [vmem:[%s793 + $0x1e8] sm:$0xff] %v1710
        %1775 = vst [vmem:[%s793 + $0x1f0] sm:$0xff] %v1711
        %1776 = vst [vmem:[%s793 + $0x1f8] sm:$0xff] %v1712
        %v1777 = vpack.c.bf16 %v1651, %v1649
        %v1778 = vpack.c.bf16 %v1652, %v1650
        %v1779 = vpack.c.bf16 %v1655, %v1653
        %v1780 = vpack.c.bf16 %v1656, %v1654
        %v1781 = vpack.c.bf16 %v1659, %v1657
        %v1782 = vpack.c.bf16 %v1660, %v1658
        %v1783 = vpack.c.bf16 %v1663, %v1661
        %v1784 = vpack.c.bf16 %v1664, %v1662
        %v1785 = vpack.c.bf16 %v1667, %v1665
        %v1786 = vpack.c.bf16 %v1668, %v1666
        %v1787 = vpack.c.bf16 %v1671, %v1669
        %v1788 = vpack.c.bf16 %v1672, %v1670
        %v1789 = vpack.c.bf16 %v1675, %v1673
        %v1790 = vpack.c.bf16 %v1676, %v1674
        %v1791 = vpack.c.bf16 %v1679, %v1677
        %v1792 = vpack.c.bf16 %v1680, %v1678
        %v1793 = vpack.c.bf16 %v1683, %v1681
        %v1794 = vpack.c.bf16 %v1684, %v1682
        %v1795 = vpack.c.bf16 %v1687, %v1685
        %v1796 = vpack.c.bf16 %v1688, %v1686
        %v1797 = vpack.c.bf16 %v1691, %v1689
        %v1798 = vpack.c.bf16 %v1692, %v1690
        %v1799 = vpack.c.bf16 %v1695, %v1693
        %v1800 = vpack.c.bf16 %v1696, %v1694
        %v1801 = vpack.c.bf16 %v1699, %v1697
        %v1802 = vpack.c.bf16 %v1700, %v1698
        %v1803 = vpack.c.bf16 %v1703, %v1701
        %v1804 = vpack.c.bf16 %v1704, %v1702
        %v1805 = vpack.c.bf16 %v1707, %v1705
        %v1806 = vpack.c.bf16 %v1708, %v1706
        %v1807 = vpack.c.bf16 %v1711, %v1709
        %v1808 = vpack.c.bf16 %v1712, %v1710
        %v1809 = vld [vmem:[%s759] sm:$0xf]
        %v1810 = vld [vmem:[%s759 + $0x4] sm:$0xf]
        %v1811 = vld [vmem:[%s759 + $0x8] sm:$0xf]
        %v1812 = vld [vmem:[%s759 + $0xc] sm:$0xf]
        %v1813 = vld [vmem:[%s759 + $0x10] sm:$0xf]
        %v1814 = vld [vmem:[%s759 + $0x14] sm:$0xf]
        %v1815 = vld [vmem:[%s759 + $0x18] sm:$0xf]
        %v1816 = vld [vmem:[%s759 + $0x1c] sm:$0xf]
        %v1817 = vld [vmem:[%s759 + $0x20] sm:$0xf]
        %v1818 = vld [vmem:[%s759 + $0x24] sm:$0xf]
        %v1819 = vld [vmem:[%s759 + $0x28] sm:$0xf]
        %v1820 = vld [vmem:[%s759 + $0x2c] sm:$0xf]
        %v1821 = vld [vmem:[%s759 + $0x30] sm:$0xf]
        %v1822 = vld [vmem:[%s759 + $0x34] sm:$0xf]
        %v1823 = vld [vmem:[%s759 + $0x38] sm:$0xf]
        %v1824 = vld [vmem:[%s759 + $0x3c] sm:$0xf]
        %v1825 = vld [vmem:[%s759 + $0x40] sm:$0xf]
        %v1826 = vld [vmem:[%s759 + $0x44] sm:$0xf]
        %v1827 = vld [vmem:[%s759 + $0x48] sm:$0xf]
        %v1828 = vld [vmem:[%s759 + $0x4c] sm:$0xf]
        %v1829 = vld [vmem:[%s759 + $0x50] sm:$0xf]
        %v1830 = vld [vmem:[%s759 + $0x54] sm:$0xf]
        %v1831 = vld [vmem:[%s759 + $0x58] sm:$0xf]
        %v1832 = vld [vmem:[%s759 + $0x5c] sm:$0xf]
        %v1833 = vld [vmem:[%s759 + $0x60] sm:$0xf]
        %v1834 = vld [vmem:[%s759 + $0x64] sm:$0xf]
        %v1835 = vld [vmem:[%s759 + $0x68] sm:$0xf]
        %v1836 = vld [vmem:[%s759 + $0x6c] sm:$0xf]
        %v1837 = vld [vmem:[%s759 + $0x70] sm:$0xf]
        %v1838 = vld [vmem:[%s759 + $0x74] sm:$0xf]
        %v1839 = vld [vmem:[%s759 + $0x78] sm:$0xf]
        %v1840 = vld [vmem:[%s759 + $0x7c] sm:$0xf]
        %v1873 = vunpack.c.l.b16 %v1809
        %v1874 = vunpack.c.l.b16 %v1810
        %v1875 = vunpack.c.l.b16 %v1811
        %v1876 = vunpack.c.l.b16 %v1812
        %v1877 = vunpack.c.l.b16 %v1813
        %v1878 = vunpack.c.l.b16 %v1814
        %v1879 = vunpack.c.l.b16 %v1815
        %v1880 = vunpack.c.l.b16 %v1816
        %v1881 = vunpack.c.l.b16 %v1817
        %v1882 = vunpack.c.l.b16 %v1818
        %v1883 = vunpack.c.l.b16 %v1819
        %v1884 = vunpack.c.l.b16 %v1820
        %v1885 = vunpack.c.l.b16 %v1821
        %v1886 = vunpack.c.l.b16 %v1822
        %v1887 = vunpack.c.l.b16 %v1823
        %v1888 = vunpack.c.l.b16 %v1824
        %v1889 = vunpack.c.l.b16 %v1825
        %v1890 = vunpack.c.l.b16 %v1826
        %v1891 = vunpack.c.l.b16 %v1827
        %v1892 = vunpack.c.l.b16 %v1828
        %v1893 = vunpack.c.l.b16 %v1829
        %v1894 = vunpack.c.l.b16 %v1830
        %v1895 = vunpack.c.l.b16 %v1831
        %v1896 = vunpack.c.l.b16 %v1832
        %v1897 = vunpack.c.l.b16 %v1833
        %v1898 = vunpack.c.l.b16 %v1834
        %v1899 = vunpack.c.l.b16 %v1835
        %v1900 = vunpack.c.l.b16 %v1836
        %v1901 = vunpack.c.l.b16 %v1837
        %v1902 = vunpack.c.l.b16 %v1838
        %v1903 = vunpack.c.l.b16 %v1839
        %v1904 = vunpack.c.l.b16 %v1840
        %v1905 = vpack.c.b16 %v1874, %v1873
        %v1906 = vpack.c.b16 %v1876, %v1875
        %v1907 = vpack.c.b16 %v1878, %v1877
        %v1908 = vpack.c.b16 %v1880, %v1879
        %v1909 = vpack.c.b16 %v1882, %v1881
        %v1910 = vpack.c.b16 %v1884, %v1883
        %v1911 = vpack.c.b16 %v1886, %v1885
        %v1912 = vpack.c.b16 %v1888, %v1887
        %v1913 = vpack.c.b16 %v1890, %v1889
        %v1914 = vpack.c.b16 %v1892, %v1891
        %v1915 = vpack.c.b16 %v1894, %v1893
        %v1916 = vpack.c.b16 %v1896, %v1895
        %v1917 = vpack.c.b16 %v1898, %v1897
        %v1918 = vpack.c.b16 %v1900, %v1899
        %v1919 = vpack.c.b16 %v1902, %v1901
        %v1920 = vpack.c.b16 %v1904, %v1903
        %1937 = vmatpush.bf16.msra.mxu0 %v1912
        %1938 = vmatpush.bf16.msra.mxu0 %v1911
        %1939 = vmatpush.bf16.msra.mxu0 %v1910
        %1940 = vmatpush.bf16.msra.mxu0 %v1909
        %1941 = vmatpush.bf16.msra.mxu0 %v1908
        %1942 = vmatpush.bf16.msra.mxu0 %v1907
        %1943 = vmatpush.bf16.msra.mxu0 %v1906
        %1944 = vmatpush.bf16.msra.mxu0 %v1905
        %1945 = vmatmul.bf16.gmra.mxu0 %v1777
        %v1946 = vpop.f32.mrf.mxu0
        %v1947 = vadd.f32 0.0, %v1946
        %v1948 = vpop.f32.mrf.mxu0
        %v1949 = vadd.f32 0.0, %v1948
        %1950 = vmatmul.bf16.gmra.mxu0 %v1779
        %v1951 = vpop.f32.mrf.mxu0
        %v1952 = vadd.f32 0.0, %v1951
        %v1953 = vpop.f32.mrf.mxu0
        %v1954 = vadd.f32 0.0, %v1953
        %1955 = vmatmul.bf16.gmra.mxu0 %v1781
        %v1956 = vpop.f32.mrf.mxu0
        %v1957 = vadd.f32 0.0, %v1956
        %v1958 = vpop.f32.mrf.mxu0
        %v1959 = vadd.f32 0.0, %v1958
        %1960 = vmatmul.bf16.gmra.mxu0 %v1783
        %v1961 = vpop.f32.mrf.mxu0
        %v1962 = vadd.f32 0.0, %v1961
        %v1963 = vpop.f32.mrf.mxu0
        %v1964 = vadd.f32 0.0, %v1963
        %1965 = vmatmul.bf16.gmra.mxu0 %v1785
        %v1966 = vpop.f32.mrf.mxu0
        %v1967 = vadd.f32 0.0, %v1966
        %v1968 = vpop.f32.mrf.mxu0
        %v1969 = vadd.f32 0.0, %v1968
        %1970 = vmatmul.bf16.gmra.mxu0 %v1787
        %v1971 = vpop.f32.mrf.mxu0
        %v1972 = vadd.f32 0.0, %v1971
        %v1973 = vpop.f32.mrf.mxu0
        %v1974 = vadd.f32 0.0, %v1973
        %1975 = vmatmul.bf16.gmra.mxu0 %v1789
        %v1976 = vpop.f32.mrf.mxu0
        %v1977 = vadd.f32 0.0, %v1976
        %v1978 = vpop.f32.mrf.mxu0
        %v1979 = vadd.f32 0.0, %v1978
        %1980 = vmatmul.bf16.gmra.mxu0 %v1791
        %v1981 = vpop.f32.mrf.mxu0
        %v1982 = vadd.f32 0.0, %v1981
        %v1983 = vpop.f32.mrf.mxu0
        %v1984 = vadd.f32 0.0, %v1983
        %1985 = vmatmul.bf16.gmra.mxu0 %v1793
        %v1986 = vpop.f32.mrf.mxu0
        %v1987 = vadd.f32 0.0, %v1986
        %v1988 = vpop.f32.mrf.mxu0
        %v1989 = vadd.f32 0.0, %v1988
        %1990 = vmatmul.bf16.gmra.mxu0 %v1795
        %v1991 = vpop.f32.mrf.mxu0
        %v1992 = vadd.f32 0.0, %v1991
        %v1993 = vpop.f32.mrf.mxu0
        %v1994 = vadd.f32 0.0, %v1993
        %1995 = vmatmul.bf16.gmra.mxu0 %v1797
        %v1996 = vpop.f32.mrf.mxu0
        %v1997 = vadd.f32 0.0, %v1996
        %v1998 = vpop.f32.mrf.mxu0
        %v1999 = vadd.f32 0.0, %v1998
        %2000 = vmatmul.bf16.gmra.mxu0 %v1799
        %v2001 = vpop.f32.mrf.mxu0
        %v2002 = vadd.f32 0.0, %v2001
        %v2003 = vpop.f32.mrf.mxu0
        %v2004 = vadd.f32 0.0, %v2003
        %2005 = vmatmul.bf16.gmra.mxu0 %v1801
        %v2006 = vpop.f32.mrf.mxu0
        %v2007 = vadd.f32 0.0, %v2006
        %v2008 = vpop.f32.mrf.mxu0
        %v2009 = vadd.f32 0.0, %v2008
        %2010 = vmatmul.bf16.gmra.mxu0 %v1803
        %v2011 = vpop.f32.mrf.mxu0
        %v2012 = vadd.f32 0.0, %v2011
        %v2013 = vpop.f32.mrf.mxu0
        %v2014 = vadd.f32 0.0, %v2013
        %2015 = vmatmul.bf16.gmra.mxu0 %v1805
        %v2016 = vpop.f32.mrf.mxu0
        %v2017 = vadd.f32 0.0, %v2016
        %v2018 = vpop.f32.mrf.mxu0
        %v2019 = vadd.f32 0.0, %v2018
        %2020 = vmatmul.bf16.gmra.mxu0 %v1807
        %v2021 = vpop.f32.mrf.mxu0
        %v2022 = vadd.f32 0.0, %v2021
        %v2023 = vpop.f32.mrf.mxu0
        %v2024 = vadd.f32 0.0, %v2023
        %2025 = vdwg.mxu0
        %2026 = vmatpush.bf16.msra.mxu0 %v1920
        %2027 = vmatpush.bf16.msra.mxu0 %v1919
        %2028 = vmatpush.bf16.msra.mxu0 %v1918
        %2029 = vmatpush.bf16.msra.mxu0 %v1917
        %2030 = vmatpush.bf16.msra.mxu0 %v1916
        %2031 = vmatpush.bf16.msra.mxu0 %v1915
        %2032 = vmatpush.bf16.msra.mxu0 %v1914
        %2033 = vmatpush.bf16.msra.mxu0 %v1913
        %2034 = vmatmul.bf16.gmra.mxu0 %v1778
        %v2035 = vpop.f32.mrf.mxu0
        %v2036 = vadd.f32 %v1947, %v2035
        %v2037 = vpop.f32.mrf.mxu0
        %v2038 = vadd.f32 %v1949, %v2037
        %2039 = vmatmul.bf16.gmra.mxu0 %v1780
        %v2040 = vpop.f32.mrf.mxu0
        %v2041 = vadd.f32 %v1952, %v2040
        %v2042 = vpop.f32.mrf.mxu0
        %v2043 = vadd.f32 %v1954, %v2042
        %2044 = vmatmul.bf16.gmra.mxu0 %v1782
        %v2045 = vpop.f32.mrf.mxu0
        %v2046 = vadd.f32 %v1957, %v2045
        %v2047 = vpop.f32.mrf.mxu0
        %v2048 = vadd.f32 %v1959, %v2047
        %2049 = vmatmul.bf16.gmra.mxu0 %v1784
        %v2050 = vpop.f32.mrf.mxu0
        %v2051 = vadd.f32 %v1962, %v2050
        %v2052 = vpop.f32.mrf.mxu0
        %v2053 = vadd.f32 %v1964, %v2052
        %2054 = vmatmul.bf16.gmra.mxu0 %v1786
        %v2055 = vpop.f32.mrf.mxu0
        %v2056 = vadd.f32 %v1967, %v2055
        %v2057 = vpop.f32.mrf.mxu0
        %v2058 = vadd.f32 %v1969, %v2057
        %2059 = vmatmul.bf16.gmra.mxu0 %v1788
        %v2060 = vpop.f32.mrf.mxu0
        %v2061 = vadd.f32 %v1972, %v2060
        %v2062 = vpop.f32.mrf.mxu0
        %v2063 = vadd.f32 %v1974, %v2062
        %2064 = vmatmul.bf16.gmra.mxu0 %v1790
        %v2065 = vpop.f32.mrf.mxu0
        %v2066 = vadd.f32 %v1977, %v2065
        %v2067 = vpop.f32.mrf.mxu0
        %v2068 = vadd.f32 %v1979, %v2067
        %2069 = vmatmul.bf16.gmra.mxu0 %v1792
        %v2070 = vpop.f32.mrf.mxu0
        %v2071 = vadd.f32 %v1982, %v2070
        %v2072 = vpop.f32.mrf.mxu0
        %v2073 = vadd.f32 %v1984, %v2072
        %2074 = vmatmul.bf16.gmra.mxu0 %v1794
        %v2075 = vpop.f32.mrf.mxu0
        %v2076 = vadd.f32 %v1987, %v2075
        %v2077 = vpop.f32.mrf.mxu0
        %v2078 = vadd.f32 %v1989, %v2077
        %2079 = vmatmul.bf16.gmra.mxu0 %v1796
        %v2080 = vpop.f32.mrf.mxu0
        %v2081 = vadd.f32 %v1992, %v2080
        %v2082 = vpop.f32.mrf.mxu0
        %v2083 = vadd.f32 %v1994, %v2082
        %2084 = vmatmul.bf16.gmra.mxu0 %v1798
        %v2085 = vpop.f32.mrf.mxu0
        %v2086 = vadd.f32 %v1997, %v2085
        %v2087 = vpop.f32.mrf.mxu0
        %v2088 = vadd.f32 %v1999, %v2087
        %2089 = vmatmul.bf16.gmra.mxu0 %v1800
        %v2090 = vpop.f32.mrf.mxu0
        %v2091 = vadd.f32 %v2002, %v2090
        %v2092 = vpop.f32.mrf.mxu0
        %v2093 = vadd.f32 %v2004, %v2092
        %2094 = vmatmul.bf16.gmra.mxu0 %v1802
        %v2095 = vpop.f32.mrf.mxu0
        %v2096 = vadd.f32 %v2007, %v2095
        %v2097 = vpop.f32.mrf.mxu0
        %v2098 = vadd.f32 %v2009, %v2097
        %2099 = vmatmul.bf16.gmra.mxu0 %v1804
        %v2100 = vpop.f32.mrf.mxu0
        %v2101 = vadd.f32 %v2012, %v2100
        %v2102 = vpop.f32.mrf.mxu0
        %v2103 = vadd.f32 %v2014, %v2102
        %2104 = vmatmul.bf16.gmra.mxu0 %v1806
        %v2105 = vpop.f32.mrf.mxu0
        %v2106 = vadd.f32 %v2017, %v2105
        %v2107 = vpop.f32.mrf.mxu0
        %v2108 = vadd.f32 %v2019, %v2107
        %2109 = vmatmul.bf16.gmra.mxu0 %v1808
        %v2110 = vpop.f32.mrf.mxu0
        %v2111 = vadd.f32 %v2022, %v2110
        %v2112 = vpop.f32.mrf.mxu0
        %v2113 = vadd.f32 %v2024, %v2112
        %2114 = vdwg.mxu0
        %v2115 = vpack.c.bf16 %v2036, %v2036
        %v2116 = vpack.c.bf16 %v2038, %v2038
        %v2117 = vpack.c.bf16 %v2041, %v2041
        %v2118 = vpack.c.bf16 %v2043, %v2043
        %v2119 = vpack.c.bf16 %v2046, %v2046
        %v2120 = vpack.c.bf16 %v2048, %v2048
        %v2121 = vpack.c.bf16 %v2051, %v2051
        %v2122 = vpack.c.bf16 %v2053, %v2053
        %v2123 = vpack.c.bf16 %v2056, %v2056
        %v2124 = vpack.c.bf16 %v2058, %v2058
        %v2125 = vpack.c.bf16 %v2061, %v2061
        %v2126 = vpack.c.bf16 %v2063, %v2063
        %v2127 = vpack.c.bf16 %v2066, %v2066
        %v2128 = vpack.c.bf16 %v2068, %v2068
        %v2129 = vpack.c.bf16 %v2071, %v2071
        %v2130 = vpack.c.bf16 %v2073, %v2073
        %v2131 = vpack.c.bf16 %v2076, %v2076
        %v2132 = vpack.c.bf16 %v2078, %v2078
        %v2133 = vpack.c.bf16 %v2081, %v2081
        %v2134 = vpack.c.bf16 %v2083, %v2083
        %v2135 = vpack.c.bf16 %v2086, %v2086
        %v2136 = vpack.c.bf16 %v2088, %v2088
        %v2137 = vpack.c.bf16 %v2091, %v2091
        %v2138 = vpack.c.bf16 %v2093, %v2093
        %v2139 = vpack.c.bf16 %v2096, %v2096
        %v2140 = vpack.c.bf16 %v2098, %v2098
        %v2141 = vpack.c.bf16 %v2101, %v2101
        %v2142 = vpack.c.bf16 %v2103, %v2103
        %v2143 = vpack.c.bf16 %v2106, %v2106
        %v2144 = vpack.c.bf16 %v2108, %v2108
        %v2145 = vpack.c.bf16 %v2111, %v2111
        %v2146 = vpack.c.bf16 %v2113, %v2113
        %2147 = vst [vmem:[%s786] sm:$0xf] %v2115
        %2148 = vst [vmem:[%s786 + $0x4] sm:$0xf] %v2116
        %2149 = vst [vmem:[%s786 + $0x8] sm:$0xf] %v2117
        %2150 = vst [vmem:[%s786 + $0xc] sm:$0xf] %v2118
        %2151 = vst [vmem:[%s786 + $0x10] sm:$0xf] %v2119
        %2152 = vst [vmem:[%s786 + $0x14] sm:$0xf] %v2120
        %2153 = vst [vmem:[%s786 + $0x18] sm:$0xf] %v2121
        %2154 = vst [vmem:[%s786 + $0x1c] sm:$0xf] %v2122
        %2155 = vst [vmem:[%s786 + $0x20] sm:$0xf] %v2123
        %2156 = vst [vmem:[%s786 + $0x24] sm:$0xf] %v2124
        %2157 = vst [vmem:[%s786 + $0x28] sm:$0xf] %v2125
        %2158 = vst [vmem:[%s786 + $0x2c] sm:$0xf] %v2126
        %2159 = vst [vmem:[%s786 + $0x30] sm:$0xf] %v2127
        %2160 = vst [vmem:[%s786 + $0x34] sm:$0xf] %v2128
        %2161 = vst [vmem:[%s786 + $0x38] sm:$0xf] %v2129
        %2162 = vst [vmem:[%s786 + $0x3c] sm:$0xf] %v2130
        %2163 = vst [vmem:[%s786 + $0x40] sm:$0xf] %v2131
        %2164 = vst [vmem:[%s786 + $0x44] sm:$0xf] %v2132
        %2165 = vst [vmem:[%s786 + $0x48] sm:$0xf] %v2133
        %2166 = vst [vmem:[%s786 + $0x4c] sm:$0xf] %v2134
        %2167 = vst [vmem:[%s786 + $0x50] sm:$0xf] %v2135
        %2168 = vst [vmem:[%s786 + $0x54] sm:$0xf] %v2136
        %2169 = vst [vmem:[%s786 + $0x58] sm:$0xf] %v2137
        %2170 = vst [vmem:[%s786 + $0x5c] sm:$0xf] %v2138
        %2171 = vst [vmem:[%s786 + $0x60] sm:$0xf] %v2139
        %2172 = vst [vmem:[%s786 + $0x64] sm:$0xf] %v2140
        %2173 = vst [vmem:[%s786 + $0x68] sm:$0xf] %v2141
        %2174 = vst [vmem:[%s786 + $0x6c] sm:$0xf] %v2142
        %2175 = vst [vmem:[%s786 + $0x70] sm:$0xf] %v2143
        %2176 = vst [vmem:[%s786 + $0x74] sm:$0xf] %v2144
        %2177 = vst [vmem:[%s786 + $0x78] sm:$0xf] %v2145
        %2178 = vst [vmem:[%s786 + $0x7c] sm:$0xf] %v2146
        %s2179 = sand.u32 %s140, 1
        %s2180 = sand.u32 %s140, 1
        %s2181 = smul.addr %s2180, 128
        %s2182 = scalar_lea.vmem [#allocation5], %s2181
        %s2183 = sand.u32 %s170, 1
        %s2184 = scalar_lea.sflag [#allocation7], %s2183
        %s2185 = sand.u32 %s170, 1
        %s2186 = smul.addr %s2185, 512
        %s2187 = scalar_lea.vmem [#allocation6], %s2186
        // Predicated region
        $region156: #{run_with_weights.4} parent=142 // pred_check
          %p2188 = pneg %p150
        $region157: #{run_with_weights.4} parent=142 // pred_check_branch
          %2190 = sbr.rel (%p2188) target = $region159
        $region158: #{run_with_weights.4} parent=142 // pred_region
          %s2191 = smul.u32 32, %s26
          %s2192 = smul.addr %s2191, 2
          %s2193 = sadd.s32 %s25, %s2192
          %s2194 = smul.addr %s24, 64
          %s2195 = sadd.s32 %s2193, %s2194
          %s2196 = smul.addr %s2195, 4
          %s2197 = scalar_lea.vmem %s3, %s2196
          // Predicated region
          $region160: #{run_with_weights.4} parent=158 // pred_check
            _
          $region161: #{run_with_weights.4} parent=158 // pred_check_branch
            %2199 = sbr.rel (0) target = $region163
          $region162: #{run_with_weights.4} parent=158 // pred_region
            // Predicated region
            $region164: #{run_with_weights.4} parent=162 // pred_check
              _
            $region165: #{run_with_weights.4} parent=162 // pred_check_branch
              %2201 = sbr.rel target = $region167
            $region166: #{run_with_weights.4} parent=162 // pred_region
              // Predicated region
              $region179: #{run_with_weights.4} parent=166 // pred_check
                _
              $region180: #{run_with_weights.4} parent=166 // pred_check_branch
                %2279 = sbr.rel (0) target = $region182
              $region181: #{run_with_weights.4} parent=166 // pred_region
                loop: start=0, step=1, limit=1
                $region183: #{run_with_weights.4} parent=181 // loop_pre_header
                  _
                $region184: #{run_with_weights.4} parent=181 // loop_header
                  %s2281 = sphi 0, %s2285
                  %p2282 = scmp.ge.s32.totalorder %s2281, 1
                  %s2286 = sphi %s2182, %s2182
                  %s2287 = sphi %s2197, %s2197
                $region185: #{run_with_weights.4} parent=181 // loop_header_branch
                  %2284 = sbr.rel (%p2282) target = $region189
                $region186: #{run_with_weights.4} parent=181 // loop_body
                  _
                $region187: #{run_with_weights.4} parent=181 // loop_footer
                  %s2285 = sadd.s32 1, %s2281
                $region188: #{run_with_weights.4} parent=181 // loop_footer_branch
                  %2280 = sbr.rel target = $region184
                $region189: #{run_with_weights.4} parent=181 // loop_exit
                  _
                %s2289 = ssub.s32 16, 1
                loop: start=0, step=1, limit=1
                $region190: #{run_with_weights.4} parent=181 // loop_pre_header
                  _
                $region191: #{run_with_weights.4} parent=181 // loop_header
                  %s2291 = sphi 0, %s2295
                  %p2292 = scmp.ge.s32.totalorder %s2291, 1
                  %s2296 = sphi %s2182, %s2182
                  %s2297 = sphi %s2197, %s2197
                $region192: #{run_with_weights.4} parent=181 // loop_header_branch
                  %2294 = sbr.rel (%p2292) target = $region196
                $region193: #{run_with_weights.4} parent=181 // loop_body
                  %v2298 = vld [vmem:[%s2296] sm:%s2289]
                  %2299 = vst [vmem:[%s2297] sm:%s2289] %v2298
                  %v2300 = vld [vmem:[%s2296 + $0x4] sm:%s2289]
                  %2301 = vst [vmem:[%s2297 + $0x8] sm:%s2289] %v2300
                  %v2302 = vld [vmem:[%s2296 + $0x8] sm:%s2289]
                  %2303 = vst [vmem:[%s2297 + $0x10] sm:%s2289] %v2302
                  %v2304 = vld [vmem:[%s2296 + $0xc] sm:%s2289]
                  %2305 = vst [vmem:[%s2297 + $0x18] sm:%s2289] %v2304
                  %v2306 = vld [vmem:[%s2296 + $0x10] sm:%s2289]
                  %2307 = vst [vmem:[%s2297 + $0x20] sm:%s2289] %v2306
                  %v2308 = vld [vmem:[%s2296 + $0x14] sm:%s2289]
                  %2309 = vst [vmem:[%s2297 + $0x28] sm:%s2289] %v2308
                  %v2310 = vld [vmem:[%s2296 + $0x18] sm:%s2289]
                  %2311 = vst [vmem:[%s2297 + $0x30] sm:%s2289] %v2310
                  %v2312 = vld [vmem:[%s2296 + $0x1c] sm:%s2289]
                  %2313 = vst [vmem:[%s2297 + $0x38] sm:%s2289] %v2312
                  %v2314 = vld [vmem:[%s2296 + $0x20] sm:%s2289]
                  %2315 = vst [vmem:[%s2297 + $0x40] sm:%s2289] %v2314
                  %v2316 = vld [vmem:[%s2296 + $0x24] sm:%s2289]
                  %2317 = vst [vmem:[%s2297 + $0x48] sm:%s2289] %v2316
                  %v2318 = vld [vmem:[%s2296 + $0x28] sm:%s2289]
                  %2319 = vst [vmem:[%s2297 + $0x50] sm:%s2289] %v2318
                  %v2320 = vld [vmem:[%s2296 + $0x2c] sm:%s2289]
                  %2321 = vst [vmem:[%s2297 + $0x58] sm:%s2289] %v2320
                  %v2322 = vld [vmem:[%s2296 + $0x30] sm:%s2289]
                  %2323 = vst [vmem:[%s2297 + $0x60] sm:%s2289] %v2322
                  %v2324 = vld [vmem:[%s2296 + $0x34] sm:%s2289]
                  %2325 = vst [vmem:[%s2297 + $0x68] sm:%s2289] %v2324
                  %v2326 = vld [vmem:[%s2296 + $0x38] sm:%s2289]
                  %2327 = vst [vmem:[%s2297 + $0x70] sm:%s2289] %v2326
                  %v2328 = vld [vmem:[%s2296 + $0x3c] sm:%s2289]
                  %2329 = vst [vmem:[%s2297 + $0x78] sm:%s2289] %v2328
                  %v2330 = vld [vmem:[%s2296 + $0x40] sm:%s2289]
                  %2331 = vst [vmem:[%s2297 + $0x80] sm:%s2289] %v2330
                  %v2332 = vld [vmem:[%s2296 + $0x44] sm:%s2289]
                  %2333 = vst [vmem:[%s2297 + $0x88] sm:%s2289] %v2332
                  %v2334 = vld [vmem:[%s2296 + $0x48] sm:%s2289]
                  %2335 = vst [vmem:[%s2297 + $0x90] sm:%s2289] %v2334
                  %v2336 = vld [vmem:[%s2296 + $0x4c] sm:%s2289]
                  %2337 = vst [vmem:[%s2297 + $0x98] sm:%s2289] %v2336
                  %v2338 = vld [vmem:[%s2296 + $0x50] sm:%s2289]
                  %2339 = vst [vmem:[%s2297 + $0xa0] sm:%s2289] %v2338
                  %v2340 = vld [vmem:[%s2296 + $0x54] sm:%s2289]
                  %2341 = vst [vmem:[%s2297 + $0xa8] sm:%s2289] %v2340
                  %v2342 = vld [vmem:[%s2296 + $0x58] sm:%s2289]
                  %2343 = vst [vmem:[%s2297 + $0xb0] sm:%s2289] %v2342
                  %v2344 = vld [vmem:[%s2296 + $0x5c] sm:%s2289]
                  %2345 = vst [vmem:[%s2297 + $0xb8] sm:%s2289] %v2344
                  %v2346 = vld [vmem:[%s2296 + $0x60] sm:%s2289]
                  %2347 = vst [vmem:[%s2297 + $0xc0] sm:%s2289] %v2346
                  %v2348 = vld [vmem:[%s2296 + $0x64] sm:%s2289]
                  %2349 = vst [vmem:[%s2297 + $0xc8] sm:%s2289] %v2348
                  %v2350 = vld [vmem:[%s2296 + $0x68] sm:%s2289]
                  %2351 = vst [vmem:[%s2297 + $0xd0] sm:%s2289] %v2350
                  %v2352 = vld [vmem:[%s2296 + $0x6c] sm:%s2289]
                  %2353 = vst [vmem:[%s2297 + $0xd8] sm:%s2289] %v2352
                  %v2354 = vld [vmem:[%s2296 + $0x70] sm:%s2289]
                  %2355 = vst [vmem:[%s2297 + $0xe0] sm:%s2289] %v2354
                  %v2356 = vld [vmem:[%s2296 + $0x74] sm:%s2289]
                  %2357 = vst [vmem:[%s2297 + $0xe8] sm:%s2289] %v2356
                  %v2358 = vld [vmem:[%s2296 + $0x78] sm:%s2289]
                  %2359 = vst [vmem:[%s2297 + $0xf0] sm:%s2289] %v2358
                  %v2360 = vld [vmem:[%s2296 + $0x7c] sm:%s2289]
                  %2361 = vst [vmem:[%s2297 + $0xf8] sm:%s2289] %v2360
                $region194: #{run_with_weights.4} parent=181 // loop_footer
                  %s2295 = sadd.s32 1, %s2291
                $region195: #{run_with_weights.4} parent=181 // loop_footer_branch
                  %2290 = sbr.rel target = $region191
                $region196: #{run_with_weights.4} parent=181 // loop_exit
                  _
              $region182: #{run_with_weights.4} parent=166 // pred_fallthru
                _
            $region167: #{run_with_weights.4} parent=162 // pred_fallthru
              _
            // Predicated region
            $region168: #{run_with_weights.4} parent=162 // pred_check
              _
            $region169: #{run_with_weights.4} parent=162 // pred_check_branch
              %2203 = sbr.rel (0) target = $region171
            $region170: #{run_with_weights.4} parent=162 // pred_region
              %s2205 = ssub.s32 16, 1
              loop: start=0, step=1, limit=1
              $region172: #{run_with_weights.4} parent=170 // loop_pre_header
                _
              $region173: #{run_with_weights.4} parent=170 // loop_header
                %s2207 = sphi 0, %s2211
                %p2208 = scmp.ge.s32.totalorder %s2207, 1
                %s2212 = sphi %s2182, %s2182
                %s2213 = sphi %s2197, %s2197
              $region174: #{run_with_weights.4} parent=170 // loop_header_branch
                %2210 = sbr.rel (%p2208) target = $region178
              $region175: #{run_with_weights.4} parent=170 // loop_body
                %v2214 = vld [vmem:[%s2212] sm:%s2205]
                %2215 = vst [vmem:[%s2213] sm:%s2205] %v2214
                %v2216 = vld [vmem:[%s2212 + $0x4] sm:%s2205]
                %2217 = vst [vmem:[%s2213 + $0x8] sm:%s2205] %v2216
                %v2218 = vld [vmem:[%s2212 + $0x8] sm:%s2205]
                %2219 = vst [vmem:[%s2213 + $0x10] sm:%s2205] %v2218
                %v2220 = vld [vmem:[%s2212 + $0xc] sm:%s2205]
                %2221 = vst [vmem:[%s2213 + $0x18] sm:%s2205] %v2220
                %v2222 = vld [vmem:[%s2212 + $0x10] sm:%s2205]
                %2223 = vst [vmem:[%s2213 + $0x20] sm:%s2205] %v2222
                %v2224 = vld [vmem:[%s2212 + $0x14] sm:%s2205]
                %2225 = vst [vmem:[%s2213 + $0x28] sm:%s2205] %v2224
                %v2226 = vld [vmem:[%s2212 + $0x18] sm:%s2205]
                %2227 = vst [vmem:[%s2213 + $0x30] sm:%s2205] %v2226
                %v2228 = vld [vmem:[%s2212 + $0x1c] sm:%s2205]
                %2229 = vst [vmem:[%s2213 + $0x38] sm:%s2205] %v2228
                %v2230 = vld [vmem:[%s2212 + $0x20] sm:%s2205]
                %2231 = vst [vmem:[%s2213 + $0x40] sm:%s2205] %v2230
                %v2232 = vld [vmem:[%s2212 + $0x24] sm:%s2205]
                %2233 = vst [vmem:[%s2213 + $0x48] sm:%s2205] %v2232
                %v2234 = vld [vmem:[%s2212 + $0x28] sm:%s2205]
                %2235 = vst [vmem:[%s2213 + $0x50] sm:%s2205] %v2234
                %v2236 = vld [vmem:[%s2212 + $0x2c] sm:%s2205]
                %2237 = vst [vmem:[%s2213 + $0x58] sm:%s2205] %v2236
                %v2238 = vld [vmem:[%s2212 + $0x30] sm:%s2205]
                %2239 = vst [vmem:[%s2213 + $0x60] sm:%s2205] %v2238
                %v2240 = vld [vmem:[%s2212 + $0x34] sm:%s2205]
                %2241 = vst [vmem:[%s2213 + $0x68] sm:%s2205] %v2240
                %v2242 = vld [vmem:[%s2212 + $0x38] sm:%s2205]
                %2243 = vst [vmem:[%s2213 + $0x70] sm:%s2205] %v2242
                %v2244 = vld [vmem:[%s2212 + $0x3c] sm:%s2205]
                %2245 = vst [vmem:[%s2213 + $0x78] sm:%s2205] %v2244
                %v2246 = vld [vmem:[%s2212 + $0x40] sm:%s2205]
                %2247 = vst [vmem:[%s2213 + $0x80] sm:%s2205] %v2246
                %v2248 = vld [vmem:[%s2212 + $0x44] sm:%s2205]
                %2249 = vst [vmem:[%s2213 + $0x88] sm:%s2205] %v2248
                %v2250 = vld [vmem:[%s2212 + $0x48] sm:%s2205]
                %2251 = vst [vmem:[%s2213 + $0x90] sm:%s2205] %v2250
                %v2252 = vld [vmem:[%s2212 + $0x4c] sm:%s2205]
                %2253 = vst [vmem:[%s2213 + $0x98] sm:%s2205] %v2252
                %v2254 = vld [vmem:[%s2212 + $0x50] sm:%s2205]
                %2255 = vst [vmem:[%s2213 + $0xa0] sm:%s2205] %v2254
                %v2256 = vld [vmem:[%s2212 + $0x54] sm:%s2205]
                %2257 = vst [vmem:[%s2213 + $0xa8] sm:%s2205] %v2256
                %v2258 = vld [vmem:[%s2212 + $0x58] sm:%s2205]
                %2259 = vst [vmem:[%s2213 + $0xb0] sm:%s2205] %v2258
                %v2260 = vld [vmem:[%s2212 + $0x5c] sm:%s2205]
                %2261 = vst [vmem:[%s2213 + $0xb8] sm:%s2205] %v2260
                %v2262 = vld [vmem:[%s2212 + $0x60] sm:%s2205]
                %2263 = vst [vmem:[%s2213 + $0xc0] sm:%s2205] %v2262
                %v2264 = vld [vmem:[%s2212 + $0x64] sm:%s2205]
                %2265 = vst [vmem:[%s2213 + $0xc8] sm:%s2205] %v2264
                %v2266 = vld [vmem:[%s2212 + $0x68] sm:%s2205]
                %2267 = vst [vmem:[%s2213 + $0xd0] sm:%s2205] %v2266
                %v2268 = vld [vmem:[%s2212 + $0x6c] sm:%s2205]
                %2269 = vst [vmem:[%s2213 + $0xd8] sm:%s2205] %v2268
                %v2270 = vld [vmem:[%s2212 + $0x70] sm:%s2205]
                %2271 = vst [vmem:[%s2213 + $0xe0] sm:%s2205] %v2270
                %v2272 = vld [vmem:[%s2212 + $0x74] sm:%s2205]
                %2273 = vst [vmem:[%s2213 + $0xe8] sm:%s2205] %v2272
                %v2274 = vld [vmem:[%s2212 + $0x78] sm:%s2205]
                %2275 = vst [vmem:[%s2213 + $0xf0] sm:%s2205] %v2274
                %v2276 = vld [vmem:[%s2212 + $0x7c] sm:%s2205]
                %2277 = vst [vmem:[%s2213 + $0xf8] sm:%s2205] %v2276
              $region176: #{run_with_weights.4} parent=170 // loop_footer
                %s2211 = sadd.s32 1, %s2207
              $region177: #{run_with_weights.4} parent=170 // loop_footer_branch
                %2206 = sbr.rel target = $region173
              $region178: #{run_with_weights.4} parent=170 // loop_exit
                _
            $region171: #{run_with_weights.4} parent=162 // pred_fallthru
              _
          $region163: #{run_with_weights.4} parent=158 // pred_fallthru
            _
          %2362 = vnop
        $region159: #{run_with_weights.4} parent=142 // pred_fallthru
          _
        // Predicated region
        $region197: #{run_with_weights.4} parent=142 // pred_check
          %p2363 = pneg %p180
        $region198: #{run_with_weights.4} parent=142 // pred_check_branch
          %2365 = sbr.rel (%p2363) target = $region200
        $region199: #{run_with_weights.4} parent=142 // pred_region
          %s2366 = smul.u32 32, %s26
          %2368 = vsyncadd %s2184, 0
          %s2369 = smul.addr %s2366, 2
          %s2370 = smul.addr %s25, 64
          %s2371 = sadd.s32 %s2369, %s2370
          %s2372 = smul.addr %s24, 128
          %s2373 = sadd.s32 %s2371, %s2372
          %s2374 = smul.addr %s2373, 8
          %s2375 = scalar_lea.hbm %s4, %s2374
          %s2376 = sshll.u32 %s2187, 4
          %s2377 = int_to_ptr.vmem [resolvable:$true] %s2376
          %s2378 = sshll.u32 %s2375, 4
          %s2379 = int_to_ptr.hbm [resolvable:$true] %s2378
          %2384 = dma.vmem_to_hbm [thread:$0]  %s2377, 8192, %s2379, %s2184, 256, 256, 16
        $region200: #{run_with_weights.4} parent=142 // pred_fallthru
          _
      $region143: #{run_with_weights.4} parent=5 // pred_fallthru
        _
      %p2385 = scmp.le.s32.totalorder 2, %s14
      // Predicated region
      $region201: #{run_with_weights.4} parent=5 // pred_check
        %p2386 = pneg %p2385
      $region202: #{run_with_weights.4} parent=5 // pred_check_branch
        %2388 = sbr.rel (%p2386) target = $region204
      $region203: #{run_with_weights.4} parent=5 // pred_region
        %s2389 = ssub.s32 %s14, 2
        // Predicated region
        $region205: #{run_with_weights.4} parent=203 // pred_check
          %p2390 = pneg %p156
        $region206: #{run_with_weights.4} parent=203 // pred_check_branch
          %2392 = sbr.rel (%p2390) target = $region208
        $region207: #{run_with_weights.4} parent=203 // pred_region
          %s2393 = sand.u32 %s141, 1
          %s2394 = sand.u32 %s141, 1
          %s2395 = smul.addr %s2394, 128
          %s2396 = scalar_lea.vmem [#allocation5], %s2395
        $region208: #{run_with_weights.4} parent=203 // pred_fallthru
          _
        // Predicated region
        $region209: #{run_with_weights.4} parent=203 // pred_check
          %p2397 = pneg %p186
        $region210: #{run_with_weights.4} parent=203 // pred_check_branch
          %2399 = sbr.rel (%p2397) target = $region212
        $region211: #{run_with_weights.4} parent=203 // pred_region
          %s2400 = sand.u32 %s171, 1
          %s2401 = scalar_lea.sflag [#allocation7], %s2400
          %s2402 = sand.u32 %s171, 1
          %s2403 = smul.addr %s2402, 512
          %s2404 = scalar_lea.vmem [#allocation6], %s2403
          %2406 = dma.done %s2401, 8192
        $region212: #{run_with_weights.4} parent=203 // pred_fallthru
          _
      $region204: #{run_with_weights.4} parent=5 // pred_fallthru
        _
    $region6: #{run_with_weights.4} parent=1 // loop_footer
      %s18 = sadd.s32 1, %s14
    $region7: #{run_with_weights.4} parent=1 // loop_footer_branch
      %13 = sbr.rel target = $region3
    $region8: #{run_with_weights.4} parent=1 // loop_exit
      _
    %2407 = vsyncpa [#allocation7], 1
    %s2408 = scalar_lea.sflag [#allocation7], 1
    %2409 = vsyncpa %s2408, 1

</llo_original>
